<compile_context>
chip_gen: v6e
topology: v6e:2x2x1
jax: 0.10.0
libtpu: 0.0.40
codegen_flags: <defaults>
</compile_context>

<pallas_src>
import functools

import jax
import jax.numpy as jnp
from jax.experimental import pallas as pl
from jax.experimental.pallas import tpu as pltpu


# ---------------------------------------------------------------------------
# In-kernel LSTM helpers (operate on VMEM-resident values, fully unrolled).
# ---------------------------------------------------------------------------
def _lstm_cell_step(gx, h, c, whh, H):
    """One recurrence step; gx = x_t @ W_ih + b is precomputed off the serial path."""
    gates = gx + jnp.dot(h, whh, preferred_element_type=jnp.float32)      # (B, 4H)
    s = jax.nn.sigmoid(gates)                 # one EUP pass over all 4H lanes
    i_g = s[:, 0 * H:1 * H]
    f_g = s[:, 1 * H:2 * H]
    o_g = s[:, 3 * H:4 * H]
    g_g = jnp.tanh(gates[:, 2 * H:3 * H])
    c_new = f_g * c + i_g * g_g
    h_new = o_g * jnp.tanh(c_new)
    return h_new, c_new


def _run_direction(x_bti, wih, whh, b, *, reverse, num_steps=None):
    """Run one LSTM direction over the sequence (values never leave VMEM).

    Returns (per-timestep outputs list indexed by original time, final hidden).
    Only entries for processed steps are populated.
    """
    B, T, I = x_bti.shape
    H = whh.shape[0]
    # Hoisted input projection for all timesteps: a single MXU pass.
    gx_all = jnp.dot(x_bti.reshape(B * T, I), wih,
                     preferred_element_type=jnp.float32) + b              # (B*T, 4H)
    gx_all = gx_all.reshape(B, T, 4 * H)

    h = jnp.zeros((B, H), jnp.float32)
    c = jnp.zeros((B, H), jnp.float32)
    order = tuple(reversed(range(T))) if reverse else tuple(range(T))
    if num_steps is not None:
        order = order[:num_steps]
    outs = [None] * T
    for t in order:                                   # static, fully unrolled
        h, c = _lstm_cell_step(gx_all[:, t, :], h, c, whh, H)
        outs[t] = h
    return outs, h


def _run_stack_last(x_bti, layer_params, num_layers, num_dirs):
    """Multi-layer (optionally bidirectional) LSTM; returns only the output of
    the LAST timestep (all the head consumes)."""
    cur = x_bti
    T = x_bti.shape[1]
    for layer in range(num_layers):
        is_last = layer == num_layers - 1
        p_fwd = layer_params[layer * num_dirs + 0]
        if is_last:
            _, h_fwd = _run_direction(cur, *p_fwd, reverse=False)
            if num_dirs == 1:
                return h_fwd
            # Backward direction's output at the last time index is its hidden
            # state after processing x[T-1] only -> exactly one step needed.
            p_bwd = layer_params[layer * num_dirs + 1]
            outs_bwd, _ = _run_direction(cur, *p_bwd, reverse=True, num_steps=1)
            return jnp.concatenate([h_fwd, outs_bwd[T - 1]], axis=-1)
        # Intermediate layer: next layer needs the full output sequence; it is
        # kept as VMEM-resident values (never written to HBM).
        outs_fwd, _ = _run_direction(cur, *p_fwd, reverse=False)
        seq_fwd = jnp.stack(outs_fwd, axis=1)                              # (B, T, H)
        if num_dirs == 1:
            cur = seq_fwd
        else:
            p_bwd = layer_params[layer * num_dirs + 1]
            outs_bwd, _ = _run_direction(cur, *p_bwd, reverse=True)
            seq_bwd = jnp.stack(outs_bwd, axis=1)
            cur = jnp.concatenate([seq_fwd, seq_bwd], axis=-1)
        # TODO(synk): nn.LSTM inter-layer dropout omitted (eval forward, p=0.0).
    raise AssertionError("num_layers must be >= 1")


# ---------------------------------------------------------------------------
# Fully fused AquaNet kernel.
# ---------------------------------------------------------------------------
def _aquanet_kernel(ax_ref, tx_ref, *rest, audio_layers, audio_dirs,
                    text_layers, text_dirs, n_classes):
    refs, o_ref = rest[:-1], rest[-1]

    def read_lstm_params(offset, num_units):
        vals = []
        for p in range(offset, offset + 3 * num_units, 3):
            vals.append((refs[p][...], refs[p + 1][...], refs[p + 2][...]))
        return vals

    n_audio = audio_layers * audio_dirs
    n_text = text_layers * text_dirs
    audio_params = read_lstm_params(0, n_audio)
    text_params = read_lstm_params(3 * n_audio, n_text)
    hoff = 3 * (n_audio + n_text)
    w1 = refs[hoff + 0][...]
    b1 = refs[hoff + 1][...]
    w2 = refs[hoff + 2][...]
    b2 = refs[hoff + 3][...]
    wc = refs[hoff + 4][...]      # PyTorch layout (n_classes, n2)
    bc = refs[hoff + 5][...]

    a_last = _run_stack_last(ax_ref[...].astype(jnp.float32),
                             audio_params, audio_layers, audio_dirs)
    t_last = _run_stack_last(tx_ref[...].astype(jnp.float32),
                             text_params, text_layers, text_dirs)

    merge = jnp.concatenate([a_last, t_last], axis=-1)                     # (B, D)
    h1 = jnp.maximum(
        jnp.dot(merge, w1, preferred_element_type=jnp.float32) + b1, 0.0)
    h2 = jnp.maximum(
        jnp.dot(h1, w2, preferred_element_type=jnp.float32) + b2, 0.0)
    if n_classes == 1:
        # wc is already a lane-dense (1, n2) row: VPU multiply + lane reduction
        # instead of an N=1 MXU matmul with a fully masked output.
        logits = jnp.sum(h2 * wc, axis=-1, keepdims=True) + bc
        logits = jax.nn.sigmoid(logits)
    else:
        logits = jax.lax.dot_general(
            h2, wc, dimension_numbers=(((1,), (1,)), ((), ()))) + bc
    o_ref[...] = logits.astype(o_ref.dtype)


def aquanet_forward_pallas(audio_feat_in, text_feat_in, params, hp):
    a_layers = hp["audio_lstm_n_layers"]
    a_dirs = 2 if hp["audio_bidirectional"] else 1
    t_layers = hp["text_lstm_n_layers"]
    t_dirs = 2 if hp["text_bidirectional"] else 1
    n_classes = hp["n_classes"]
    B = audio_feat_in.shape[0]

    flat = []
    for layer in range(a_layers):
        for d in range(a_dirs):
            flat.extend(params["audio_lstm"][(layer, d)])
    for layer in range(t_layers):
        for d in range(t_dirs):
            flat.extend(params["text_lstm"][(layer, d)])
    flat.extend(params["head"])

    kernel = functools.partial(
        _aquanet_kernel,
        audio_layers=a_layers, audio_dirs=a_dirs,
        text_layers=t_layers, text_dirs=t_dirs,
        n_classes=n_classes)

    num_inputs = 2 + len(flat)
    return pl.pallas_call(
        kernel,
        out_shape=jax.ShapeDtypeStruct((B, n_classes), jnp.float32),
        in_specs=[pl.BlockSpec(memory_space=pltpu.MemorySpace.VMEM)] * num_inputs,
        out_specs=pl.BlockSpec(memory_space=pltpu.MemorySpace.VMEM),
    )(audio_feat_in, text_feat_in, *flat)


# ---------------------------------------------------------------------------
# Pure-JAX reference (mirrors PyTorch nn.LSTM batch_first semantics).
# ---------------------------------------------------------------------------
def _lstm_layer_ref(x_tbi, wih_t, whh_t, b):
    H = whh_t.shape[0]
    B = x_tbi.shape[1]

    def step(carry, x_t):
        h, c = carry
        gates = x_t @ wih_t + h @ whh_t + b
        i_g = jax.nn.sigmoid(gates[:, 0 * H:1 * H])
        f_g = jax.nn.sigmoid(gates[:, 1 * H:2 * H])
        g_g = jnp.tanh(gates[:, 2 * H:3 * H])
        o_g = jax.nn.sigmoid(gates[:, 3 * H:4 * H])
        c = f_g * c + i_g * g_g
        h = o_g * jnp.tanh(c)
        return (h, c), h

    init = (jnp.zeros((B, H), jnp.float32), jnp.zeros((B, H), jnp.float32))
    _, ys = jax.lax.scan(step, init, x_tbi)
    return ys


def _lstm_stack_ref(x_bti, lstm_params, num_layers, bidirectional):
    x = jnp.swapaxes(x_bti, 0, 1)                      # (T, B, I)
    num_dirs = 2 if bidirectional else 1
    out = x
    for layer in range(num_layers):
        dir_outs = []
        for d in range(num_dirs):
            wih_t, whh_t, b = lstm_params[(layer, d)]
            inp = out if d == 0 else jnp.flip(out, axis=0)
            y = _lstm_layer_ref(inp, wih_t, whh_t, b)
            if d == 1:
                y = jnp.flip(y, axis=0)
            dir_outs.append(y)
        out = dir_outs[0] if num_dirs == 1 else jnp.concatenate(dir_outs, axis=-1)
    return jnp.swapaxes(out, 0, 1)                     # (B, T, H*dirs)


def aquanet_forward_ref(audio_feat_in, text_feat_in, params, hp):
    a_out = _lstm_stack_ref(audio_feat_in, params["audio_lstm"],
                            hp["audio_lstm_n_layers"], hp["audio_bidirectional"])
    t_out = _lstm_stack_ref(text_feat_in, params["text_lstm"],
                            hp["text_lstm_n_layers"], hp["text_bidirectional"])
    merge = jnp.concatenate([a_out[:, -1, :], t_out[:, -1, :]], axis=-1)
    w1t, b1, w2t, b2, wc, bc = params["head"]
    h1 = jnp.maximum(merge @ w1t + b1, 0.0)
    h2 = jnp.maximum(h1 @ w2t + b2, 0.0)
    logits = h2 @ wc.T + bc
    if hp["n_classes"] == 1:
        logits = jax.nn.sigmoid(logits)
    return logits


# ---------------------------------------------------------------------------
# Parameter init helpers.
# ---------------------------------------------------------------------------
def _init_lstm_params(key, input_size, hidden_size, num_layers, bidirectional,
                      scale=0.1):
    num_dirs = 2 if bidirectional else 1
    lstm_params = {}
    for layer in range(num_layers):
        in_size = input_size if layer == 0 else hidden_size * num_dirs
        for d in range(num_dirs):
            key, k1, k2, k3 = jax.random.split(key, 4)
            wih_t = scale * jax.random.normal(k1, (in_size, 4 * hidden_size), jnp.float32)
            whh_t = scale * jax.random.normal(k2, (hidden_size, 4 * hidden_size), jnp.float32)
            # Corresponds to PyTorch's b_ih + b_hh folded into one vector.
            b = scale * jax.random.normal(k3, (1, 4 * hidden_size), jnp.float32)
            lstm_params[(layer, d)] = (wih_t, whh_t, b)
    return lstm_params, key


def _init_head_params(key, d_in, n1, n2, n_classes, scale=0.1):
    key, k1, k2, k3, k4, k5, k6 = jax.random.split(key, 7)
    w1t = scale * jax.random.normal(k1, (d_in, n1), jnp.float32)
    b1 = scale * jax.random.normal(k2, (1, n1), jnp.float32)
    w2t = scale * jax.random.normal(k3, (n1, n2), jnp.float32)
    b2 = scale * jax.random.normal(k4, (1, n2), jnp.float32)
    # Classifier weight kept in PyTorch (out, in) layout so the n_classes == 1
    # case is already a lane-dense (1, n2) row for the in-kernel VPU reduction.
    wc = scale * jax.random.normal(k5, (n_classes, n2), jnp.float32)
    bc = scale * jax.random.normal(k6, (1, n_classes), jnp.float32)
    return (w1t, b1, w2t, b2, wc, bc), key


if __name__ == "__main__":
    hp = {
        "audio_input_size": 32, "audio_lstm_hidden_size": 32,
        "audio_lstm_n_layers": 1, "audio_lstm_dropout": 0.0,
        "audio_bidirectional": False,
        "text_input_size": 16, "text_lstm_hidden_size": 32,
        "text_lstm_n_layers": 1, "text_lstm_dropout": 0.0,
        "text_bidirectional": True,
        "dense1_input": 32 * 1 + 32 * 2,   # audio (uni) + text (bi) = 96
        "n_dense1_units": 64, "n_dense2_units": 32, "n_classes": 1,
    }
    B, T_AUDIO, T_TEXT = 2, 8, 8

    key = jax.random.PRNGKey(0)
    key, ka, kt = jax.random.split(key, 3)
    audio_feat_in = jax.random.normal(ka, (B, T_AUDIO, hp["audio_input_size"]), jnp.float32)
    text_feat_in = jax.random.normal(kt, (B, T_TEXT, hp["text_input_size"]), jnp.float32)

    audio_params, key = _init_lstm_params(
        key, hp["audio_input_size"], hp["audio_lstm_hidden_size"],
        hp["audio_lstm_n_layers"], hp["audio_bidirectional"])
    text_params, key = _init_lstm_params(
        key, hp["text_input_size"], hp["text_lstm_hidden_size"],
        hp["text_lstm_n_layers"], hp["text_bidirectional"])
    head_params, key = _init_head_params(
        key, hp["dense1_input"], hp["n_dense1_units"], hp["n_dense2_units"],
        hp["n_classes"])

    params = {"audio_lstm": audio_params, "text_lstm": text_params, "head": head_params}

    out = jax.block_until_ready(
        aquanet_forward_pallas(audio_feat_in, text_feat_in, params, hp))
    ref = jax.block_until_ready(
        aquanet_forward_ref(audio_feat_in, text_feat_in, params, hp))

    assert out.shape == (B, hp["n_classes"]), (out.shape,)
    assert jnp.allclose(out, ref, rtol=1e-3, atol=1e-3), (out, ref)
    print("KERNEL_OK")
</pallas_src>

<mosaic_0001>
module attributes {stable_mosaic.version = 11 : i64} {
  func.func @_aquanet_kernel(%arg0: memref<2x8x32xf32, #tpu.memory_space<vmem>>, %arg1: memref<2x8x16xf32, #tpu.memory_space<vmem>>, %arg2: memref<32x128xf32, #tpu.memory_space<vmem>>, %arg3: memref<32x128xf32, #tpu.memory_space<vmem>>, %arg4: memref<1x128xf32, #tpu.memory_space<vmem>>, %arg5: memref<16x128xf32, #tpu.memory_space<vmem>>, %arg6: memref<32x128xf32, #tpu.memory_space<vmem>>, %arg7: memref<1x128xf32, #tpu.memory_space<vmem>>, %arg8: memref<16x128xf32, #tpu.memory_space<vmem>>, %arg9: memref<32x128xf32, #tpu.memory_space<vmem>>, %arg10: memref<1x128xf32, #tpu.memory_space<vmem>>, %arg11: memref<96x64xf32, #tpu.memory_space<vmem>>, %arg12: memref<1x64xf32, #tpu.memory_space<vmem>>, %arg13: memref<64x32xf32, #tpu.memory_space<vmem>>, %arg14: memref<1x32xf32, #tpu.memory_space<vmem>>, %arg15: memref<1x32xf32, #tpu.memory_space<vmem>>, %arg16: memref<1x1xf32, #tpu.memory_space<vmem>>, %arg17: memref<2x1xf32, #tpu.memory_space<vmem>>) attributes {dimension_semantics = [], scalar_prefetch = 0 : i64, scratch_operands = 0 : i64, tpu.core_type = #tpu.core_type<tc>} {
    %c0 = arith.constant 0 : index
    %c0_0 = arith.constant 0 : index
    %0 = vector.load %arg2[%c0, %c0_0] : memref<32x128xf32, #tpu.memory_space<vmem>>, vector<32x128xf32>
    %c0_1 = arith.constant 0 : index
    %c0_2 = arith.constant 0 : index
    %1 = vector.load %arg3[%c0_1, %c0_2] : memref<32x128xf32, #tpu.memory_space<vmem>>, vector<32x128xf32>
    %c0_3 = arith.constant 0 : index
    %c0_4 = arith.constant 0 : index
    %2 = vector.load %arg4[%c0_3, %c0_4] : memref<1x128xf32, #tpu.memory_space<vmem>>, vector<1x128xf32>
    %c0_5 = arith.constant 0 : index
    %c0_6 = arith.constant 0 : index
    %3 = vector.load %arg5[%c0_5, %c0_6] : memref<16x128xf32, #tpu.memory_space<vmem>>, vector<16x128xf32>
    %c0_7 = arith.constant 0 : index
    %c0_8 = arith.constant 0 : index
    %4 = vector.load %arg6[%c0_7, %c0_8] : memref<32x128xf32, #tpu.memory_space<vmem>>, vector<32x128xf32>
    %c0_9 = arith.constant 0 : index
    %c0_10 = arith.constant 0 : index
    %5 = vector.load %arg7[%c0_9, %c0_10] : memref<1x128xf32, #tpu.memory_space<vmem>>, vector<1x128xf32>
    %c0_11 = arith.constant 0 : index
    %c0_12 = arith.constant 0 : index
    %6 = vector.load %arg8[%c0_11, %c0_12] : memref<16x128xf32, #tpu.memory_space<vmem>>, vector<16x128xf32>
    %c0_13 = arith.constant 0 : index
    %c0_14 = arith.constant 0 : index
    %7 = vector.load %arg9[%c0_13, %c0_14] : memref<32x128xf32, #tpu.memory_space<vmem>>, vector<32x128xf32>
    %c0_15 = arith.constant 0 : index
    %c0_16 = arith.constant 0 : index
    %8 = vector.load %arg10[%c0_15, %c0_16] : memref<1x128xf32, #tpu.memory_space<vmem>>, vector<1x128xf32>
    %c0_17 = arith.constant 0 : index
    %c0_18 = arith.constant 0 : index
    %9 = vector.load %arg11[%c0_17, %c0_18] : memref<96x64xf32, #tpu.memory_space<vmem>>, vector<96x64xf32>
    %c0_19 = arith.constant 0 : index
    %c0_20 = arith.constant 0 : index
    %10 = vector.load %arg12[%c0_19, %c0_20] : memref<1x64xf32, #tpu.memory_space<vmem>>, vector<1x64xf32>
    %c0_21 = arith.constant 0 : index
    %c0_22 = arith.constant 0 : index
    %11 = vector.load %arg13[%c0_21, %c0_22] : memref<64x32xf32, #tpu.memory_space<vmem>>, vector<64x32xf32>
    %c0_23 = arith.constant 0 : index
    %c0_24 = arith.constant 0 : index
    %12 = vector.load %arg14[%c0_23, %c0_24] : memref<1x32xf32, #tpu.memory_space<vmem>>, vector<1x32xf32>
    %c0_25 = arith.constant 0 : index
    %c0_26 = arith.constant 0 : index
    %13 = vector.load %arg15[%c0_25, %c0_26] : memref<1x32xf32, #tpu.memory_space<vmem>>, vector<1x32xf32>
    %c0_27 = arith.constant 0 : index
    %c0_28 = arith.constant 0 : index
    %14 = vector.load %arg16[%c0_27, %c0_28] : memref<1x1xf32, #tpu.memory_space<vmem>>, vector<1x1xf32>
    %c0_29 = arith.constant 0 : index
    %c0_30 = arith.constant 0 : index
    %c0_31 = arith.constant 0 : index
    %15 = vector.load %arg0[%c0_29, %c0_30, %c0_31] : memref<2x8x32xf32, #tpu.memory_space<vmem>>, vector<2x8x32xf32>
    %16 = vector.shape_cast %15 : vector<2x8x32xf32> to vector<16x32xf32>
    %cst = arith.constant dense<0.000000e+00> : vector<16x128xf32>
    %17 = tpu.matmul %16, %0, %cst {dimension_numbers = #tpu.dot_dimension_numbers<[1], [0], [0], [1], [0, 0, 1, 1], [], []>} : vector<16x32xf32>, vector<32x128xf32>, vector<16x128xf32> -> vector<16x128xf32>
    %18 = vector.broadcast %2 : vector<1x128xf32> to vector<16x128xf32>
    %19 = arith.addf %17, %18 : vector<16x128xf32>
    %20 = vector.shape_cast %19 : vector<16x128xf32> to vector<2x8x128xf32>
    %cst_32 = arith.constant 0.000000e+00 : f32
    %21 = vector.broadcast %cst_32 : f32 to vector<2x32xf32>
    %cst_33 = arith.constant 0.000000e+00 : f32
    %22 = vector.broadcast %cst_33 : f32 to vector<2x32xf32>
    %23 = vector.extract_strided_slice %20 {offsets = [0, 0, 0], sizes = [2, 1, 128], strides = [1, 1, 1]} : vector<2x8x128xf32> to vector<2x1x128xf32>
    %24 = vector.shape_cast %23 : vector<2x1x128xf32> to vector<2x128xf32>
    %cst_34 = arith.constant dense<0.000000e+00> : vector<2x128xf32>
    %25 = tpu.matmul %21, %1, %cst_34 {dimension_numbers = #tpu.dot_dimension_numbers<[1], [0], [0], [1], [0, 0, 1, 1], [], []>} : vector<2x32xf32>, vector<32x128xf32>, vector<2x128xf32> -> vector<2x128xf32>
    %26 = arith.addf %24, %25 : vector<2x128xf32>
    %27 = arith.negf %26 : vector<2x128xf32>
    %28 = math.exp %27 : vector<2x128xf32>
    %cst_35 = arith.constant 1.000000e+00 : f32
    %29 = vector.broadcast %cst_35 : f32 to vector<2x128xf32>
    %30 = arith.addf %29, %28 : vector<2x128xf32>
    %31 = arith.divf %29, %30 : vector<2x128xf32>
    %32 = vector.extract_strided_slice %31 {offsets = [0, 0], sizes = [2, 32], strides = [1, 1]} : vector<2x128xf32> to vector<2x32xf32>
    %33 = vector.extract_strided_slice %31 {offsets = [0, 32], sizes = [2, 32], strides = [1, 1]} : vector<2x128xf32> to vector<2x32xf32>
    %34 = vector.extract_strided_slice %31 {offsets = [0, 96], sizes = [2, 32], strides = [1, 1]} : vector<2x128xf32> to vector<2x32xf32>
    %35 = vector.extract_strided_slice %26 {offsets = [0, 64], sizes = [2, 32], strides = [1, 1]} : vector<2x128xf32> to vector<2x32xf32>
    %36 = math.tanh %35 : vector<2x32xf32>
    %37 = arith.mulf %33, %22 : vector<2x32xf32>
    %38 = arith.mulf %32, %36 : vector<2x32xf32>
    %39 = arith.addf %37, %38 : vector<2x32xf32>
    %40 = math.tanh %39 : vector<2x32xf32>
    %41 = arith.mulf %34, %40 : vector<2x32xf32>
    %42 = vector.extract_strided_slice %20 {offsets = [0, 1, 0], sizes = [2, 1, 128], strides = [1, 1, 1]} : vector<2x8x128xf32> to vector<2x1x128xf32>
    %43 = vector.shape_cast %42 : vector<2x1x128xf32> to vector<2x128xf32>
    %cst_36 = arith.constant dense<0.000000e+00> : vector<2x128xf32>
    %44 = tpu.matmul %41, %1, %cst_36 {dimension_numbers = #tpu.dot_dimension_numbers<[1], [0], [0], [1], [0, 0, 1, 1], [], []>} : vector<2x32xf32>, vector<32x128xf32>, vector<2x128xf32> -> vector<2x128xf32>
    %45 = arith.addf %43, %44 : vector<2x128xf32>
    %46 = arith.negf %45 : vector<2x128xf32>
    %47 = math.exp %46 : vector<2x128xf32>
    %cst_37 = arith.constant 1.000000e+00 : f32
    %48 = vector.broadcast %cst_37 : f32 to vector<2x128xf32>
    %49 = arith.addf %48, %47 : vector<2x128xf32>
    %50 = arith.divf %48, %49 : vector<2x128xf32>
    %51 = vector.extract_strided_slice %50 {offsets = [0, 0], sizes = [2, 32], strides = [1, 1]} : vector<2x128xf32> to vector<2x32xf32>
    %52 = vector.extract_strided_slice %50 {offsets = [0, 32], sizes = [2, 32], strides = [1, 1]} : vector<2x128xf32> to vector<2x32xf32>
    %53 = vector.extract_strided_slice %50 {offsets = [0, 96], sizes = [2, 32], strides = [1, 1]} : vector<2x128xf32> to vector<2x32xf32>
    %54 = vector.extract_strided_slice %45 {offsets = [0, 64], sizes = [2, 32], strides = [1, 1]} : vector<2x128xf32> to vector<2x32xf32>
    %55 = math.tanh %54 : vector<2x32xf32>
    %56 = arith.mulf %52, %39 : vector<2x32xf32>
    %57 = arith.mulf %51, %55 : vector<2x32xf32>
    %58 = arith.addf %56, %57 : vector<2x32xf32>
    %59 = math.tanh %58 : vector<2x32xf32>
    %60 = arith.mulf %53, %59 : vector<2x32xf32>
    %61 = vector.extract_strided_slice %20 {offsets = [0, 2, 0], sizes = [2, 1, 128], strides = [1, 1, 1]} : vector<2x8x128xf32> to vector<2x1x128xf32>
    %62 = vector.shape_cast %61 : vector<2x1x128xf32> to vector<2x128xf32>
    %cst_38 = arith.constant dense<0.000000e+00> : vector<2x128xf32>
    %63 = tpu.matmul %60, %1, %cst_38 {dimension_numbers = #tpu.dot_dimension_numbers<[1], [0], [0], [1], [0, 0, 1, 1], [], []>} : vector<2x32xf32>, vector<32x128xf32>, vector<2x128xf32> -> vector<2x128xf32>
    %64 = arith.addf %62, %63 : vector<2x128xf32>
    %65 = arith.negf %64 : vector<2x128xf32>
    %66 = math.exp %65 : vector<2x128xf32>
    %cst_39 = arith.constant 1.000000e+00 : f32
    %67 = vector.broadcast %cst_39 : f32 to vector<2x128xf32>
    %68 = arith.addf %67, %66 : vector<2x128xf32>
    %69 = arith.divf %67, %68 : vector<2x128xf32>
    %70 = vector.extract_strided_slice %69 {offsets = [0, 0], sizes = [2, 32], strides = [1, 1]} : vector<2x128xf32> to vector<2x32xf32>
    %71 = vector.extract_strided_slice %69 {offsets = [0, 32], sizes = [2, 32], strides = [1, 1]} : vector<2x128xf32> to vector<2x32xf32>
    %72 = vector.extract_strided_slice %69 {offsets = [0, 96], sizes = [2, 32], strides = [1, 1]} : vector<2x128xf32> to vector<2x32xf32>
    %73 = vector.extract_strided_slice %64 {offsets = [0, 64], sizes = [2, 32], strides = [1, 1]} : vector<2x128xf32> to vector<2x32xf32>
    %74 = math.tanh %73 : vector<2x32xf32>
    %75 = arith.mulf %71, %58 : vector<2x32xf32>
    %76 = arith.mulf %70, %74 : vector<2x32xf32>
    %77 = arith.addf %75, %76 : vector<2x32xf32>
    %78 = math.tanh %77 : vector<2x32xf32>
    %79 = arith.mulf %72, %78 : vector<2x32xf32>
    %80 = vector.extract_strided_slice %20 {offsets = [0, 3, 0], sizes = [2, 1, 128], strides = [1, 1, 1]} : vector<2x8x128xf32> to vector<2x1x128xf32>
    %81 = vector.shape_cast %80 : vector<2x1x128xf32> to vector<2x128xf32>
    %cst_40 = arith.constant dense<0.000000e+00> : vector<2x128xf32>
    %82 = tpu.matmul %79, %1, %cst_40 {dimension_numbers = #tpu.dot_dimension_numbers<[1], [0], [0], [1], [0, 0, 1, 1], [], []>} : vector<2x32xf32>, vector<32x128xf32>, vector<2x128xf32> -> vector<2x128xf32>
    %83 = arith.addf %81, %82 : vector<2x128xf32>
    %84 = arith.negf %83 : vector<2x128xf32>
    %85 = math.exp %84 : vector<2x128xf32>
    %cst_41 = arith.constant 1.000000e+00 : f32
    %86 = vector.broadcast %cst_41 : f32 to vector<2x128xf32>
    %87 = arith.addf %86, %85 : vector<2x128xf32>
    %88 = arith.divf %86, %87 : vector<2x128xf32>
    %89 = vector.extract_strided_slice %88 {offsets = [0, 0], sizes = [2, 32], strides = [1, 1]} : vector<2x128xf32> to vector<2x32xf32>
    %90 = vector.extract_strided_slice %88 {offsets = [0, 32], sizes = [2, 32], strides = [1, 1]} : vector<2x128xf32> to vector<2x32xf32>
    %91 = vector.extract_strided_slice %88 {offsets = [0, 96], sizes = [2, 32], strides = [1, 1]} : vector<2x128xf32> to vector<2x32xf32>
    %92 = vector.extract_strided_slice %83 {offsets = [0, 64], sizes = [2, 32], strides = [1, 1]} : vector<2x128xf32> to vector<2x32xf32>
    %93 = math.tanh %92 : vector<2x32xf32>
    %94 = arith.mulf %90, %77 : vector<2x32xf32>
    %95 = arith.mulf %89, %93 : vector<2x32xf32>
    %96 = arith.addf %94, %95 : vector<2x32xf32>
    %97 = math.tanh %96 : vector<2x32xf32>
    %98 = arith.mulf %91, %97 : vector<2x32xf32>
    %99 = vector.extract_strided_slice %20 {offsets = [0, 4, 0], sizes = [2, 1, 128], strides = [1, 1, 1]} : vector<2x8x128xf32> to vector<2x1x128xf32>
    %100 = vector.shape_cast %99 : vector<2x1x128xf32> to vector<2x128xf32>
    %cst_42 = arith.constant dense<0.000000e+00> : vector<2x128xf32>
    %101 = tpu.matmul %98, %1, %cst_42 {dimension_numbers = #tpu.dot_dimension_numbers<[1], [0], [0], [1], [0, 0, 1, 1], [], []>} : vector<2x32xf32>, vector<32x128xf32>, vector<2x128xf32> -> vector<2x128xf32>
    %102 = arith.addf %100, %101 : vector<2x128xf32>
    %103 = arith.negf %102 : vector<2x128xf32>
    %104 = math.exp %103 : vector<2x128xf32>
    %cst_43 = arith.constant 1.000000e+00 : f32
    %105 = vector.broadcast %cst_43 : f32 to vector<2x128xf32>
    %106 = arith.addf %105, %104 : vector<2x128xf32>
    %107 = arith.divf %105, %106 : vector<2x128xf32>
    %108 = vector.extract_strided_slice %107 {offsets = [0, 0], sizes = [2, 32], strides = [1, 1]} : vector<2x128xf32> to vector<2x32xf32>
    %109 = vector.extract_strided_slice %107 {offsets = [0, 32], sizes = [2, 32], strides = [1, 1]} : vector<2x128xf32> to vector<2x32xf32>
    %110 = vector.extract_strided_slice %107 {offsets = [0, 96], sizes = [2, 32], strides = [1, 1]} : vector<2x128xf32> to vector<2x32xf32>
    %111 = vector.extract_strided_slice %102 {offsets = [0, 64], sizes = [2, 32], strides = [1, 1]} : vector<2x128xf32> to vector<2x32xf32>
    %112 = math.tanh %111 : vector<2x32xf32>
    %113 = arith.mulf %109, %96 : vector<2x32xf32>
    %114 = arith.mulf %108, %112 : vector<2x32xf32>
    %115 = arith.addf %113, %114 : vector<2x32xf32>
    %116 = math.tanh %115 : vector<2x32xf32>
    %117 = arith.mulf %110, %116 : vector<2x32xf32>
    %118 = vector.extract_strided_slice %20 {offsets = [0, 5, 0], sizes = [2, 1, 128], strides = [1, 1, 1]} : vector<2x8x128xf32> to vector<2x1x128xf32>
    %119 = vector.shape_cast %118 : vector<2x1x128xf32> to vector<2x128xf32>
    %cst_44 = arith.constant dense<0.000000e+00> : vector<2x128xf32>
    %120 = tpu.matmul %117, %1, %cst_44 {dimension_numbers = #tpu.dot_dimension_numbers<[1], [0], [0], [1], [0, 0, 1, 1], [], []>} : vector<2x32xf32>, vector<32x128xf32>, vector<2x128xf32> -> vector<2x128xf32>
    %121 = arith.addf %119, %120 : vector<2x128xf32>
    %122 = arith.negf %121 : vector<2x128xf32>
    %123 = math.exp %122 : vector<2x128xf32>
    %cst_45 = arith.constant 1.000000e+00 : f32
    %124 = vector.broadcast %cst_45 : f32 to vector<2x128xf32>
    %125 = arith.addf %124, %123 : vector<2x128xf32>
    %126 = arith.divf %124, %125 : vector<2x128xf32>
    %127 = vector.extract_strided_slice %126 {offsets = [0, 0], sizes = [2, 32], strides = [1, 1]} : vector<2x128xf32> to vector<2x32xf32>
    %128 = vector.extract_strided_slice %126 {offsets = [0, 32], sizes = [2, 32], strides = [1, 1]} : vector<2x128xf32> to vector<2x32xf32>
    %129 = vector.extract_strided_slice %126 {offsets = [0, 96], sizes = [2, 32], strides = [1, 1]} : vector<2x128xf32> to vector<2x32xf32>
    %130 = vector.extract_strided_slice %121 {offsets = [0, 64], sizes = [2, 32], strides = [1, 1]} : vector<2x128xf32> to vector<2x32xf32>
    %131 = math.tanh %130 : vector<2x32xf32>
    %132 = arith.mulf %128, %115 : vector<2x32xf32>
    %133 = arith.mulf %127, %131 : vector<2x32xf32>
    %134 = arith.addf %132, %133 : vector<2x32xf32>
    %135 = math.tanh %134 : vector<2x32xf32>
    %136 = arith.mulf %129, %135 : vector<2x32xf32>
    %137 = vector.extract_strided_slice %20 {offsets = [0, 6, 0], sizes = [2, 1, 128], strides = [1, 1, 1]} : vector<2x8x128xf32> to vector<2x1x128xf32>
    %138 = vector.shape_cast %137 : vector<2x1x128xf32> to vector<2x128xf32>
    %cst_46 = arith.constant dense<0.000000e+00> : vector<2x128xf32>
    %139 = tpu.matmul %136, %1, %cst_46 {dimension_numbers = #tpu.dot_dimension_numbers<[1], [0], [0], [1], [0, 0, 1, 1], [], []>} : vector<2x32xf32>, vector<32x128xf32>, vector<2x128xf32> -> vector<2x128xf32>
    %140 = arith.addf %138, %139 : vector<2x128xf32>
    %141 = arith.negf %140 : vector<2x128xf32>
    %142 = math.exp %141 : vector<2x128xf32>
    %cst_47 = arith.constant 1.000000e+00 : f32
    %143 = vector.broadcast %cst_47 : f32 to vector<2x128xf32>
    %144 = arith.addf %143, %142 : vector<2x128xf32>
    %145 = arith.divf %143, %144 : vector<2x128xf32>
    %146 = vector.extract_strided_slice %145 {offsets = [0, 0], sizes = [2, 32], strides = [1, 1]} : vector<2x128xf32> to vector<2x32xf32>
    %147 = vector.extract_strided_slice %145 {offsets = [0, 32], sizes = [2, 32], strides = [1, 1]} : vector<2x128xf32> to vector<2x32xf32>
    %148 = vector.extract_strided_slice %145 {offsets = [0, 96], sizes = [2, 32], strides = [1, 1]} : vector<2x128xf32> to vector<2x32xf32>
    %149 = vector.extract_strided_slice %140 {offsets = [0, 64], sizes = [2, 32], strides = [1, 1]} : vector<2x128xf32> to vector<2x32xf32>
    %150 = math.tanh %149 : vector<2x32xf32>
    %151 = arith.mulf %147, %134 : vector<2x32xf32>
    %152 = arith.mulf %146, %150 : vector<2x32xf32>
    %153 = arith.addf %151, %152 : vector<2x32xf32>
    %154 = math.tanh %153 : vector<2x32xf32>
    %155 = arith.mulf %148, %154 : vector<2x32xf32>
    %156 = vector.extract_strided_slice %20 {offsets = [0, 7, 0], sizes = [2, 1, 128], strides = [1, 1, 1]} : vector<2x8x128xf32> to vector<2x1x128xf32>
    %157 = vector.shape_cast %156 : vector<2x1x128xf32> to vector<2x128xf32>
    %cst_48 = arith.constant dense<0.000000e+00> : vector<2x128xf32>
    %158 = tpu.matmul %155, %1, %cst_48 {dimension_numbers = #tpu.dot_dimension_numbers<[1], [0], [0], [1], [0, 0, 1, 1], [], []>} : vector<2x32xf32>, vector<32x128xf32>, vector<2x128xf32> -> vector<2x128xf32>
    %159 = arith.addf %157, %158 : vector<2x128xf32>
    %160 = arith.negf %159 : vector<2x128xf32>
    %161 = math.exp %160 : vector<2x128xf32>
    %cst_49 = arith.constant 1.000000e+00 : f32
    %162 = vector.broadcast %cst_49 : f32 to vector<2x128xf32>
    %163 = arith.addf %162, %161 : vector<2x128xf32>
    %164 = arith.divf %162, %163 : vector<2x128xf32>
    %165 = vector.extract_strided_slice %164 {offsets = [0, 0], sizes = [2, 32], strides = [1, 1]} : vector<2x128xf32> to vector<2x32xf32>
    %166 = vector.extract_strided_slice %164 {offsets = [0, 32], sizes = [2, 32], strides = [1, 1]} : vector<2x128xf32> to vector<2x32xf32>
    %167 = vector.extract_strided_slice %164 {offsets = [0, 96], sizes = [2, 32], strides = [1, 1]} : vector<2x128xf32> to vector<2x32xf32>
    %168 = vector.extract_strided_slice %159 {offsets = [0, 64], sizes = [2, 32], strides = [1, 1]} : vector<2x128xf32> to vector<2x32xf32>
    %169 = math.tanh %168 : vector<2x32xf32>
    %170 = arith.mulf %166, %153 : vector<2x32xf32>
    %171 = arith.mulf %165, %169 : vector<2x32xf32>
    %172 = arith.addf %170, %171 : vector<2x32xf32>
    %173 = math.tanh %172 : vector<2x32xf32>
    %174 = arith.mulf %167, %173 : vector<2x32xf32>
    %c0_50 = arith.constant 0 : index
    %c0_51 = arith.constant 0 : index
    %c0_52 = arith.constant 0 : index
    %175 = vector.load %arg1[%c0_50, %c0_51, %c0_52] : memref<2x8x16xf32, #tpu.memory_space<vmem>>, vector<2x8x16xf32>
    %176 = vector.shape_cast %175 : vector<2x8x16xf32> to vector<16x16xf32>
    %cst_53 = arith.constant dense<0.000000e+00> : vector<16x128xf32>
    %177 = tpu.matmul %176, %3, %cst_53 {dimension_numbers = #tpu.dot_dimension_numbers<[1], [0], [0], [1], [0, 0, 1, 1], [], []>} : vector<16x16xf32>, vector<16x128xf32>, vector<16x128xf32> -> vector<16x128xf32>
    %178 = vector.broadcast %5 : vector<1x128xf32> to vector<16x128xf32>
    %179 = arith.addf %177, %178 : vector<16x128xf32>
    %180 = vector.shape_cast %179 : vector<16x128xf32> to vector<2x8x128xf32>
    %cst_54 = arith.constant 0.000000e+00 : f32
    %181 = vector.broadcast %cst_54 : f32 to vector<2x32xf32>
    %cst_55 = arith.constant 0.000000e+00 : f32
    %182 = vector.broadcast %cst_55 : f32 to vector<2x32xf32>
    %183 = vector.extract_strided_slice %180 {offsets = [0, 0, 0], sizes = [2, 1, 128], strides = [1, 1, 1]} : vector<2x8x128xf32> to vector<2x1x128xf32>
    %184 = vector.shape_cast %183 : vector<2x1x128xf32> to vector<2x128xf32>
    %cst_56 = arith.constant dense<0.000000e+00> : vector<2x128xf32>
    %185 = tpu.matmul %181, %4, %cst_56 {dimension_numbers = #tpu.dot_dimension_numbers<[1], [0], [0], [1], [0, 0, 1, 1], [], []>} : vector<2x32xf32>, vector<32x128xf32>, vector<2x128xf32> -> vector<2x128xf32>
    %186 = arith.addf %184, %185 : vector<2x128xf32>
    %187 = arith.negf %186 : vector<2x128xf32>
    %188 = math.exp %187 : vector<2x128xf32>
    %cst_57 = arith.constant 1.000000e+00 : f32
    %189 = vector.broadcast %cst_57 : f32 to vector<2x128xf32>
    %190 = arith.addf %189, %188 : vector<2x128xf32>
    %191 = arith.divf %189, %190 : vector<2x128xf32>
    %192 = vector.extract_strided_slice %191 {offsets = [0, 0], sizes = [2, 32], strides = [1, 1]} : vector<2x128xf32> to vector<2x32xf32>
    %193 = vector.extract_strided_slice %191 {offsets = [0, 32], sizes = [2, 32], strides = [1, 1]} : vector<2x128xf32> to vector<2x32xf32>
    %194 = vector.extract_strided_slice %191 {offsets = [0, 96], sizes = [2, 32], strides = [1, 1]} : vector<2x128xf32> to vector<2x32xf32>
    %195 = vector.extract_strided_slice %186 {offsets = [0, 64], sizes = [2, 32], strides = [1, 1]} : vector<2x128xf32> to vector<2x32xf32>
    %196 = math.tanh %195 : vector<2x32xf32>
    %197 = arith.mulf %193, %182 : vector<2x32xf32>
    %198 = arith.mulf %192, %196 : vector<2x32xf32>
    %199 = arith.addf %197, %198 : vector<2x32xf32>
    %200 = math.tanh %199 : vector<2x32xf32>
    %201 = arith.mulf %194, %200 : vector<2x32xf32>
    %202 = vector.extract_strided_slice %180 {offsets = [0, 1, 0], sizes = [2, 1, 128], strides = [1, 1, 1]} : vector<2x8x128xf32> to vector<2x1x128xf32>
    %203 = vector.shape_cast %202 : vector<2x1x128xf32> to vector<2x128xf32>
    %cst_58 = arith.constant dense<0.000000e+00> : vector<2x128xf32>
    %204 = tpu.matmul %201, %4, %cst_58 {dimension_numbers = #tpu.dot_dimension_numbers<[1], [0], [0], [1], [0, 0, 1, 1], [], []>} : vector<2x32xf32>, vector<32x128xf32>, vector<2x128xf32> -> vector<2x128xf32>
    %205 = arith.addf %203, %204 : vector<2x128xf32>
    %206 = arith.negf %205 : vector<2x128xf32>
    %207 = math.exp %206 : vector<2x128xf32>
    %cst_59 = arith.constant 1.000000e+00 : f32
    %208 = vector.broadcast %cst_59 : f32 to vector<2x128xf32>
    %209 = arith.addf %208, %207 : vector<2x128xf32>
    %210 = arith.divf %208, %209 : vector<2x128xf32>
    %211 = vector.extract_strided_slice %210 {offsets = [0, 0], sizes = [2, 32], strides = [1, 1]} : vector<2x128xf32> to vector<2x32xf32>
    %212 = vector.extract_strided_slice %210 {offsets = [0, 32], sizes = [2, 32], strides = [1, 1]} : vector<2x128xf32> to vector<2x32xf32>
    %213 = vector.extract_strided_slice %210 {offsets = [0, 96], sizes = [2, 32], strides = [1, 1]} : vector<2x128xf32> to vector<2x32xf32>
    %214 = vector.extract_strided_slice %205 {offsets = [0, 64], sizes = [2, 32], strides = [1, 1]} : vector<2x128xf32> to vector<2x32xf32>
    %215 = math.tanh %214 : vector<2x32xf32>
    %216 = arith.mulf %212, %199 : vector<2x32xf32>
    %217 = arith.mulf %211, %215 : vector<2x32xf32>
    %218 = arith.addf %216, %217 : vector<2x32xf32>
    %219 = math.tanh %218 : vector<2x32xf32>
    %220 = arith.mulf %213, %219 : vector<2x32xf32>
    %221 = vector.extract_strided_slice %180 {offsets = [0, 2, 0], sizes = [2, 1, 128], strides = [1, 1, 1]} : vector<2x8x128xf32> to vector<2x1x128xf32>
    %222 = vector.shape_cast %221 : vector<2x1x128xf32> to vector<2x128xf32>
    %cst_60 = arith.constant dense<0.000000e+00> : vector<2x128xf32>
    %223 = tpu.matmul %220, %4, %cst_60 {dimension_numbers = #tpu.dot_dimension_numbers<[1], [0], [0], [1], [0, 0, 1, 1], [], []>} : vector<2x32xf32>, vector<32x128xf32>, vector<2x128xf32> -> vector<2x128xf32>
    %224 = arith.addf %222, %223 : vector<2x128xf32>
    %225 = arith.negf %224 : vector<2x128xf32>
    %226 = math.exp %225 : vector<2x128xf32>
    %cst_61 = arith.constant 1.000000e+00 : f32
    %227 = vector.broadcast %cst_61 : f32 to vector<2x128xf32>
    %228 = arith.addf %227, %226 : vector<2x128xf32>
    %229 = arith.divf %227, %228 : vector<2x128xf32>
    %230 = vector.extract_strided_slice %229 {offsets = [0, 0], sizes = [2, 32], strides = [1, 1]} : vector<2x128xf32> to vector<2x32xf32>
    %231 = vector.extract_strided_slice %229 {offsets = [0, 32], sizes = [2, 32], strides = [1, 1]} : vector<2x128xf32> to vector<2x32xf32>
    %232 = vector.extract_strided_slice %229 {offsets = [0, 96], sizes = [2, 32], strides = [1, 1]} : vector<2x128xf32> to vector<2x32xf32>
    %233 = vector.extract_strided_slice %224 {offsets = [0, 64], sizes = [2, 32], strides = [1, 1]} : vector<2x128xf32> to vector<2x32xf32>
    %234 = math.tanh %233 : vector<2x32xf32>
    %235 = arith.mulf %231, %218 : vector<2x32xf32>
    %236 = arith.mulf %230, %234 : vector<2x32xf32>
    %237 = arith.addf %235, %236 : vector<2x32xf32>
    %238 = math.tanh %237 : vector<2x32xf32>
    %239 = arith.mulf %232, %238 : vector<2x32xf32>
    %240 = vector.extract_strided_slice %180 {offsets = [0, 3, 0], sizes = [2, 1, 128], strides = [1, 1, 1]} : vector<2x8x128xf32> to vector<2x1x128xf32>
    %241 = vector.shape_cast %240 : vector<2x1x128xf32> to vector<2x128xf32>
    %cst_62 = arith.constant dense<0.000000e+00> : vector<2x128xf32>
    %242 = tpu.matmul %239, %4, %cst_62 {dimension_numbers = #tpu.dot_dimension_numbers<[1], [0], [0], [1], [0, 0, 1, 1], [], []>} : vector<2x32xf32>, vector<32x128xf32>, vector<2x128xf32> -> vector<2x128xf32>
    %243 = arith.addf %241, %242 : vector<2x128xf32>
    %244 = arith.negf %243 : vector<2x128xf32>
    %245 = math.exp %244 : vector<2x128xf32>
    %cst_63 = arith.constant 1.000000e+00 : f32
    %246 = vector.broadcast %cst_63 : f32 to vector<2x128xf32>
    %247 = arith.addf %246, %245 : vector<2x128xf32>
    %248 = arith.divf %246, %247 : vector<2x128xf32>
    %249 = vector.extract_strided_slice %248 {offsets = [0, 0], sizes = [2, 32], strides = [1, 1]} : vector<2x128xf32> to vector<2x32xf32>
    %250 = vector.extract_strided_slice %248 {offsets = [0, 32], sizes = [2, 32], strides = [1, 1]} : vector<2x128xf32> to vector<2x32xf32>
    %251 = vector.extract_strided_slice %248 {offsets = [0, 96], sizes = [2, 32], strides = [1, 1]} : vector<2x128xf32> to vector<2x32xf32>
    %252 = vector.extract_strided_slice %243 {offsets = [0, 64], sizes = [2, 32], strides = [1, 1]} : vector<2x128xf32> to vector<2x32xf32>
    %253 = math.tanh %252 : vector<2x32xf32>
    %254 = arith.mulf %250, %237 : vector<2x32xf32>
    %255 = arith.mulf %249, %253 : vector<2x32xf32>
    %256 = arith.addf %254, %255 : vector<2x32xf32>
    %257 = math.tanh %256 : vector<2x32xf32>
    %258 = arith.mulf %251, %257 : vector<2x32xf32>
    %259 = vector.extract_strided_slice %180 {offsets = [0, 4, 0], sizes = [2, 1, 128], strides = [1, 1, 1]} : vector<2x8x128xf32> to vector<2x1x128xf32>
    %260 = vector.shape_cast %259 : vector<2x1x128xf32> to vector<2x128xf32>
    %cst_64 = arith.constant dense<0.000000e+00> : vector<2x128xf32>
    %261 = tpu.matmul %258, %4, %cst_64 {dimension_numbers = #tpu.dot_dimension_numbers<[1], [0], [0], [1], [0, 0, 1, 1], [], []>} : vector<2x32xf32>, vector<32x128xf32>, vector<2x128xf32> -> vector<2x128xf32>
    %262 = arith.addf %260, %261 : vector<2x128xf32>
    %263 = arith.negf %262 : vector<2x128xf32>
    %264 = math.exp %263 : vector<2x128xf32>
    %cst_65 = arith.constant 1.000000e+00 : f32
    %265 = vector.broadcast %cst_65 : f32 to vector<2x128xf32>
    %266 = arith.addf %265, %264 : vector<2x128xf32>
    %267 = arith.divf %265, %266 : vector<2x128xf32>
    %268 = vector.extract_strided_slice %267 {offsets = [0, 0], sizes = [2, 32], strides = [1, 1]} : vector<2x128xf32> to vector<2x32xf32>
    %269 = vector.extract_strided_slice %267 {offsets = [0, 32], sizes = [2, 32], strides = [1, 1]} : vector<2x128xf32> to vector<2x32xf32>
    %270 = vector.extract_strided_slice %267 {offsets = [0, 96], sizes = [2, 32], strides = [1, 1]} : vector<2x128xf32> to vector<2x32xf32>
    %271 = vector.extract_strided_slice %262 {offsets = [0, 64], sizes = [2, 32], strides = [1, 1]} : vector<2x128xf32> to vector<2x32xf32>
    %272 = math.tanh %271 : vector<2x32xf32>
    %273 = arith.mulf %269, %256 : vector<2x32xf32>
    %274 = arith.mulf %268, %272 : vector<2x32xf32>
    %275 = arith.addf %273, %274 : vector<2x32xf32>
    %276 = math.tanh %275 : vector<2x32xf32>
    %277 = arith.mulf %270, %276 : vector<2x32xf32>
    %278 = vector.extract_strided_slice %180 {offsets = [0, 5, 0], sizes = [2, 1, 128], strides = [1, 1, 1]} : vector<2x8x128xf32> to vector<2x1x128xf32>
    %279 = vector.shape_cast %278 : vector<2x1x128xf32> to vector<2x128xf32>
    %cst_66 = arith.constant dense<0.000000e+00> : vector<2x128xf32>
    %280 = tpu.matmul %277, %4, %cst_66 {dimension_numbers = #tpu.dot_dimension_numbers<[1], [0], [0], [1], [0, 0, 1, 1], [], []>} : vector<2x32xf32>, vector<32x128xf32>, vector<2x128xf32> -> vector<2x128xf32>
    %281 = arith.addf %279, %280 : vector<2x128xf32>
    %282 = arith.negf %281 : vector<2x128xf32>
    %283 = math.exp %282 : vector<2x128xf32>
    %cst_67 = arith.constant 1.000000e+00 : f32
    %284 = vector.broadcast %cst_67 : f32 to vector<2x128xf32>
    %285 = arith.addf %284, %283 : vector<2x128xf32>
    %286 = arith.divf %284, %285 : vector<2x128xf32>
    %287 = vector.extract_strided_slice %286 {offsets = [0, 0], sizes = [2, 32], strides = [1, 1]} : vector<2x128xf32> to vector<2x32xf32>
    %288 = vector.extract_strided_slice %286 {offsets = [0, 32], sizes = [2, 32], strides = [1, 1]} : vector<2x128xf32> to vector<2x32xf32>
    %289 = vector.extract_strided_slice %286 {offsets = [0, 96], sizes = [2, 32], strides = [1, 1]} : vector<2x128xf32> to vector<2x32xf32>
    %290 = vector.extract_strided_slice %281 {offsets = [0, 64], sizes = [2, 32], strides = [1, 1]} : vector<2x128xf32> to vector<2x32xf32>
    %291 = math.tanh %290 : vector<2x32xf32>
    %292 = arith.mulf %288, %275 : vector<2x32xf32>
    %293 = arith.mulf %287, %291 : vector<2x32xf32>
    %294 = arith.addf %292, %293 : vector<2x32xf32>
    %295 = math.tanh %294 : vector<2x32xf32>
    %296 = arith.mulf %289, %295 : vector<2x32xf32>
    %297 = vector.extract_strided_slice %180 {offsets = [0, 6, 0], sizes = [2, 1, 128], strides = [1, 1, 1]} : vector<2x8x128xf32> to vector<2x1x128xf32>
    %298 = vector.shape_cast %297 : vector<2x1x128xf32> to vector<2x128xf32>
    %cst_68 = arith.constant dense<0.000000e+00> : vector<2x128xf32>
    %299 = tpu.matmul %296, %4, %cst_68 {dimension_numbers = #tpu.dot_dimension_numbers<[1], [0], [0], [1], [0, 0, 1, 1], [], []>} : vector<2x32xf32>, vector<32x128xf32>, vector<2x128xf32> -> vector<2x128xf32>
    %300 = arith.addf %298, %299 : vector<2x128xf32>
    %301 = arith.negf %300 : vector<2x128xf32>
    %302 = math.exp %301 : vector<2x128xf32>
    %cst_69 = arith.constant 1.000000e+00 : f32
    %303 = vector.broadcast %cst_69 : f32 to vector<2x128xf32>
    %304 = arith.addf %303, %302 : vector<2x128xf32>
    %305 = arith.divf %303, %304 : vector<2x128xf32>
    %306 = vector.extract_strided_slice %305 {offsets = [0, 0], sizes = [2, 32], strides = [1, 1]} : vector<2x128xf32> to vector<2x32xf32>
    %307 = vector.extract_strided_slice %305 {offsets = [0, 32], sizes = [2, 32], strides = [1, 1]} : vector<2x128xf32> to vector<2x32xf32>
    %308 = vector.extract_strided_slice %305 {offsets = [0, 96], sizes = [2, 32], strides = [1, 1]} : vector<2x128xf32> to vector<2x32xf32>
    %309 = vector.extract_strided_slice %300 {offsets = [0, 64], sizes = [2, 32], strides = [1, 1]} : vector<2x128xf32> to vector<2x32xf32>
    %310 = math.tanh %309 : vector<2x32xf32>
    %311 = arith.mulf %307, %294 : vector<2x32xf32>
    %312 = arith.mulf %306, %310 : vector<2x32xf32>
    %313 = arith.addf %311, %312 : vector<2x32xf32>
    %314 = math.tanh %313 : vector<2x32xf32>
    %315 = arith.mulf %308, %314 : vector<2x32xf32>
    %316 = vector.extract_strided_slice %180 {offsets = [0, 7, 0], sizes = [2, 1, 128], strides = [1, 1, 1]} : vector<2x8x128xf32> to vector<2x1x128xf32>
    %317 = vector.shape_cast %316 : vector<2x1x128xf32> to vector<2x128xf32>
    %cst_70 = arith.constant dense<0.000000e+00> : vector<2x128xf32>
    %318 = tpu.matmul %315, %4, %cst_70 {dimension_numbers = #tpu.dot_dimension_numbers<[1], [0], [0], [1], [0, 0, 1, 1], [], []>} : vector<2x32xf32>, vector<32x128xf32>, vector<2x128xf32> -> vector<2x128xf32>
    %319 = arith.addf %317, %318 : vector<2x128xf32>
    %320 = arith.negf %319 : vector<2x128xf32>
    %321 = math.exp %320 : vector<2x128xf32>
    %cst_71 = arith.constant 1.000000e+00 : f32
    %322 = vector.broadcast %cst_71 : f32 to vector<2x128xf32>
    %323 = arith.addf %322, %321 : vector<2x128xf32>
    %324 = arith.divf %322, %323 : vector<2x128xf32>
    %325 = vector.extract_strided_slice %324 {offsets = [0, 0], sizes = [2, 32], strides = [1, 1]} : vector<2x128xf32> to vector<2x32xf32>
    %326 = vector.extract_strided_slice %324 {offsets = [0, 32], sizes = [2, 32], strides = [1, 1]} : vector<2x128xf32> to vector<2x32xf32>
    %327 = vector.extract_strided_slice %324 {offsets = [0, 96], sizes = [2, 32], strides = [1, 1]} : vector<2x128xf32> to vector<2x32xf32>
    %328 = vector.extract_strided_slice %319 {offsets = [0, 64], sizes = [2, 32], strides = [1, 1]} : vector<2x128xf32> to vector<2x32xf32>
    %329 = math.tanh %328 : vector<2x32xf32>
    %330 = arith.mulf %326, %313 : vector<2x32xf32>
    %331 = arith.mulf %325, %329 : vector<2x32xf32>
    %332 = arith.addf %330, %331 : vector<2x32xf32>
    %333 = math.tanh %332 : vector<2x32xf32>
    %334 = arith.mulf %327, %333 : vector<2x32xf32>
    %335 = vector.shape_cast %175 : vector<2x8x16xf32> to vector<16x16xf32>
    %cst_72 = arith.constant dense<0.000000e+00> : vector<16x128xf32>
    %336 = tpu.matmul %335, %6, %cst_72 {dimension_numbers = #tpu.dot_dimension_numbers<[1], [0], [0], [1], [0, 0, 1, 1], [], []>} : vector<16x16xf32>, vector<16x128xf32>, vector<16x128xf32> -> vector<16x128xf32>
    %337 = vector.broadcast %8 : vector<1x128xf32> to vector<16x128xf32>
    %338 = arith.addf %336, %337 : vector<16x128xf32>
    %339 = vector.shape_cast %338 : vector<16x128xf32> to vector<2x8x128xf32>
    %cst_73 = arith.constant 0.000000e+00 : f32
    %340 = vector.broadcast %cst_73 : f32 to vector<2x32xf32>
    %cst_74 = arith.constant 0.000000e+00 : f32
    %341 = vector.broadcast %cst_74 : f32 to vector<2x32xf32>
    %342 = vector.extract_strided_slice %339 {offsets = [0, 7, 0], sizes = [2, 1, 128], strides = [1, 1, 1]} : vector<2x8x128xf32> to vector<2x1x128xf32>
    %343 = vector.shape_cast %342 : vector<2x1x128xf32> to vector<2x128xf32>
    %cst_75 = arith.constant dense<0.000000e+00> : vector<2x128xf32>
    %344 = tpu.matmul %340, %7, %cst_75 {dimension_numbers = #tpu.dot_dimension_numbers<[1], [0], [0], [1], [0, 0, 1, 1], [], []>} : vector<2x32xf32>, vector<32x128xf32>, vector<2x128xf32> -> vector<2x128xf32>
    %345 = arith.addf %343, %344 : vector<2x128xf32>
    %346 = arith.negf %345 : vector<2x128xf32>
    %347 = math.exp %346 : vector<2x128xf32>
    %cst_76 = arith.constant 1.000000e+00 : f32
    %348 = vector.broadcast %cst_76 : f32 to vector<2x128xf32>
    %349 = arith.addf %348, %347 : vector<2x128xf32>
    %350 = arith.divf %348, %349 : vector<2x128xf32>
    %351 = vector.extract_strided_slice %350 {offsets = [0, 0], sizes = [2, 32], strides = [1, 1]} : vector<2x128xf32> to vector<2x32xf32>
    %352 = vector.extract_strided_slice %350 {offsets = [0, 32], sizes = [2, 32], strides = [1, 1]} : vector<2x128xf32> to vector<2x32xf32>
    %353 = vector.extract_strided_slice %350 {offsets = [0, 96], sizes = [2, 32], strides = [1, 1]} : vector<2x128xf32> to vector<2x32xf32>
    %354 = vector.extract_strided_slice %345 {offsets = [0, 64], sizes = [2, 32], strides = [1, 1]} : vector<2x128xf32> to vector<2x32xf32>
    %355 = math.tanh %354 : vector<2x32xf32>
    %356 = arith.mulf %352, %341 : vector<2x32xf32>
    %357 = arith.mulf %351, %355 : vector<2x32xf32>
    %358 = arith.addf %356, %357 : vector<2x32xf32>
    %359 = math.tanh %358 : vector<2x32xf32>
    %360 = arith.mulf %353, %359 : vector<2x32xf32>
    %361 = tpu.concatenate %334, %360 in 1 : vector<2x32xf32>, vector<2x32xf32> -> vector<2x64xf32>
    %362 = tpu.concatenate %174, %361 in 1 : vector<2x32xf32>, vector<2x64xf32> -> vector<2x96xf32>
    %cst_77 = arith.constant dense<0.000000e+00> : vector<2x64xf32>
    %363 = tpu.matmul %362, %9, %cst_77 {dimension_numbers = #tpu.dot_dimension_numbers<[1], [0], [0], [1], [0, 0, 1, 1], [], []>} : vector<2x96xf32>, vector<96x64xf32>, vector<2x64xf32> -> vector<2x64xf32>
    %364 = vector.broadcast %10 : vector<1x64xf32> to vector<2x64xf32>
    %365 = arith.addf %363, %364 : vector<2x64xf32>
    %cst_78 = arith.constant 0.000000e+00 : f32
    %366 = vector.broadcast %cst_78 : f32 to vector<2x64xf32>
    %367 = arith.maximumf %365, %366 : vector<2x64xf32>
    %cst_79 = arith.constant dense<0.000000e+00> : vector<2x32xf32>
    %368 = tpu.matmul %367, %11, %cst_79 {dimension_numbers = #tpu.dot_dimension_numbers<[1], [0], [0], [1], [0, 0, 1, 1], [], []>} : vector<2x64xf32>, vector<64x32xf32>, vector<2x32xf32> -> vector<2x32xf32>
    %369 = vector.broadcast %12 : vector<1x32xf32> to vector<2x32xf32>
    %370 = arith.addf %368, %369 : vector<2x32xf32>
    %cst_80 = arith.constant 0.000000e+00 : f32
    %371 = vector.broadcast %cst_80 : f32 to vector<2x32xf32>
    %372 = arith.maximumf %370, %371 : vector<2x32xf32>
    %373 = vector.broadcast %13 : vector<1x32xf32> to vector<2x32xf32>
    %374 = arith.mulf %372, %373 : vector<2x32xf32>
    %cst_81 = arith.constant dense<0.000000e+00> : vector<2xf32>
    %375 = vector.multi_reduction <add>, %374, %cst_81 [1] : vector<2x32xf32> to vector<2xf32>
    %376 = vector.shape_cast %375 : vector<2xf32> to vector<2x1xf32>
    %377 = vector.broadcast %14 : vector<1x1xf32> to vector<2x1xf32>
    %378 = arith.addf %376, %377 : vector<2x1xf32>
    %379 = arith.negf %378 : vector<2x1xf32>
    %380 = math.exp %379 : vector<2x1xf32>
    %cst_82 = arith.constant 1.000000e+00 : f32
    %381 = vector.broadcast %cst_82 : f32 to vector<2x1xf32>
    %382 = arith.addf %381, %380 : vector<2x1xf32>
    %383 = arith.divf %381, %382 : vector<2x1xf32>
    %c0_83 = arith.constant 0 : index
    %c0_84 = arith.constant 0 : index
    %384 = vector.load %arg17[%c0_83, %c0_84] : memref<2x1xf32, #tpu.memory_space<vmem>>, vector<2x1xf32>
    tpu.vector_store %arg17[%c0_83, %c0_84], %383 {strides = array<i32>} : memref<2x1xf32, #tpu.memory_space<vmem>>, vector<2x1xf32>,
    return
  }
}

</mosaic_0001>

<llo_original>
// kernel: tpu_custom_call.1
$region0: #{tpu_custom_call.1}
  #allocation0 [shape = 'u32[]', space=smem, size = 0x4, offset = 0x4, fixed_abs, tag = 'smem constant byte address 0x4 - core index']
  #allocation1 [shape = 'u32[144,128]{1,0:T(1,128)}', space=vmem, size = 0x12000, scoped, tag = 'internal scratch']
  #allocation2 [shape = 'f32[1,1]{1,0:T(1,128)S(1)}', space=vmem, size = 0x200, scoped, tag = 'scoped memory for tpu_custom_call.1']
  %s0 = inlined_call_operand.vmem [shape: f32[2,8,32], index: 0, kind: input, shape index: {}]
  %s1 = inlined_call_operand.vmem [shape: f32[2,8,16], index: 1, kind: input, shape index: {}]
  %s2 = inlined_call_operand.vmem [shape: f32[32,128], index: 2, kind: input, shape index: {}]
  %s3 = inlined_call_operand.vmem [shape: f32[32,128], index: 3, kind: input, shape index: {}]
  %s4 = inlined_call_operand.vmem [shape: f32[1,128], index: 4, kind: input, shape index: {}]
  %s5 = inlined_call_operand.vmem [shape: f32[16,128], index: 5, kind: input, shape index: {}]
  %s6 = inlined_call_operand.vmem [shape: f32[32,128], index: 6, kind: input, shape index: {}]
  %s7 = inlined_call_operand.vmem [shape: f32[1,128], index: 7, kind: input, shape index: {}]
  %s8 = inlined_call_operand.vmem [shape: f32[16,128], index: 8, kind: input, shape index: {}]
  %s9 = inlined_call_operand.vmem [shape: f32[32,128], index: 9, kind: input, shape index: {}]
  %s10 = inlined_call_operand.vmem [shape: f32[1,128], index: 10, kind: input, shape index: {}]
  %s11 = inlined_call_operand.vmem [shape: f32[96,64], index: 11, kind: input, shape index: {}]
  %s12 = inlined_call_operand.vmem [shape: f32[1,64], index: 12, kind: input, shape index: {}]
  %s13 = inlined_call_operand.vmem [shape: f32[64,32], index: 13, kind: input, shape index: {}]
  %s14 = inlined_call_operand.vmem [shape: f32[1,32], index: 14, kind: input, shape index: {}]
  %s15 = inlined_call_operand.vmem [shape: f32[1,32], index: 15, kind: input, shape index: {}]
  %s16 = inlined_call_operand.<no memory space> [shape: f32[1,1], index: 16, kind: input, shape index: {}]
  %s17 = inlined_call_operand.vmem [shape: f32[2,1], index: 17, kind: output, shape index: {}]
  %s18 = sld [smem:[#allocation0]]
  $region78: #{tpu_custom_call.1} parent=0
    _
  %s20 = ssub.s32 1, %s18
  %s21 = scalar_select 0, %s20, %s18
  %v22 = vstv %s16
  %23 = vst [vmem:[#allocation2] sm:$0x1] %v22
  // Predicated region
  $region2: #{tpu_custom_call.1} parent=0 // pred_check
    _
  $region3: #{tpu_custom_call.1} parent=0 // pred_check_branch
    %25 = sbr.rel (0) target = $region5
  $region4: #{tpu_custom_call.1} parent=0 // pred_region
    _
  $region5: #{tpu_custom_call.1} parent=0 // pred_fallthru
    _
  // Predicated region
  $region6: #{tpu_custom_call.1} parent=0 // pred_check
    _
  $region7: #{tpu_custom_call.1} parent=0 // pred_check_branch
    %27 = sbr.rel (0) target = $region9
  $region8: #{tpu_custom_call.1} parent=0 // pred_region
    _
  $region9: #{tpu_custom_call.1} parent=0 // pred_fallthru
    _
  // Predicated region
  $region10: #{tpu_custom_call.1} parent=0 // pred_check
    _
  $region11: #{tpu_custom_call.1} parent=0 // pred_check_branch
    %29 = sbr.rel (0) target = $region13
  $region12: #{tpu_custom_call.1} parent=0 // pred_region
    _
  $region13: #{tpu_custom_call.1} parent=0 // pred_fallthru
    _
  // Predicated region
  $region14: #{tpu_custom_call.1} parent=0 // pred_check
    _
  $region15: #{tpu_custom_call.1} parent=0 // pred_check_branch
    %31 = sbr.rel (0) target = $region17
  $region16: #{tpu_custom_call.1} parent=0 // pred_region
    _
  $region17: #{tpu_custom_call.1} parent=0 // pred_fallthru
    _
  // Predicated region
  $region18: #{tpu_custom_call.1} parent=0 // pred_check
    _
  $region19: #{tpu_custom_call.1} parent=0 // pred_check_branch
    %33 = sbr.rel (0) target = $region21
  $region20: #{tpu_custom_call.1} parent=0 // pred_region
    _
  $region21: #{tpu_custom_call.1} parent=0 // pred_fallthru
    _
  // Predicated region
  $region22: #{tpu_custom_call.1} parent=0 // pred_check
    _
  $region23: #{tpu_custom_call.1} parent=0 // pred_check_branch
    %35 = sbr.rel (0) target = $region25
  $region24: #{tpu_custom_call.1} parent=0 // pred_region
    _
  $region25: #{tpu_custom_call.1} parent=0 // pred_fallthru
    _
  // Predicated region
  $region26: #{tpu_custom_call.1} parent=0 // pred_check
    _
  $region27: #{tpu_custom_call.1} parent=0 // pred_check_branch
    %37 = sbr.rel (0) target = $region29
  $region28: #{tpu_custom_call.1} parent=0 // pred_region
    _
  $region29: #{tpu_custom_call.1} parent=0 // pred_fallthru
    _
  // Predicated region
  $region30: #{tpu_custom_call.1} parent=0 // pred_check
    _
  $region31: #{tpu_custom_call.1} parent=0 // pred_check_branch
    %39 = sbr.rel (0) target = $region33
  $region32: #{tpu_custom_call.1} parent=0 // pred_region
    _
  $region33: #{tpu_custom_call.1} parent=0 // pred_fallthru
    _
  // Predicated region
  $region34: #{tpu_custom_call.1} parent=0 // pred_check
    _
  $region35: #{tpu_custom_call.1} parent=0 // pred_check_branch
    %41 = sbr.rel (0) target = $region37
  $region36: #{tpu_custom_call.1} parent=0 // pred_region
    _
  $region37: #{tpu_custom_call.1} parent=0 // pred_fallthru
    _
  // Predicated region
  $region38: #{tpu_custom_call.1} parent=0 // pred_check
    _
  $region39: #{tpu_custom_call.1} parent=0 // pred_check_branch
    %43 = sbr.rel (0) target = $region41
  $region40: #{tpu_custom_call.1} parent=0 // pred_region
    _
  $region41: #{tpu_custom_call.1} parent=0 // pred_fallthru
    _
  // Predicated region
  $region42: #{tpu_custom_call.1} parent=0 // pred_check
    _
  $region43: #{tpu_custom_call.1} parent=0 // pred_check_branch
    %45 = sbr.rel (0) target = $region45
  $region44: #{tpu_custom_call.1} parent=0 // pred_region
    _
  $region45: #{tpu_custom_call.1} parent=0 // pred_fallthru
    _
  // Predicated region
  $region46: #{tpu_custom_call.1} parent=0 // pred_check
    _
  $region47: #{tpu_custom_call.1} parent=0 // pred_check_branch
    %47 = sbr.rel (0) target = $region49
  $region48: #{tpu_custom_call.1} parent=0 // pred_region
    _
  $region49: #{tpu_custom_call.1} parent=0 // pred_fallthru
    _
  // Predicated region
  $region50: #{tpu_custom_call.1} parent=0 // pred_check
    _
  $region51: #{tpu_custom_call.1} parent=0 // pred_check_branch
    %49 = sbr.rel (0) target = $region53
  $region52: #{tpu_custom_call.1} parent=0 // pred_region
    _
  $region53: #{tpu_custom_call.1} parent=0 // pred_fallthru
    _
  // Predicated region
  $region54: #{tpu_custom_call.1} parent=0 // pred_check
    _
  $region55: #{tpu_custom_call.1} parent=0 // pred_check_branch
    %51 = sbr.rel (0) target = $region57
  $region56: #{tpu_custom_call.1} parent=0 // pred_region
    _
  $region57: #{tpu_custom_call.1} parent=0 // pred_fallthru
    _
  // Predicated region
  $region58: #{tpu_custom_call.1} parent=0 // pred_check
    _
  $region59: #{tpu_custom_call.1} parent=0 // pred_check_branch
    %53 = sbr.rel (0) target = $region61
  $region60: #{tpu_custom_call.1} parent=0 // pred_region
    _
  $region61: #{tpu_custom_call.1} parent=0 // pred_fallthru
    _
  // Predicated region
  $region62: #{tpu_custom_call.1} parent=0 // pred_check
    _
  $region63: #{tpu_custom_call.1} parent=0 // pred_check_branch
    %55 = sbr.rel (0) target = $region65
  $region64: #{tpu_custom_call.1} parent=0 // pred_region
    _
  $region65: #{tpu_custom_call.1} parent=0 // pred_fallthru
    _
  // Predicated region
  $region66: #{tpu_custom_call.1} parent=0 // pred_check
    _
  $region67: #{tpu_custom_call.1} parent=0 // pred_check_branch
    %57 = sbr.rel (0) target = $region69
  $region68: #{tpu_custom_call.1} parent=0 // pred_region
    _
  $region69: #{tpu_custom_call.1} parent=0 // pred_fallthru
    _
  %v58 = vld [vmem:[%s2] sm:$0xff]
  %v59 = vld [vmem:[%s2 + $0x8] sm:$0xff]
  %v60 = vld [vmem:[%s2 + $0x10] sm:$0xff]
  %v61 = vld [vmem:[%s2 + $0x18] sm:$0xff]
  %v62 = vld [vmem:[%s3] sm:$0xff]
  %v63 = vld [vmem:[%s3 + $0x8] sm:$0xff]
  %v64 = vld [vmem:[%s3 + $0x10] sm:$0xff]
  %v65 = vld [vmem:[%s3 + $0x18] sm:$0xff]
  %v66 = vld [vmem:[%s4] sm:$0x1]
  %v67 = vld [vmem:[%s5] sm:$0xff]
  %v68 = vld [vmem:[%s5 + $0x8] sm:$0xff]
  %v69 = vld [vmem:[%s6] sm:$0xff]
  %v70 = vld [vmem:[%s6 + $0x8] sm:$0xff]
  %v71 = vld [vmem:[%s6 + $0x10] sm:$0xff]
  %v72 = vld [vmem:[%s6 + $0x18] sm:$0xff]
  %v73 = vld [vmem:[%s7] sm:$0x1]
  %v74 = vld [vmem:[%s8] sm:$0xff]
  %v75 = vld [vmem:[%s8 + $0x8] sm:$0xff]
  %v76 = vld [vmem:[%s9] sm:$0xff]
  %v77 = vld [vmem:[%s9 + $0x8] sm:$0xff]
  %v78 = vld [vmem:[%s9 + $0x10] sm:$0xff]
  %v79 = vld [vmem:[%s9 + $0x18] sm:$0xff]
  %v80 = vld [vmem:[%s10] sm:$0x1]
  %v81 = vld [vmem:[%s11] sm:$0xff]
  %v82 = vld [vmem:[%s11 + $0x8] sm:$0xff]
  %v83 = vld [vmem:[%s11 + $0x10] sm:$0xff]
  %v84 = vld [vmem:[%s11 + $0x18] sm:$0xff]
  %v85 = vld [vmem:[%s11 + $0x20] sm:$0xff]
  %v86 = vld [vmem:[%s11 + $0x28] sm:$0xff]
  %v87 = vld [vmem:[%s11 + $0x30] sm:$0xff]
  %v88 = vld [vmem:[%s11 + $0x38] sm:$0xff]
  %v89 = vld [vmem:[%s11 + $0x40] sm:$0xff]
  %v90 = vld [vmem:[%s11 + $0x48] sm:$0xff]
  %v91 = vld [vmem:[%s11 + $0x50] sm:$0xff]
  %v92 = vld [vmem:[%s11 + $0x58] sm:$0xff]
  %v93 = vld [vmem:[%s12] sm:$0x1]
  %v94 = vld [vmem:[%s13] sm:$0xff]
  %v95 = vld [vmem:[%s13 + $0x8] sm:$0xff]
  %v96 = vld [vmem:[%s13 + $0x10] sm:$0xff]
  %v97 = vld [vmem:[%s13 + $0x18] sm:$0xff]
  %v98 = vld [vmem:[%s13 + $0x20] sm:$0xff]
  %v99 = vld [vmem:[%s13 + $0x28] sm:$0xff]
  %v100 = vld [vmem:[%s13 + $0x30] sm:$0xff]
  %v101 = vld [vmem:[%s13 + $0x38] sm:$0xff]
  %v102 = vld [vmem:[%s14] sm:$0x1]
  %v103 = vld [vmem:[%s15] sm:$0x1]
  %v104 = vld [vmem:[#allocation2] sm:$0x1]
  %v105 = vld [vmem:[%s0] sm:$0xff]
  %v106 = vld [vmem:[%s0 + $0x8] sm:$0xff]
  %v108 = vlaneseq
  %v109 = vshrl.u32 %v108, 7
  %v110 = vsub.s32 0, %v109
  %v111 = vrot.slane %v66, %v110
  %vm113 = vcmask 261120
  %v115 = vsel %vm113, %v105, 0
  %v118 = vsel %vm113, %v106, 0
  %120 = vmatprep.subr.mxu0 0.0
  %121 = vmatpush1.msra.mxu0 0.0
  %122 = vmatprep.subr.mxu0 0.0
  %123 = vmatpush1.msra.mxu0 0.0
  %124 = vmatprep.subr.mxu0 0.0
  %125 = vmatpush1.msra.mxu0 0.0
  %126 = vmatprep.subr.mxu0 0.0
  %127 = vmatpush1.msra.mxu0 0.0
  %128 = vmatprep.subr.mxu0 0.0
  %129 = vmatpush1.msra.mxu0 0.0
  %130 = vmatprep.subr.mxu0 0.0
  %131 = vmatpush1.msra.mxu0 0.0
  %132 = vmatprep.subr.mxu0 0.0
  %133 = vmatpush1.msra.mxu0 0.0
  %134 = vmatprep.subr.mxu0 0.0
  %135 = vmatpush1.msra.mxu0 0.0
  %136 = vmatprep.subr.mxu0 0.0
  %137 = vmatpush1.msra.mxu0 0.0
  %138 = vmatprep.subr.mxu0 0.0
  %139 = vmatpush1.msra.mxu0 0.0
  %140 = vmatprep.subr.mxu0 0.0
  %141 = vmatpush1.msra.mxu0 0.0
  %142 = vmatprep.subr.mxu0 0.0
  %143 = vmatpush1.msra.mxu0 0.0
  %144 = vmatprep.subr.mxu0 0.0
  %145 = vmatpush1.msra.mxu0 %v61
  %146 = vmatprep.subr.mxu0 0.0
  %147 = vmatpush1.msra.mxu0 %v60
  %148 = vmatprep.subr.mxu0 0.0
  %149 = vmatpush1.msra.mxu0 %v59
  %150 = vmatprep.subr.mxu0 0.0
  %151 = vmatpush1.msra.mxu0 %v58
  %152 = vmatprep.subr.mxu0 0.0
  %153 = vmatpush2.msra.mxu0 0.0
  %154 = vmatprep.subr.mxu0 0.0
  %155 = vmatpush2.msra.mxu0 0.0
  %156 = vmatprep.subr.mxu0 0.0
  %157 = vmatpush2.msra.mxu0 0.0
  %158 = vmatprep.subr.mxu0 0.0
  %159 = vmatpush2.msra.mxu0 0.0
  %160 = vmatprep.subr.mxu0 0.0
  %161 = vmatpush2.msra.mxu0 0.0
  %162 = vmatprep.subr.mxu0 0.0
  %163 = vmatpush2.msra.mxu0 0.0
  %164 = vmatprep.subr.mxu0 0.0
  %165 = vmatpush2.msra.mxu0 0.0
  %166 = vmatprep.subr.mxu0 0.0
  %167 = vmatpush2.msra.mxu0 0.0
  %168 = vmatprep.subr.mxu0 0.0
  %169 = vmatpush2.msra.mxu0 0.0
  %170 = vmatprep.subr.mxu0 0.0
  %171 = vmatpush2.msra.mxu0 0.0
  %172 = vmatprep.subr.mxu0 0.0
  %173 = vmatpush2.msra.mxu0 0.0
  %174 = vmatprep.subr.mxu0 0.0
  %175 = vmatpush2.msra.mxu0 0.0
  %176 = vmatprep.subr.mxu0 0.0
  %177 = vmatpush2.msra.mxu0 0.0
  %178 = vmatprep.subr.mxu0 0.0
  %179 = vmatpush2.msra.mxu0 0.0
  %180 = vmatprep.subr.mxu0 0.0
  %181 = vmatpush2.msra.mxu0 0.0
  %182 = vmatprep.subr.mxu0 0.0
  %183 = vmatpush2.msra.mxu0 0.0
  %184 = vmatprep.mubr.f32.mxu0 0.0
  %185 = vmatmul.mubr.f32.gmra.mxu0 %v115
  %v186 = vpop.f32.mrf.mxu0
  %v187 = vadd.f32 %v111, %v186
  %v188 = vpop.f32.mrf.mxu0
  %189 = vmatprep.mubr.f32.mxu0 0.0
  %190 = vmatmul.mubr.f32.gmra.mxu0 %v118
  %v191 = vpop.f32.mrf.mxu0
  %v192 = vadd.f32 %v111, %v191
  %v193 = vpop.f32.mrf.mxu0
  %194 = vdwg.mxu0
  %v196 = vsel %vm113, 0.0, 0
  %198 = vmatprep.subr.mxu0 0.0
  %199 = vmatpush1.msra.mxu0 0.0
  %200 = vmatprep.subr.mxu0 0.0
  %201 = vmatpush1.msra.mxu0 0.0
  %202 = vmatprep.subr.mxu0 0.0
  %203 = vmatpush1.msra.mxu0 0.0
  %204 = vmatprep.subr.mxu0 0.0
  %205 = vmatpush1.msra.mxu0 0.0
  %206 = vmatprep.subr.mxu0 0.0
  %207 = vmatpush1.msra.mxu0 0.0
  %208 = vmatprep.subr.mxu0 0.0
  %209 = vmatpush1.msra.mxu0 0.0
  %210 = vmatprep.subr.mxu0 0.0
  %211 = vmatpush1.msra.mxu0 0.0
  %212 = vmatprep.subr.mxu0 0.0
  %213 = vmatpush1.msra.mxu0 0.0
  %214 = vmatprep.subr.mxu0 0.0
  %215 = vmatpush1.msra.mxu0 0.0
  %216 = vmatprep.subr.mxu0 0.0
  %217 = vmatpush1.msra.mxu0 0.0
  %218 = vmatprep.subr.mxu0 0.0
  %219 = vmatpush1.msra.mxu0 0.0
  %220 = vmatprep.subr.mxu0 0.0
  %221 = vmatpush1.msra.mxu0 0.0
  %222 = vmatprep.subr.mxu0 0.0
  %223 = vmatpush1.msra.mxu0 %v65
  %224 = vmatprep.subr.mxu0 0.0
  %225 = vmatpush1.msra.mxu0 %v64
  %226 = vmatprep.subr.mxu0 0.0
  %227 = vmatpush1.msra.mxu0 %v63
  %228 = vmatprep.subr.mxu0 0.0
  %229 = vmatpush1.msra.mxu0 %v62
  %230 = vmatprep.subr.mxu0 0.0
  %231 = vmatpush2.msra.mxu0 0.0
  %232 = vmatprep.subr.mxu0 0.0
  %233 = vmatpush2.msra.mxu0 0.0
  %234 = vmatprep.subr.mxu0 0.0
  %235 = vmatpush2.msra.mxu0 0.0
  %236 = vmatprep.subr.mxu0 0.0
  %237 = vmatpush2.msra.mxu0 0.0
  %238 = vmatprep.subr.mxu0 0.0
  %239 = vmatpush2.msra.mxu0 0.0
  %240 = vmatprep.subr.mxu0 0.0
  %241 = vmatpush2.msra.mxu0 0.0
  %242 = vmatprep.subr.mxu0 0.0
  %243 = vmatpush2.msra.mxu0 0.0
  %244 = vmatprep.subr.mxu0 0.0
  %245 = vmatpush2.msra.mxu0 0.0
  %246 = vmatprep.subr.mxu0 0.0
  %247 = vmatpush2.msra.mxu0 0.0
  %248 = vmatprep.subr.mxu0 0.0
  %249 = vmatpush2.msra.mxu0 0.0
  %250 = vmatprep.subr.mxu0 0.0
  %251 = vmatpush2.msra.mxu0 0.0
  %252 = vmatprep.subr.mxu0 0.0
  %253 = vmatpush2.msra.mxu0 0.0
  %254 = vmatprep.subr.mxu0 0.0
  %255 = vmatpush2.msra.mxu0 0.0
  %256 = vmatprep.subr.mxu0 0.0
  %257 = vmatpush2.msra.mxu0 0.0
  %258 = vmatprep.subr.mxu0 0.0
  %259 = vmatpush2.msra.mxu0 0.0
  %260 = vmatprep.subr.mxu0 0.0
  %261 = vmatpush2.msra.mxu0 0.0
  %262 = vmatprep.mubr.f32.mxu0 0.0
  %263 = vmatmul.mubr.f32.gmra.mxu0 %v196
  %v264 = vpop.f32.mrf.mxu0
  %v265 = vadd.f32 0.0, %v264
  %v266 = vpop.f32.mrf.mxu0
  %267 = vdwg.mxu0
  %v269 = vrot.slane %v265, 1
  %v272 = vadd.f32 %v187, %v265
  %v273 = vadd.f32 %v192, %v269
  %v274 = vxor.u32 %v272, 2147483648
  %v275 = vxor.u32 %v273, 2147483648
  %v276 = vmul.f32 %v274, 1.442695
  %v277 = vpow.pop %v276
  %v278 = vmul.f32 %v275, 1.442695
  %v279 = vpow.pop %v278
  %v280 = vadd.f32 %v277, 1.0
  %v281 = vadd.f32 %v279, 1.0
  %v282 = vrcp.pop %v280
  %v283 = vmul.f32 1.0, %v282
  %v284 = vrcp.pop %v281
  %v285 = vmul.f32 1.0, %v284
  %v286 = vtanh.pop %v272
  %v287 = vtanh.pop %v273
  %v288 = vmul.f32 %v283, 0.0
  %v289 = vmul.f32 %v285, 0.0
  %292 = vrot.lane.b32.xlu0 %v286, 64
  %v293 = vpop.permute.xlu0 %292
  %294 = vrot.lane.b32.xlu0 %v287, 64
  %v295 = vpop.permute.xlu0 %294
  %v298 = vmul.f32 %v283, %v293
  %v299 = vmul.f32 %v285, %v295
  %302 = vrot.lane.b32.xlu0 %v298, 32
  %v303 = vpop.permute.xlu0 %302
  %304 = vrot.lane.b32.xlu0 %v299, 32
  %v305 = vpop.permute.xlu0 %304
  %v308 = vadd.f32 %v288, %v303
  %v309 = vadd.f32 %v289, %v305
  %v310 = vtanh.pop %v308
  %v311 = vtanh.pop %v309
  %314 = vrot.lane.b32.xlu0 %v310, 64
  %v315 = vpop.permute.xlu0 %314
  %316 = vrot.lane.b32.xlu0 %v311, 64
  %v317 = vpop.permute.xlu0 %316
  %v320 = vmul.f32 %v283, %v315
  %v321 = vmul.f32 %v285, %v317
  %v324 = vrot.slane %v321, 7
  %vm325 = vcmask 1041409
  %v326 = vsel %vm325, %v324, %v320
  %327 = vrot.lane.b32.xlu0 %v326, 32
  %v328 = vpop.permute.xlu0 %327
  %v329 = vsel %vm113, %v328, 0
  %331 = vmatprep.subr.mxu0 0.0
  %332 = vmatpush1.msra.mxu0 0.0
  %333 = vmatprep.subr.mxu0 0.0
  %334 = vmatpush1.msra.mxu0 0.0
  %335 = vmatprep.subr.mxu0 0.0
  %336 = vmatpush1.msra.mxu0 0.0
  %337 = vmatprep.subr.mxu0 0.0
  %338 = vmatpush1.msra.mxu0 0.0
  %339 = vmatprep.subr.mxu0 0.0
  %340 = vmatpush1.msra.mxu0 0.0
  %341 = vmatprep.subr.mxu0 0.0
  %342 = vmatpush1.msra.mxu0 0.0
  %343 = vmatprep.subr.mxu0 0.0
  %344 = vmatpush1.msra.mxu0 0.0
  %345 = vmatprep.subr.mxu0 0.0
  %346 = vmatpush1.msra.mxu0 0.0
  %347 = vmatprep.subr.mxu0 0.0
  %348 = vmatpush1.msra.mxu0 0.0
  %349 = vmatprep.subr.mxu0 0.0
  %350 = vmatpush1.msra.mxu0 0.0
  %351 = vmatprep.subr.mxu0 0.0
  %352 = vmatpush1.msra.mxu0 0.0
  %353 = vmatprep.subr.mxu0 0.0
  %354 = vmatpush1.msra.mxu0 0.0
  %355 = vmatprep.subr.mxu0 0.0
  %356 = vmatpush1.msra.mxu0 %v65
  %357 = vmatprep.subr.mxu0 0.0
  %358 = vmatpush1.msra.mxu0 %v64
  %359 = vmatprep.subr.mxu0 0.0
  %360 = vmatpush1.msra.mxu0 %v63
  %361 = vmatprep.subr.mxu0 0.0
  %362 = vmatpush1.msra.mxu0 %v62
  %363 = vmatprep.subr.mxu0 0.0
  %364 = vmatpush2.msra.mxu0 0.0
  %365 = vmatprep.subr.mxu0 0.0
  %366 = vmatpush2.msra.mxu0 0.0
  %367 = vmatprep.subr.mxu0 0.0
  %368 = vmatpush2.msra.mxu0 0.0
  %369 = vmatprep.subr.mxu0 0.0
  %370 = vmatpush2.msra.mxu0 0.0
  %371 = vmatprep.subr.mxu0 0.0
  %372 = vmatpush2.msra.mxu0 0.0
  %373 = vmatprep.subr.mxu0 0.0
  %374 = vmatpush2.msra.mxu0 0.0
  %375 = vmatprep.subr.mxu0 0.0
  %376 = vmatpush2.msra.mxu0 0.0
  %377 = vmatprep.subr.mxu0 0.0
  %378 = vmatpush2.msra.mxu0 0.0
  %379 = vmatprep.subr.mxu0 0.0
  %380 = vmatpush2.msra.mxu0 0.0
  %381 = vmatprep.subr.mxu0 0.0
  %382 = vmatpush2.msra.mxu0 0.0
  %383 = vmatprep.subr.mxu0 0.0
  %384 = vmatpush2.msra.mxu0 0.0
  %385 = vmatprep.subr.mxu0 0.0
  %386 = vmatpush2.msra.mxu0 0.0
  %387 = vmatprep.subr.mxu0 0.0
  %388 = vmatpush2.msra.mxu0 0.0
  %389 = vmatprep.subr.mxu0 0.0
  %390 = vmatpush2.msra.mxu0 0.0
  %391 = vmatprep.subr.mxu0 0.0
  %392 = vmatpush2.msra.mxu0 0.0
  %393 = vmatprep.subr.mxu0 0.0
  %394 = vmatpush2.msra.mxu0 0.0
  %395 = vmatprep.mubr.f32.mxu0 0.0
  %396 = vmatmul.mubr.f32.gmra.mxu0 %v329
  %v397 = vpop.f32.mrf.mxu0
  %v398 = vadd.f32 0.0, %v397
  %v399 = vpop.f32.mrf.mxu0
  %400 = vdwg.mxu0
  %v402 = vrot.slane %v398, 7
  %v405 = vadd.f32 %v187, %v402
  %v406 = vadd.f32 %v192, %v398
  %v407 = vxor.u32 %v405, 2147483648
  %v408 = vxor.u32 %v406, 2147483648
  %v409 = vmul.f32 %v407, 1.442695
  %v410 = vpow.pop %v409
  %v411 = vmul.f32 %v408, 1.442695
  %v412 = vpow.pop %v411
  %v413 = vadd.f32 %v410, 1.0
  %v414 = vadd.f32 %v412, 1.0
  %v415 = vrcp.pop %v413
  %v416 = vmul.f32 1.0, %v415
  %v417 = vrcp.pop %v414
  %v418 = vmul.f32 1.0, %v417
  %v419 = vtanh.pop %v405
  %v420 = vtanh.pop %v406
  %v423 = vrot.slane %v308, 7
  %v424 = vrot.slane %v309, 7
  %v427 = vmul.f32 %v416, %v423
  %v428 = vmul.f32 %v418, %v424
  %431 = vrot.lane.b32.xlu0 %v419, 64
  %v432 = vpop.permute.xlu0 %431
  %433 = vrot.lane.b32.xlu0 %v420, 64
  %v434 = vpop.permute.xlu0 %433
  %v437 = vmul.f32 %v416, %v432
  %v438 = vmul.f32 %v418, %v434
  %441 = vrot.lane.b32.xlu0 %v437, 32
  %v442 = vpop.permute.xlu0 %441
  %443 = vrot.lane.b32.xlu0 %v438, 32
  %v444 = vpop.permute.xlu0 %443
  %v447 = vadd.f32 %v427, %v442
  %v448 = vadd.f32 %v428, %v444
  %v449 = vtanh.pop %v447
  %v450 = vtanh.pop %v448
  %453 = vrot.lane.b32.xlu0 %v449, 64
  %v454 = vpop.permute.xlu0 %453
  %455 = vrot.lane.b32.xlu0 %v450, 64
  %v456 = vpop.permute.xlu0 %455
  %v459 = vmul.f32 %v416, %v454
  %v460 = vmul.f32 %v418, %v456
  %v463 = vrot.slane %v459, 1
  %v464 = vsel %vm325, %v460, %v463
  %465 = vrot.lane.b32.xlu0 %v464, 32
  %v466 = vpop.permute.xlu0 %465
  %v467 = vsel %vm113, %v466, 0
  %469 = vmatprep.subr.mxu0 0.0
  %470 = vmatpush1.msra.mxu0 0.0
  %471 = vmatprep.subr.mxu0 0.0
  %472 = vmatpush1.msra.mxu0 0.0
  %473 = vmatprep.subr.mxu0 0.0
  %474 = vmatpush1.msra.mxu0 0.0
  %475 = vmatprep.subr.mxu0 0.0
  %476 = vmatpush1.msra.mxu0 0.0
  %477 = vmatprep.subr.mxu0 0.0
  %478 = vmatpush1.msra.mxu0 0.0
  %479 = vmatprep.subr.mxu0 0.0
  %480 = vmatpush1.msra.mxu0 0.0
  %481 = vmatprep.subr.mxu0 0.0
  %482 = vmatpush1.msra.mxu0 0.0
  %483 = vmatprep.subr.mxu0 0.0
  %484 = vmatpush1.msra.mxu0 0.0
  %485 = vmatprep.subr.mxu0 0.0
  %486 = vmatpush1.msra.mxu0 0.0
  %487 = vmatprep.subr.mxu0 0.0
  %488 = vmatpush1.msra.mxu0 0.0
  %489 = vmatprep.subr.mxu0 0.0
  %490 = vmatpush1.msra.mxu0 0.0
  %491 = vmatprep.subr.mxu0 0.0
  %492 = vmatpush1.msra.mxu0 0.0
  %493 = vmatprep.subr.mxu0 0.0
  %494 = vmatpush1.msra.mxu0 %v65
  %495 = vmatprep.subr.mxu0 0.0
  %496 = vmatpush1.msra.mxu0 %v64
  %497 = vmatprep.subr.mxu0 0.0
  %498 = vmatpush1.msra.mxu0 %v63
  %499 = vmatprep.subr.mxu0 0.0
  %500 = vmatpush1.msra.mxu0 %v62
  %501 = vmatprep.subr.mxu0 0.0
  %502 = vmatpush2.msra.mxu0 0.0
  %503 = vmatprep.subr.mxu0 0.0
  %504 = vmatpush2.msra.mxu0 0.0
  %505 = vmatprep.subr.mxu0 0.0
  %506 = vmatpush2.msra.mxu0 0.0
  %507 = vmatprep.subr.mxu0 0.0
  %508 = vmatpush2.msra.mxu0 0.0
  %509 = vmatprep.subr.mxu0 0.0
  %510 = vmatpush2.msra.mxu0 0.0
  %511 = vmatprep.subr.mxu0 0.0
  %512 = vmatpush2.msra.mxu0 0.0
  %513 = vmatprep.subr.mxu0 0.0
  %514 = vmatpush2.msra.mxu0 0.0
  %515 = vmatprep.subr.mxu0 0.0
  %516 = vmatpush2.msra.mxu0 0.0
  %517 = vmatprep.subr.mxu0 0.0
  %518 = vmatpush2.msra.mxu0 0.0
  %519 = vmatprep.subr.mxu0 0.0
  %520 = vmatpush2.msra.mxu0 0.0
  %521 = vmatprep.subr.mxu0 0.0
  %522 = vmatpush2.msra.mxu0 0.0
  %523 = vmatprep.subr.mxu0 0.0
  %524 = vmatpush2.msra.mxu0 0.0
  %525 = vmatprep.subr.mxu0 0.0
  %526 = vmatpush2.msra.mxu0 0.0
  %527 = vmatprep.subr.mxu0 0.0
  %528 = vmatpush2.msra.mxu0 0.0
  %529 = vmatprep.subr.mxu0 0.0
  %530 = vmatpush2.msra.mxu0 0.0
  %531 = vmatprep.subr.mxu0 0.0
  %532 = vmatpush2.msra.mxu0 0.0
  %533 = vmatprep.mubr.f32.mxu0 0.0
  %534 = vmatmul.mubr.f32.gmra.mxu0 %v467
  %v535 = vpop.f32.mrf.mxu0
  %v536 = vadd.f32 0.0, %v535
  %v537 = vpop.f32.mrf.mxu0
  %538 = vdwg.mxu0
  %v540 = vrot.slane %v536, 6
  %v541 = vrot.slane %v536, 7
  %v544 = vadd.f32 %v187, %v540
  %v545 = vadd.f32 %v192, %v541
  %v546 = vxor.u32 %v544, 2147483648
  %v547 = vxor.u32 %v545, 2147483648
  %v548 = vmul.f32 %v546, 1.442695
  %v549 = vpow.pop %v548
  %v550 = vmul.f32 %v547, 1.442695
  %v551 = vpow.pop %v550
  %v552 = vadd.f32 %v549, 1.0
  %v553 = vadd.f32 %v551, 1.0
  %v554 = vrcp.pop %v552
  %v555 = vmul.f32 1.0, %v554
  %v556 = vrcp.pop %v553
  %v557 = vmul.f32 1.0, %v556
  %v558 = vtanh.pop %v544
  %v559 = vtanh.pop %v545
  %v562 = vrot.slane %v447, 7
  %v563 = vrot.slane %v448, 7
  %v566 = vmul.f32 %v555, %v562
  %v567 = vmul.f32 %v557, %v563
  %570 = vrot.lane.b32.xlu0 %v558, 64
  %v571 = vpop.permute.xlu0 %570
  %572 = vrot.lane.b32.xlu0 %v559, 64
  %v573 = vpop.permute.xlu0 %572
  %v576 = vmul.f32 %v555, %v571
  %v577 = vmul.f32 %v557, %v573
  %580 = vrot.lane.b32.xlu0 %v576, 32
  %v581 = vpop.permute.xlu0 %580
  %582 = vrot.lane.b32.xlu0 %v577, 32
  %v583 = vpop.permute.xlu0 %582
  %v586 = vadd.f32 %v566, %v581
  %v587 = vadd.f32 %v567, %v583
  %v588 = vtanh.pop %v586
  %v589 = vtanh.pop %v587
  %592 = vrot.lane.b32.xlu0 %v588, 64
  %v593 = vpop.permute.xlu0 %592
  %594 = vrot.lane.b32.xlu0 %v589, 64
  %v595 = vpop.permute.xlu0 %594
  %v598 = vmul.f32 %v555, %v593
  %v599 = vmul.f32 %v557, %v595
  %v602 = vrot.slane %v598, 2
  %v603 = vrot.slane %v599, 1
  %v604 = vsel %vm325, %v603, %v602
  %605 = vrot.lane.b32.xlu0 %v604, 32
  %v606 = vpop.permute.xlu0 %605
  %v607 = vsel %vm113, %v606, 0
  %609 = vmatprep.subr.mxu0 0.0
  %610 = vmatpush1.msra.mxu0 0.0
  %611 = vmatprep.subr.mxu0 0.0
  %612 = vmatpush1.msra.mxu0 0.0
  %613 = vmatprep.subr.mxu0 0.0
  %614 = vmatpush1.msra.mxu0 0.0
  %615 = vmatprep.subr.mxu0 0.0
  %616 = vmatpush1.msra.mxu0 0.0
  %617 = vmatprep.subr.mxu0 0.0
  %618 = vmatpush1.msra.mxu0 0.0
  %619 = vmatprep.subr.mxu0 0.0
  %620 = vmatpush1.msra.mxu0 0.0
  %621 = vmatprep.subr.mxu0 0.0
  %622 = vmatpush1.msra.mxu0 0.0
  %623 = vmatprep.subr.mxu0 0.0
  %624 = vmatpush1.msra.mxu0 0.0
  %625 = vmatprep.subr.mxu0 0.0
  %626 = vmatpush1.msra.mxu0 0.0
  %627 = vmatprep.subr.mxu0 0.0
  %628 = vmatpush1.msra.mxu0 0.0
  %629 = vmatprep.subr.mxu0 0.0
  %630 = vmatpush1.msra.mxu0 0.0
  %631 = vmatprep.subr.mxu0 0.0
  %632 = vmatpush1.msra.mxu0 0.0
  %633 = vmatprep.subr.mxu0 0.0
  %634 = vmatpush1.msra.mxu0 %v65
  %635 = vmatprep.subr.mxu0 0.0
  %636 = vmatpush1.msra.mxu0 %v64
  %637 = vmatprep.subr.mxu0 0.0
  %638 = vmatpush1.msra.mxu0 %v63
  %639 = vmatprep.subr.mxu0 0.0
  %640 = vmatpush1.msra.mxu0 %v62
  %641 = vmatprep.subr.mxu0 0.0
  %642 = vmatpush2.msra.mxu0 0.0
  %643 = vmatprep.subr.mxu0 0.0
  %644 = vmatpush2.msra.mxu0 0.0
  %645 = vmatprep.subr.mxu0 0.0
  %646 = vmatpush2.msra.mxu0 0.0
  %647 = vmatprep.subr.mxu0 0.0
  %648 = vmatpush2.msra.mxu0 0.0
  %649 = vmatprep.subr.mxu0 0.0
  %650 = vmatpush2.msra.mxu0 0.0
  %651 = vmatprep.subr.mxu0 0.0
  %652 = vmatpush2.msra.mxu0 0.0
  %653 = vmatprep.subr.mxu0 0.0
  %654 = vmatpush2.msra.mxu0 0.0
  %655 = vmatprep.subr.mxu0 0.0
  %656 = vmatpush2.msra.mxu0 0.0
  %657 = vmatprep.subr.mxu0 0.0
  %658 = vmatpush2.msra.mxu0 0.0
  %659 = vmatprep.subr.mxu0 0.0
  %660 = vmatpush2.msra.mxu0 0.0
  %661 = vmatprep.subr.mxu0 0.0
  %662 = vmatpush2.msra.mxu0 0.0
  %663 = vmatprep.subr.mxu0 0.0
  %664 = vmatpush2.msra.mxu0 0.0
  %665 = vmatprep.subr.mxu0 0.0
  %666 = vmatpush2.msra.mxu0 0.0
  %667 = vmatprep.subr.mxu0 0.0
  %668 = vmatpush2.msra.mxu0 0.0
  %669 = vmatprep.subr.mxu0 0.0
  %670 = vmatpush2.msra.mxu0 0.0
  %671 = vmatprep.subr.mxu0 0.0
  %672 = vmatpush2.msra.mxu0 0.0
  %673 = vmatprep.mubr.f32.mxu0 0.0
  %674 = vmatmul.mubr.f32.gmra.mxu0 %v607
  %v675 = vpop.f32.mrf.mxu0
  %v676 = vadd.f32 0.0, %v675
  %v677 = vpop.f32.mrf.mxu0
  %678 = vdwg.mxu0
  %v680 = vrot.slane %v676, 5
  %v681 = vrot.slane %v676, 6
  %v684 = vadd.f32 %v187, %v680
  %v685 = vadd.f32 %v192, %v681
  %v686 = vxor.u32 %v684, 2147483648
  %v687 = vxor.u32 %v685, 2147483648
  %v688 = vmul.f32 %v686, 1.442695
  %v689 = vpow.pop %v688
  %v690 = vmul.f32 %v687, 1.442695
  %v691 = vpow.pop %v690
  %v692 = vadd.f32 %v689, 1.0
  %v693 = vadd.f32 %v691, 1.0
  %v694 = vrcp.pop %v692
  %v695 = vmul.f32 1.0, %v694
  %v696 = vrcp.pop %v693
  %v697 = vmul.f32 1.0, %v696
  %v698 = vtanh.pop %v684
  %v699 = vtanh.pop %v685
  %v702 = vrot.slane %v586, 7
  %v703 = vrot.slane %v587, 7
  %v706 = vmul.f32 %v695, %v702
  %v707 = vmul.f32 %v697, %v703
  %710 = vrot.lane.b32.xlu0 %v698, 64
  %v711 = vpop.permute.xlu0 %710
  %712 = vrot.lane.b32.xlu0 %v699, 64
  %v713 = vpop.permute.xlu0 %712
  %v716 = vmul.f32 %v695, %v711
  %v717 = vmul.f32 %v697, %v713
  %720 = vrot.lane.b32.xlu0 %v716, 32
  %v721 = vpop.permute.xlu0 %720
  %722 = vrot.lane.b32.xlu0 %v717, 32
  %v723 = vpop.permute.xlu0 %722
  %v726 = vadd.f32 %v706, %v721
  %v727 = vadd.f32 %v707, %v723
  %v728 = vtanh.pop %v726
  %v729 = vtanh.pop %v727
  %732 = vrot.lane.b32.xlu0 %v728, 64
  %v733 = vpop.permute.xlu0 %732
  %734 = vrot.lane.b32.xlu0 %v729, 64
  %v735 = vpop.permute.xlu0 %734
  %v738 = vmul.f32 %v695, %v733
  %v739 = vmul.f32 %v697, %v735
  %v742 = vrot.slane %v738, 3
  %v743 = vrot.slane %v739, 2
  %v744 = vsel %vm325, %v743, %v742
  %745 = vrot.lane.b32.xlu0 %v744, 32
  %v746 = vpop.permute.xlu0 %745
  %v747 = vsel %vm113, %v746, 0
  %749 = vmatprep.subr.mxu0 0.0
  %750 = vmatpush1.msra.mxu0 0.0
  %751 = vmatprep.subr.mxu0 0.0
  %752 = vmatpush1.msra.mxu0 0.0
  %753 = vmatprep.subr.mxu0 0.0
  %754 = vmatpush1.msra.mxu0 0.0
  %755 = vmatprep.subr.mxu0 0.0
  %756 = vmatpush1.msra.mxu0 0.0
  %757 = vmatprep.subr.mxu0 0.0
  %758 = vmatpush1.msra.mxu0 0.0
  %759 = vmatprep.subr.mxu0 0.0
  %760 = vmatpush1.msra.mxu0 0.0
  %761 = vmatprep.subr.mxu0 0.0
  %762 = vmatpush1.msra.mxu0 0.0
  %763 = vmatprep.subr.mxu0 0.0
  %764 = vmatpush1.msra.mxu0 0.0
  %765 = vmatprep.subr.mxu0 0.0
  %766 = vmatpush1.msra.mxu0 0.0
  %767 = vmatprep.subr.mxu0 0.0
  %768 = vmatpush1.msra.mxu0 0.0
  %769 = vmatprep.subr.mxu0 0.0
  %770 = vmatpush1.msra.mxu0 0.0
  %771 = vmatprep.subr.mxu0 0.0
  %772 = vmatpush1.msra.mxu0 0.0
  %773 = vmatprep.subr.mxu0 0.0
  %774 = vmatpush1.msra.mxu0 %v65
  %775 = vmatprep.subr.mxu0 0.0
  %776 = vmatpush1.msra.mxu0 %v64
  %777 = vmatprep.subr.mxu0 0.0
  %778 = vmatpush1.msra.mxu0 %v63
  %779 = vmatprep.subr.mxu0 0.0
  %780 = vmatpush1.msra.mxu0 %v62
  %781 = vmatprep.subr.mxu0 0.0
  %782 = vmatpush2.msra.mxu0 0.0
  %783 = vmatprep.subr.mxu0 0.0
  %784 = vmatpush2.msra.mxu0 0.0
  %785 = vmatprep.subr.mxu0 0.0
  %786 = vmatpush2.msra.mxu0 0.0
  %787 = vmatprep.subr.mxu0 0.0
  %788 = vmatpush2.msra.mxu0 0.0
  %789 = vmatprep.subr.mxu0 0.0
  %790 = vmatpush2.msra.mxu0 0.0
  %791 = vmatprep.subr.mxu0 0.0
  %792 = vmatpush2.msra.mxu0 0.0
  %793 = vmatprep.subr.mxu0 0.0
  %794 = vmatpush2.msra.mxu0 0.0
  %795 = vmatprep.subr.mxu0 0.0
  %796 = vmatpush2.msra.mxu0 0.0
  %797 = vmatprep.subr.mxu0 0.0
  %798 = vmatpush2.msra.mxu0 0.0
  %799 = vmatprep.subr.mxu0 0.0
  %800 = vmatpush2.msra.mxu0 0.0
  %801 = vmatprep.subr.mxu0 0.0
  %802 = vmatpush2.msra.mxu0 0.0
  %803 = vmatprep.subr.mxu0 0.0
  %804 = vmatpush2.msra.mxu0 0.0
  %805 = vmatprep.subr.mxu0 0.0
  %806 = vmatpush2.msra.mxu0 0.0
  %807 = vmatprep.subr.mxu0 0.0
  %808 = vmatpush2.msra.mxu0 0.0
  %809 = vmatprep.subr.mxu0 0.0
  %810 = vmatpush2.msra.mxu0 0.0
  %811 = vmatprep.subr.mxu0 0.0
  %812 = vmatpush2.msra.mxu0 0.0
  %813 = vmatprep.mubr.f32.mxu0 0.0
  %814 = vmatmul.mubr.f32.gmra.mxu0 %v747
  %v815 = vpop.f32.mrf.mxu0
  %v816 = vadd.f32 0.0, %v815
  %v817 = vpop.f32.mrf.mxu0
  %818 = vdwg.mxu0
  %v820 = vrot.slane %v816, 4
  %v821 = vrot.slane %v816, 5
  %v824 = vadd.f32 %v187, %v820
  %v825 = vadd.f32 %v192, %v821
  %v826 = vxor.u32 %v824, 2147483648
  %v827 = vxor.u32 %v825, 2147483648
  %v828 = vmul.f32 %v826, 1.442695
  %v829 = vpow.pop %v828
  %v830 = vmul.f32 %v827, 1.442695
  %v831 = vpow.pop %v830
  %v832 = vadd.f32 %v829, 1.0
  %v833 = vadd.f32 %v831, 1.0
  %v834 = vrcp.pop %v832
  %v835 = vmul.f32 1.0, %v834
  %v836 = vrcp.pop %v833
  %v837 = vmul.f32 1.0, %v836
  %v838 = vtanh.pop %v824
  %v839 = vtanh.pop %v825
  %v842 = vrot.slane %v726, 7
  %v843 = vrot.slane %v727, 7
  %v846 = vmul.f32 %v835, %v842
  %v847 = vmul.f32 %v837, %v843
  %850 = vrot.lane.b32.xlu0 %v838, 64
  %v851 = vpop.permute.xlu0 %850
  %852 = vrot.lane.b32.xlu0 %v839, 64
  %v853 = vpop.permute.xlu0 %852
  %v856 = vmul.f32 %v835, %v851
  %v857 = vmul.f32 %v837, %v853
  %860 = vrot.lane.b32.xlu0 %v856, 32
  %v861 = vpop.permute.xlu0 %860
  %862 = vrot.lane.b32.xlu0 %v857, 32
  %v863 = vpop.permute.xlu0 %862
  %v866 = vadd.f32 %v846, %v861
  %v867 = vadd.f32 %v847, %v863
  %v868 = vtanh.pop %v866
  %v869 = vtanh.pop %v867
  %872 = vrot.lane.b32.xlu0 %v868, 64
  %v873 = vpop.permute.xlu0 %872
  %874 = vrot.lane.b32.xlu0 %v869, 64
  %v875 = vpop.permute.xlu0 %874
  %v878 = vmul.f32 %v835, %v873
  %v879 = vmul.f32 %v837, %v875
  %v882 = vrot.slane %v878, 4
  %v883 = vrot.slane %v879, 3
  %v884 = vsel %vm325, %v883, %v882
  %885 = vrot.lane.b32.xlu0 %v884, 32
  %v886 = vpop.permute.xlu0 %885
  %v887 = vsel %vm113, %v886, 0
  %889 = vmatprep.subr.mxu0 0.0
  %890 = vmatpush1.msra.mxu0 0.0
  %891 = vmatprep.subr.mxu0 0.0
  %892 = vmatpush1.msra.mxu0 0.0
  %893 = vmatprep.subr.mxu0 0.0
  %894 = vmatpush1.msra.mxu0 0.0
  %895 = vmatprep.subr.mxu0 0.0
  %896 = vmatpush1.msra.mxu0 0.0
  %897 = vmatprep.subr.mxu0 0.0
  %898 = vmatpush1.msra.mxu0 0.0
  %899 = vmatprep.subr.mxu0 0.0
  %900 = vmatpush1.msra.mxu0 0.0
  %901 = vmatprep.subr.mxu0 0.0
  %902 = vmatpush1.msra.mxu0 0.0
  %903 = vmatprep.subr.mxu0 0.0
  %904 = vmatpush1.msra.mxu0 0.0
  %905 = vmatprep.subr.mxu0 0.0
  %906 = vmatpush1.msra.mxu0 0.0
  %907 = vmatprep.subr.mxu0 0.0
  %908 = vmatpush1.msra.mxu0 0.0
  %909 = vmatprep.subr.mxu0 0.0
  %910 = vmatpush1.msra.mxu0 0.0
  %911 = vmatprep.subr.mxu0 0.0
  %912 = vmatpush1.msra.mxu0 0.0
  %913 = vmatprep.subr.mxu0 0.0
  %914 = vmatpush1.msra.mxu0 %v65
  %915 = vmatprep.subr.mxu0 0.0
  %916 = vmatpush1.msra.mxu0 %v64
  %917 = vmatprep.subr.mxu0 0.0
  %918 = vmatpush1.msra.mxu0 %v63
  %919 = vmatprep.subr.mxu0 0.0
  %920 = vmatpush1.msra.mxu0 %v62
  %921 = vmatprep.subr.mxu0 0.0
  %922 = vmatpush2.msra.mxu0 0.0
  %923 = vmatprep.subr.mxu0 0.0
  %924 = vmatpush2.msra.mxu0 0.0
  %925 = vmatprep.subr.mxu0 0.0
  %926 = vmatpush2.msra.mxu0 0.0
  %927 = vmatprep.subr.mxu0 0.0
  %928 = vmatpush2.msra.mxu0 0.0
  %929 = vmatprep.subr.mxu0 0.0
  %930 = vmatpush2.msra.mxu0 0.0
  %931 = vmatprep.subr.mxu0 0.0
  %932 = vmatpush2.msra.mxu0 0.0
  %933 = vmatprep.subr.mxu0 0.0
  %934 = vmatpush2.msra.mxu0 0.0
  %935 = vmatprep.subr.mxu0 0.0
  %936 = vmatpush2.msra.mxu0 0.0
  %937 = vmatprep.subr.mxu0 0.0
  %938 = vmatpush2.msra.mxu0 0.0
  %939 = vmatprep.subr.mxu0 0.0
  %940 = vmatpush2.msra.mxu0 0.0
  %941 = vmatprep.subr.mxu0 0.0
  %942 = vmatpush2.msra.mxu0 0.0
  %943 = vmatprep.subr.mxu0 0.0
  %944 = vmatpush2.msra.mxu0 0.0
  %945 = vmatprep.subr.mxu0 0.0
  %946 = vmatpush2.msra.mxu0 0.0
  %947 = vmatprep.subr.mxu0 0.0
  %948 = vmatpush2.msra.mxu0 0.0
  %949 = vmatprep.subr.mxu0 0.0
  %950 = vmatpush2.msra.mxu0 0.0
  %951 = vmatprep.subr.mxu0 0.0
  %952 = vmatpush2.msra.mxu0 0.0
  %953 = vmatprep.mubr.f32.mxu0 0.0
  %954 = vmatmul.mubr.f32.gmra.mxu0 %v887
  %v955 = vpop.f32.mrf.mxu0
  %v956 = vadd.f32 0.0, %v955
  %v957 = vpop.f32.mrf.mxu0
  %958 = vdwg.mxu0
  %v960 = vrot.slane %v956, 3
  %v961 = vrot.slane %v956, 4
  %v964 = vadd.f32 %v187, %v960
  %v965 = vadd.f32 %v192, %v961
  %v966 = vxor.u32 %v964, 2147483648
  %v967 = vxor.u32 %v965, 2147483648
  %v968 = vmul.f32 %v966, 1.442695
  %v969 = vpow.pop %v968
  %v970 = vmul.f32 %v967, 1.442695
  %v971 = vpow.pop %v970
  %v972 = vadd.f32 %v969, 1.0
  %v973 = vadd.f32 %v971, 1.0
  %v974 = vrcp.pop %v972
  %v975 = vmul.f32 1.0, %v974
  %v976 = vrcp.pop %v973
  %v977 = vmul.f32 1.0, %v976
  %v978 = vtanh.pop %v964
  %v979 = vtanh.pop %v965
  %v982 = vrot.slane %v866, 7
  %v983 = vrot.slane %v867, 7
  %v986 = vmul.f32 %v975, %v982
  %v987 = vmul.f32 %v977, %v983
  %990 = vrot.lane.b32.xlu0 %v978, 64
  %v991 = vpop.permute.xlu0 %990
  %992 = vrot.lane.b32.xlu0 %v979, 64
  %v993 = vpop.permute.xlu0 %992
  %v996 = vmul.f32 %v975, %v991
  %v997 = vmul.f32 %v977, %v993
  %1000 = vrot.lane.b32.xlu0 %v996, 32
  %v1001 = vpop.permute.xlu0 %1000
  %1002 = vrot.lane.b32.xlu0 %v997, 32
  %v1003 = vpop.permute.xlu0 %1002
  %v1006 = vadd.f32 %v986, %v1001
  %v1007 = vadd.f32 %v987, %v1003
  %v1008 = vtanh.pop %v1006
  %v1009 = vtanh.pop %v1007
  %1012 = vrot.lane.b32.xlu0 %v1008, 64
  %v1013 = vpop.permute.xlu0 %1012
  %1014 = vrot.lane.b32.xlu0 %v1009, 64
  %v1015 = vpop.permute.xlu0 %1014
  %v1018 = vmul.f32 %v975, %v1013
  %v1019 = vmul.f32 %v977, %v1015
  %v1022 = vrot.slane %v1018, 5
  %v1023 = vrot.slane %v1019, 4
  %v1024 = vsel %vm325, %v1023, %v1022
  %1025 = vrot.lane.b32.xlu0 %v1024, 32
  %v1026 = vpop.permute.xlu0 %1025
  %v1027 = vsel %vm113, %v1026, 0
  %1029 = vmatprep.subr.mxu0 0.0
  %1030 = vmatpush1.msra.mxu0 0.0
  %1031 = vmatprep.subr.mxu0 0.0
  %1032 = vmatpush1.msra.mxu0 0.0
  %1033 = vmatprep.subr.mxu0 0.0
  %1034 = vmatpush1.msra.mxu0 0.0
  %1035 = vmatprep.subr.mxu0 0.0
  %1036 = vmatpush1.msra.mxu0 0.0
  %1037 = vmatprep.subr.mxu0 0.0
  %1038 = vmatpush1.msra.mxu0 0.0
  %1039 = vmatprep.subr.mxu0 0.0
  %1040 = vmatpush1.msra.mxu0 0.0
  %1041 = vmatprep.subr.mxu0 0.0
  %1042 = vmatpush1.msra.mxu0 0.0
  %1043 = vmatprep.subr.mxu0 0.0
  %1044 = vmatpush1.msra.mxu0 0.0
  %1045 = vmatprep.subr.mxu0 0.0
  %1046 = vmatpush1.msra.mxu0 0.0
  %1047 = vmatprep.subr.mxu0 0.0
  %1048 = vmatpush1.msra.mxu0 0.0
  %1049 = vmatprep.subr.mxu0 0.0
  %1050 = vmatpush1.msra.mxu0 0.0
  %1051 = vmatprep.subr.mxu0 0.0
  %1052 = vmatpush1.msra.mxu0 0.0
  %1053 = vmatprep.subr.mxu0 0.0
  %1054 = vmatpush1.msra.mxu0 %v65
  %1055 = vmatprep.subr.mxu0 0.0
  %1056 = vmatpush1.msra.mxu0 %v64
  %1057 = vmatprep.subr.mxu0 0.0
  %1058 = vmatpush1.msra.mxu0 %v63
  %1059 = vmatprep.subr.mxu0 0.0
  %1060 = vmatpush1.msra.mxu0 %v62
  %1061 = vmatprep.subr.mxu0 0.0
  %1062 = vmatpush2.msra.mxu0 0.0
  %1063 = vmatprep.subr.mxu0 0.0
  %1064 = vmatpush2.msra.mxu0 0.0
  %1065 = vmatprep.subr.mxu0 0.0
  %1066 = vmatpush2.msra.mxu0 0.0
  %1067 = vmatprep.subr.mxu0 0.0
  %1068 = vmatpush2.msra.mxu0 0.0
  %1069 = vmatprep.subr.mxu0 0.0
  %1070 = vmatpush2.msra.mxu0 0.0
  %1071 = vmatprep.subr.mxu0 0.0
  %1072 = vmatpush2.msra.mxu0 0.0
  %1073 = vmatprep.subr.mxu0 0.0
  %1074 = vmatpush2.msra.mxu0 0.0
  %1075 = vmatprep.subr.mxu0 0.0
  %1076 = vmatpush2.msra.mxu0 0.0
  %1077 = vmatprep.subr.mxu0 0.0
  %1078 = vmatpush2.msra.mxu0 0.0
  %1079 = vmatprep.subr.mxu0 0.0
  %1080 = vmatpush2.msra.mxu0 0.0
  %1081 = vmatprep.subr.mxu0 0.0
  %1082 = vmatpush2.msra.mxu0 0.0
  %1083 = vmatprep.subr.mxu0 0.0
  %1084 = vmatpush2.msra.mxu0 0.0
  %1085 = vmatprep.subr.mxu0 0.0
  %1086 = vmatpush2.msra.mxu0 0.0
  %1087 = vmatprep.subr.mxu0 0.0
  %1088 = vmatpush2.msra.mxu0 0.0
  %1089 = vmatprep.subr.mxu0 0.0
  %1090 = vmatpush2.msra.mxu0 0.0
  %1091 = vmatprep.subr.mxu0 0.0
  %1092 = vmatpush2.msra.mxu0 0.0
  %1093 = vmatprep.mubr.f32.mxu0 0.0
  %1094 = vmatmul.mubr.f32.gmra.mxu0 %v1027
  %v1095 = vpop.f32.mrf.mxu0
  %v1096 = vadd.f32 0.0, %v1095
  %v1097 = vpop.f32.mrf.mxu0
  %1098 = vdwg.mxu0
  %v1100 = vrot.slane %v1096, 2
  %v1101 = vrot.slane %v1096, 3
  %v1104 = vadd.f32 %v187, %v1100
  %v1105 = vadd.f32 %v192, %v1101
  %v1106 = vxor.u32 %v1104, 2147483648
  %v1107 = vxor.u32 %v1105, 2147483648
  %v1108 = vmul.f32 %v1106, 1.442695
  %v1109 = vpow.pop %v1108
  %v1110 = vmul.f32 %v1107, 1.442695
  %v1111 = vpow.pop %v1110
  %v1112 = vadd.f32 %v1109, 1.0
  %v1113 = vadd.f32 %v1111, 1.0
  %v1114 = vrcp.pop %v1112
  %v1115 = vmul.f32 1.0, %v1114
  %v1116 = vrcp.pop %v1113
  %v1117 = vmul.f32 1.0, %v1116
  %v1118 = vtanh.pop %v1104
  %v1119 = vtanh.pop %v1105
  %v1122 = vrot.slane %v1006, 7
  %v1123 = vrot.slane %v1007, 7
  %v1126 = vmul.f32 %v1115, %v1122
  %v1127 = vmul.f32 %v1117, %v1123
  %1130 = vrot.lane.b32.xlu0 %v1118, 64
  %v1131 = vpop.permute.xlu0 %1130
  %1132 = vrot.lane.b32.xlu0 %v1119, 64
  %v1133 = vpop.permute.xlu0 %1132
  %v1136 = vmul.f32 %v1115, %v1131
  %v1137 = vmul.f32 %v1117, %v1133
  %1140 = vrot.lane.b32.xlu0 %v1136, 32
  %v1141 = vpop.permute.xlu0 %1140
  %1142 = vrot.lane.b32.xlu0 %v1137, 32
  %v1143 = vpop.permute.xlu0 %1142
  %v1146 = vadd.f32 %v1126, %v1141
  %v1147 = vadd.f32 %v1127, %v1143
  %v1148 = vtanh.pop %v1146
  %v1149 = vtanh.pop %v1147
  %1152 = vrot.lane.b32.xlu0 %v1148, 64
  %v1153 = vpop.permute.xlu0 %1152
  %1154 = vrot.lane.b32.xlu0 %v1149, 64
  %v1155 = vpop.permute.xlu0 %1154
  %v1158 = vmul.f32 %v1115, %v1153
  %v1159 = vmul.f32 %v1117, %v1155
  %v1162 = vrot.slane %v1158, 6
  %v1163 = vrot.slane %v1159, 5
  %v1164 = vsel %vm325, %v1163, %v1162
  %1165 = vrot.lane.b32.xlu0 %v1164, 32
  %v1166 = vpop.permute.xlu0 %1165
  %v1167 = vsel %vm113, %v1166, 0
  %1169 = vmatprep.subr.mxu0 0.0
  %1170 = vmatpush1.msra.mxu0 0.0
  %1171 = vmatprep.subr.mxu0 0.0
  %1172 = vmatpush1.msra.mxu0 0.0
  %1173 = vmatprep.subr.mxu0 0.0
  %1174 = vmatpush1.msra.mxu0 0.0
  %1175 = vmatprep.subr.mxu0 0.0
  %1176 = vmatpush1.msra.mxu0 0.0
  %1177 = vmatprep.subr.mxu0 0.0
  %1178 = vmatpush1.msra.mxu0 0.0
  %1179 = vmatprep.subr.mxu0 0.0
  %1180 = vmatpush1.msra.mxu0 0.0
  %1181 = vmatprep.subr.mxu0 0.0
  %1182 = vmatpush1.msra.mxu0 0.0
  %1183 = vmatprep.subr.mxu0 0.0
  %1184 = vmatpush1.msra.mxu0 0.0
  %1185 = vmatprep.subr.mxu0 0.0
  %1186 = vmatpush1.msra.mxu0 0.0
  %1187 = vmatprep.subr.mxu0 0.0
  %1188 = vmatpush1.msra.mxu0 0.0
  %1189 = vmatprep.subr.mxu0 0.0
  %1190 = vmatpush1.msra.mxu0 0.0
  %1191 = vmatprep.subr.mxu0 0.0
  %1192 = vmatpush1.msra.mxu0 0.0
  %1193 = vmatprep.subr.mxu0 0.0
  %1194 = vmatpush1.msra.mxu0 %v65
  %1195 = vmatprep.subr.mxu0 0.0
  %1196 = vmatpush1.msra.mxu0 %v64
  %1197 = vmatprep.subr.mxu0 0.0
  %1198 = vmatpush1.msra.mxu0 %v63
  %1199 = vmatprep.subr.mxu0 0.0
  %1200 = vmatpush1.msra.mxu0 %v62
  %1201 = vmatprep.subr.mxu0 0.0
  %1202 = vmatpush2.msra.mxu0 0.0
  %1203 = vmatprep.subr.mxu0 0.0
  %1204 = vmatpush2.msra.mxu0 0.0
  %1205 = vmatprep.subr.mxu0 0.0
  %1206 = vmatpush2.msra.mxu0 0.0
  %1207 = vmatprep.subr.mxu0 0.0
  %1208 = vmatpush2.msra.mxu0 0.0
  %1209 = vmatprep.subr.mxu0 0.0
  %1210 = vmatpush2.msra.mxu0 0.0
  %1211 = vmatprep.subr.mxu0 0.0
  %1212 = vmatpush2.msra.mxu0 0.0
  %1213 = vmatprep.subr.mxu0 0.0
  %1214 = vmatpush2.msra.mxu0 0.0
  %1215 = vmatprep.subr.mxu0 0.0
  %1216 = vmatpush2.msra.mxu0 0.0
  %1217 = vmatprep.subr.mxu0 0.0
  %1218 = vmatpush2.msra.mxu0 0.0
  %1219 = vmatprep.subr.mxu0 0.0
  %1220 = vmatpush2.msra.mxu0 0.0
  %1221 = vmatprep.subr.mxu0 0.0
  %1222 = vmatpush2.msra.mxu0 0.0
  %1223 = vmatprep.subr.mxu0 0.0
  %1224 = vmatpush2.msra.mxu0 0.0
  %1225 = vmatprep.subr.mxu0 0.0
  %1226 = vmatpush2.msra.mxu0 0.0
  %1227 = vmatprep.subr.mxu0 0.0
  %1228 = vmatpush2.msra.mxu0 0.0
  %1229 = vmatprep.subr.mxu0 0.0
  %1230 = vmatpush2.msra.mxu0 0.0
  %1231 = vmatprep.subr.mxu0 0.0
  %1232 = vmatpush2.msra.mxu0 0.0
  %1233 = vmatprep.mubr.f32.mxu0 0.0
  %1234 = vmatmul.mubr.f32.gmra.mxu0 %v1167
  %v1235 = vpop.f32.mrf.mxu0
  %v1236 = vadd.f32 0.0, %v1235
  %v1237 = vpop.f32.mrf.mxu0
  %1238 = vdwg.mxu0
  %v1240 = vrot.slane %v1236, 1
  %v1241 = vrot.slane %v1236, 2
  %v1244 = vadd.f32 %v187, %v1240
  %v1245 = vadd.f32 %v192, %v1241
  %v1246 = vxor.u32 %v1244, 2147483648
  %v1247 = vxor.u32 %v1245, 2147483648
  %v1248 = vmul.f32 %v1246, 1.442695
  %v1249 = vpow.pop %v1248
  %v1250 = vmul.f32 %v1247, 1.442695
  %v1251 = vpow.pop %v1250
  %v1252 = vadd.f32 %v1249, 1.0
  %v1253 = vadd.f32 %v1251, 1.0
  %v1254 = vrcp.pop %v1252
  %v1255 = vmul.f32 1.0, %v1254
  %v1256 = vrcp.pop %v1253
  %v1257 = vmul.f32 1.0, %v1256
  %v1258 = vtanh.pop %v1244
  %v1259 = vtanh.pop %v1245
  %v1262 = vrot.slane %v1146, 7
  %v1263 = vrot.slane %v1147, 7
  %v1266 = vmul.f32 %v1255, %v1262
  %v1267 = vmul.f32 %v1257, %v1263
  %1270 = vrot.lane.b32.xlu0 %v1258, 64
  %v1271 = vpop.permute.xlu0 %1270
  %1272 = vrot.lane.b32.xlu0 %v1259, 64
  %v1273 = vpop.permute.xlu0 %1272
  %v1276 = vmul.f32 %v1255, %v1271
  %v1277 = vmul.f32 %v1257, %v1273
  %1280 = vrot.lane.b32.xlu0 %v1276, 32
  %v1281 = vpop.permute.xlu0 %1280
  %1282 = vrot.lane.b32.xlu0 %v1277, 32
  %v1283 = vpop.permute.xlu0 %1282
  %v1286 = vadd.f32 %v1266, %v1281
  %v1287 = vadd.f32 %v1267, %v1283
  %v1288 = vtanh.pop %v1286
  %v1289 = vtanh.pop %v1287
  %1292 = vrot.lane.b32.xlu0 %v1288, 64
  %v1293 = vpop.permute.xlu0 %1292
  %1294 = vrot.lane.b32.xlu0 %v1289, 64
  %v1295 = vpop.permute.xlu0 %1294
  %v1298 = vmul.f32 %v1255, %v1293
  %v1299 = vmul.f32 %v1257, %v1295
  %v1300 = vld [vmem:[%s1] sm:$0xff]
  %v1301 = vld [vmem:[%s1 + $0x8] sm:$0xff]
  %v1303 = vlaneseq
  %v1304 = vshrl.u32 %v1303, 7
  %v1305 = vsub.s32 0, %v1304
  %v1306 = vrot.slane %v73, %v1305
  %vm1308 = vcmask 130048
  %v1310 = vsel %vm1308, %v1300, 0
  %v1313 = vsel %vm1308, %v1301, 0
  %1315 = vmatprep.subr.mxu0 0.0
  %1316 = vmatpush1.msra.mxu0 0.0
  %1317 = vmatprep.subr.mxu0 0.0
  %1318 = vmatpush1.msra.mxu0 0.0
  %1319 = vmatprep.subr.mxu0 0.0
  %1320 = vmatpush1.msra.mxu0 0.0
  %1321 = vmatprep.subr.mxu0 0.0
  %1322 = vmatpush1.msra.mxu0 0.0
  %1323 = vmatprep.subr.mxu0 0.0
  %1324 = vmatpush1.msra.mxu0 0.0
  %1325 = vmatprep.subr.mxu0 0.0
  %1326 = vmatpush1.msra.mxu0 0.0
  %1327 = vmatprep.subr.mxu0 0.0
  %1328 = vmatpush1.msra.mxu0 0.0
  %1329 = vmatprep.subr.mxu0 0.0
  %1330 = vmatpush1.msra.mxu0 0.0
  %1331 = vmatprep.subr.mxu0 0.0
  %1332 = vmatpush1.msra.mxu0 0.0
  %1333 = vmatprep.subr.mxu0 0.0
  %1334 = vmatpush1.msra.mxu0 0.0
  %1335 = vmatprep.subr.mxu0 0.0
  %1336 = vmatpush1.msra.mxu0 0.0
  %1337 = vmatprep.subr.mxu0 0.0
  %1338 = vmatpush1.msra.mxu0 0.0
  %1339 = vmatprep.subr.mxu0 0.0
  %1340 = vmatpush1.msra.mxu0 0.0
  %1341 = vmatprep.subr.mxu0 0.0
  %1342 = vmatpush1.msra.mxu0 0.0
  %1343 = vmatprep.subr.mxu0 0.0
  %1344 = vmatpush1.msra.mxu0 %v68
  %1345 = vmatprep.subr.mxu0 0.0
  %1346 = vmatpush1.msra.mxu0 %v67
  %1347 = vmatprep.subr.mxu0 0.0
  %1348 = vmatpush2.msra.mxu0 0.0
  %1349 = vmatprep.subr.mxu0 0.0
  %1350 = vmatpush2.msra.mxu0 0.0
  %1351 = vmatprep.subr.mxu0 0.0
  %1352 = vmatpush2.msra.mxu0 0.0
  %1353 = vmatprep.subr.mxu0 0.0
  %1354 = vmatpush2.msra.mxu0 0.0
  %1355 = vmatprep.subr.mxu0 0.0
  %1356 = vmatpush2.msra.mxu0 0.0
  %1357 = vmatprep.subr.mxu0 0.0
  %1358 = vmatpush2.msra.mxu0 0.0
  %1359 = vmatprep.subr.mxu0 0.0
  %1360 = vmatpush2.msra.mxu0 0.0
  %1361 = vmatprep.subr.mxu0 0.0
  %1362 = vmatpush2.msra.mxu0 0.0
  %1363 = vmatprep.subr.mxu0 0.0
  %1364 = vmatpush2.msra.mxu0 0.0
  %1365 = vmatprep.subr.mxu0 0.0
  %1366 = vmatpush2.msra.mxu0 0.0
  %1367 = vmatprep.subr.mxu0 0.0
  %1368 = vmatpush2.msra.mxu0 0.0
  %1369 = vmatprep.subr.mxu0 0.0
  %1370 = vmatpush2.msra.mxu0 0.0
  %1371 = vmatprep.subr.mxu0 0.0
  %1372 = vmatpush2.msra.mxu0 0.0
  %1373 = vmatprep.subr.mxu0 0.0
  %1374 = vmatpush2.msra.mxu0 0.0
  %1375 = vmatprep.subr.mxu0 0.0
  %1376 = vmatpush2.msra.mxu0 0.0
  %1377 = vmatprep.subr.mxu0 0.0
  %1378 = vmatpush2.msra.mxu0 0.0
  %1379 = vmatprep.mubr.f32.mxu0 0.0
  %1380 = vmatmul.mubr.f32.gmra.mxu0 %v1310
  %v1381 = vpop.f32.mrf.mxu0
  %v1382 = vadd.f32 %v1306, %v1381
  %v1383 = vpop.f32.mrf.mxu0
  %1384 = vmatprep.mubr.f32.mxu0 0.0
  %1385 = vmatmul.mubr.f32.gmra.mxu0 %v1313
  %v1386 = vpop.f32.mrf.mxu0
  %v1387 = vadd.f32 %v1306, %v1386
  %v1388 = vpop.f32.mrf.mxu0
  %1389 = vdwg.mxu0
  %1390 = vmatprep.subr.mxu0 0.0
  %1391 = vmatpush1.msra.mxu0 0.0
  %1392 = vmatprep.subr.mxu0 0.0
  %1393 = vmatpush1.msra.mxu0 0.0
  %1394 = vmatprep.subr.mxu0 0.0
  %1395 = vmatpush1.msra.mxu0 0.0
  %1396 = vmatprep.subr.mxu0 0.0
  %1397 = vmatpush1.msra.mxu0 0.0
  %1398 = vmatprep.subr.mxu0 0.0
  %1399 = vmatpush1.msra.mxu0 0.0
  %1400 = vmatprep.subr.mxu0 0.0
  %1401 = vmatpush1.msra.mxu0 0.0
  %1402 = vmatprep.subr.mxu0 0.0
  %1403 = vmatpush1.msra.mxu0 0.0
  %1404 = vmatprep.subr.mxu0 0.0
  %1405 = vmatpush1.msra.mxu0 0.0
  %1406 = vmatprep.subr.mxu0 0.0
  %1407 = vmatpush1.msra.mxu0 0.0
  %1408 = vmatprep.subr.mxu0 0.0
  %1409 = vmatpush1.msra.mxu0 0.0
  %1410 = vmatprep.subr.mxu0 0.0
  %1411 = vmatpush1.msra.mxu0 0.0
  %1412 = vmatprep.subr.mxu0 0.0
  %1413 = vmatpush1.msra.mxu0 0.0
  %1414 = vmatprep.subr.mxu0 0.0
  %1415 = vmatpush1.msra.mxu0 %v72
  %1416 = vmatprep.subr.mxu0 0.0
  %1417 = vmatpush1.msra.mxu0 %v71
  %1418 = vmatprep.subr.mxu0 0.0
  %1419 = vmatpush1.msra.mxu0 %v70
  %1420 = vmatprep.subr.mxu0 0.0
  %1421 = vmatpush1.msra.mxu0 %v69
  %1422 = vmatprep.subr.mxu0 0.0
  %1423 = vmatpush2.msra.mxu0 0.0
  %1424 = vmatprep.subr.mxu0 0.0
  %1425 = vmatpush2.msra.mxu0 0.0
  %1426 = vmatprep.subr.mxu0 0.0
  %1427 = vmatpush2.msra.mxu0 0.0
  %1428 = vmatprep.subr.mxu0 0.0
  %1429 = vmatpush2.msra.mxu0 0.0
  %1430 = vmatprep.subr.mxu0 0.0
  %1431 = vmatpush2.msra.mxu0 0.0
  %1432 = vmatprep.subr.mxu0 0.0
  %1433 = vmatpush2.msra.mxu0 0.0
  %1434 = vmatprep.subr.mxu0 0.0
  %1435 = vmatpush2.msra.mxu0 0.0
  %1436 = vmatprep.subr.mxu0 0.0
  %1437 = vmatpush2.msra.mxu0 0.0
  %1438 = vmatprep.subr.mxu0 0.0
  %1439 = vmatpush2.msra.mxu0 0.0
  %1440 = vmatprep.subr.mxu0 0.0
  %1441 = vmatpush2.msra.mxu0 0.0
  %1442 = vmatprep.subr.mxu0 0.0
  %1443 = vmatpush2.msra.mxu0 0.0
  %1444 = vmatprep.subr.mxu0 0.0
  %1445 = vmatpush2.msra.mxu0 0.0
  %1446 = vmatprep.subr.mxu0 0.0
  %1447 = vmatpush2.msra.mxu0 0.0
  %1448 = vmatprep.subr.mxu0 0.0
  %1449 = vmatpush2.msra.mxu0 0.0
  %1450 = vmatprep.subr.mxu0 0.0
  %1451 = vmatpush2.msra.mxu0 0.0
  %1452 = vmatprep.subr.mxu0 0.0
  %1453 = vmatpush2.msra.mxu0 0.0
  %1454 = vmatprep.mubr.f32.mxu0 0.0
  %1455 = vmatmul.mubr.f32.gmra.mxu0 %v196
  %v1456 = vpop.f32.mrf.mxu0
  %v1457 = vadd.f32 0.0, %v1456
  %v1458 = vpop.f32.mrf.mxu0
  %1459 = vdwg.mxu0
  %v1461 = vrot.slane %v1457, 1
  %v1464 = vadd.f32 %v1382, %v1457
  %v1465 = vadd.f32 %v1387, %v1461
  %v1466 = vxor.u32 %v1464, 2147483648
  %v1467 = vxor.u32 %v1465, 2147483648
  %v1468 = vmul.f32 %v1466, 1.442695
  %v1469 = vpow.pop %v1468
  %v1470 = vmul.f32 %v1467, 1.442695
  %v1471 = vpow.pop %v1470
  %v1472 = vadd.f32 %v1469, 1.0
  %v1473 = vadd.f32 %v1471, 1.0
  %v1474 = vrcp.pop %v1472
  %v1475 = vmul.f32 1.0, %v1474
  %v1476 = vrcp.pop %v1473
  %v1477 = vmul.f32 1.0, %v1476
  %v1478 = vtanh.pop %v1464
  %v1479 = vtanh.pop %v1465
  %v1480 = vmul.f32 %v1475, 0.0
  %v1481 = vmul.f32 %v1477, 0.0
  %1484 = vrot.lane.b32.xlu0 %v1478, 64
  %v1485 = vpop.permute.xlu0 %1484
  %1486 = vrot.lane.b32.xlu0 %v1479, 64
  %v1487 = vpop.permute.xlu0 %1486
  %v1490 = vmul.f32 %v1475, %v1485
  %v1491 = vmul.f32 %v1477, %v1487
  %1494 = vrot.lane.b32.xlu0 %v1490, 32
  %v1495 = vpop.permute.xlu0 %1494
  %1496 = vrot.lane.b32.xlu0 %v1491, 32
  %v1497 = vpop.permute.xlu0 %1496
  %v1500 = vadd.f32 %v1480, %v1495
  %v1501 = vadd.f32 %v1481, %v1497
  %v1502 = vtanh.pop %v1500
  %v1503 = vtanh.pop %v1501
  %1506 = vrot.lane.b32.xlu0 %v1502, 64
  %v1507 = vpop.permute.xlu0 %1506
  %1508 = vrot.lane.b32.xlu0 %v1503, 64
  %v1509 = vpop.permute.xlu0 %1508
  %v1512 = vmul.f32 %v1475, %v1507
  %v1513 = vmul.f32 %v1477, %v1509
  %v1516 = vrot.slane %v1513, 7
  %v1517 = vsel %vm325, %v1516, %v1512
  %1518 = vrot.lane.b32.xlu0 %v1517, 32
  %v1519 = vpop.permute.xlu0 %1518
  %v1520 = vsel %vm113, %v1519, 0
  %1522 = vmatprep.subr.mxu0 0.0
  %1523 = vmatpush1.msra.mxu0 0.0
  %1524 = vmatprep.subr.mxu0 0.0
  %1525 = vmatpush1.msra.mxu0 0.0
  %1526 = vmatprep.subr.mxu0 0.0
  %1527 = vmatpush1.msra.mxu0 0.0
  %1528 = vmatprep.subr.mxu0 0.0
  %1529 = vmatpush1.msra.mxu0 0.0
  %1530 = vmatprep.subr.mxu0 0.0
  %1531 = vmatpush1.msra.mxu0 0.0
  %1532 = vmatprep.subr.mxu0 0.0
  %1533 = vmatpush1.msra.mxu0 0.0
  %1534 = vmatprep.subr.mxu0 0.0
  %1535 = vmatpush1.msra.mxu0 0.0
  %1536 = vmatprep.subr.mxu0 0.0
  %1537 = vmatpush1.msra.mxu0 0.0
  %1538 = vmatprep.subr.mxu0 0.0
  %1539 = vmatpush1.msra.mxu0 0.0
  %1540 = vmatprep.subr.mxu0 0.0
  %1541 = vmatpush1.msra.mxu0 0.0
  %1542 = vmatprep.subr.mxu0 0.0
  %1543 = vmatpush1.msra.mxu0 0.0
  %1544 = vmatprep.subr.mxu0 0.0
  %1545 = vmatpush1.msra.mxu0 0.0
  %1546 = vmatprep.subr.mxu0 0.0
  %1547 = vmatpush1.msra.mxu0 %v72
  %1548 = vmatprep.subr.mxu0 0.0
  %1549 = vmatpush1.msra.mxu0 %v71
  %1550 = vmatprep.subr.mxu0 0.0
  %1551 = vmatpush1.msra.mxu0 %v70
  %1552 = vmatprep.subr.mxu0 0.0
  %1553 = vmatpush1.msra.mxu0 %v69
  %1554 = vmatprep.subr.mxu0 0.0
  %1555 = vmatpush2.msra.mxu0 0.0
  %1556 = vmatprep.subr.mxu0 0.0
  %1557 = vmatpush2.msra.mxu0 0.0
  %1558 = vmatprep.subr.mxu0 0.0
  %1559 = vmatpush2.msra.mxu0 0.0
  %1560 = vmatprep.subr.mxu0 0.0
  %1561 = vmatpush2.msra.mxu0 0.0
  %1562 = vmatprep.subr.mxu0 0.0
  %1563 = vmatpush2.msra.mxu0 0.0
  %1564 = vmatprep.subr.mxu0 0.0
  %1565 = vmatpush2.msra.mxu0 0.0
  %1566 = vmatprep.subr.mxu0 0.0
  %1567 = vmatpush2.msra.mxu0 0.0
  %1568 = vmatprep.subr.mxu0 0.0
  %1569 = vmatpush2.msra.mxu0 0.0
  %1570 = vmatprep.subr.mxu0 0.0
  %1571 = vmatpush2.msra.mxu0 0.0
  %1572 = vmatprep.subr.mxu0 0.0
  %1573 = vmatpush2.msra.mxu0 0.0
  %1574 = vmatprep.subr.mxu0 0.0
  %1575 = vmatpush2.msra.mxu0 0.0
  %1576 = vmatprep.subr.mxu0 0.0
  %1577 = vmatpush2.msra.mxu0 0.0
  %1578 = vmatprep.subr.mxu0 0.0
  %1579 = vmatpush2.msra.mxu0 0.0
  %1580 = vmatprep.subr.mxu0 0.0
  %1581 = vmatpush2.msra.mxu0 0.0
  %1582 = vmatprep.subr.mxu0 0.0
  %1583 = vmatpush2.msra.mxu0 0.0
  %1584 = vmatprep.subr.mxu0 0.0
  %1585 = vmatpush2.msra.mxu0 0.0
  %1586 = vmatprep.mubr.f32.mxu0 0.0
  %1587 = vmatmul.mubr.f32.gmra.mxu0 %v1520
  %v1588 = vpop.f32.mrf.mxu0
  %v1589 = vadd.f32 0.0, %v1588
  %v1590 = vpop.f32.mrf.mxu0
  %1591 = vdwg.mxu0
  %v1593 = vrot.slane %v1589, 7
  %v1596 = vadd.f32 %v1382, %v1593
  %v1597 = vadd.f32 %v1387, %v1589
  %v1598 = vxor.u32 %v1596, 2147483648
  %v1599 = vxor.u32 %v1597, 2147483648
  %v1600 = vmul.f32 %v1598, 1.442695
  %v1601 = vpow.pop %v1600
  %v1602 = vmul.f32 %v1599, 1.442695
  %v1603 = vpow.pop %v1602
  %v1604 = vadd.f32 %v1601, 1.0
  %v1605 = vadd.f32 %v1603, 1.0
  %v1606 = vrcp.pop %v1604
  %v1607 = vmul.f32 1.0, %v1606
  %v1608 = vrcp.pop %v1605
  %v1609 = vmul.f32 1.0, %v1608
  %v1610 = vtanh.pop %v1596
  %v1611 = vtanh.pop %v1597
  %v1614 = vrot.slane %v1500, 7
  %v1615 = vrot.slane %v1501, 7
  %v1618 = vmul.f32 %v1607, %v1614
  %v1619 = vmul.f32 %v1609, %v1615
  %1622 = vrot.lane.b32.xlu0 %v1610, 64
  %v1623 = vpop.permute.xlu0 %1622
  %1624 = vrot.lane.b32.xlu0 %v1611, 64
  %v1625 = vpop.permute.xlu0 %1624
  %v1628 = vmul.f32 %v1607, %v1623
  %v1629 = vmul.f32 %v1609, %v1625
  %1632 = vrot.lane.b32.xlu0 %v1628, 32
  %v1633 = vpop.permute.xlu0 %1632
  %1634 = vrot.lane.b32.xlu0 %v1629, 32
  %v1635 = vpop.permute.xlu0 %1634
  %v1638 = vadd.f32 %v1618, %v1633
  %v1639 = vadd.f32 %v1619, %v1635
  %v1640 = vtanh.pop %v1638
  %v1641 = vtanh.pop %v1639
  %1644 = vrot.lane.b32.xlu0 %v1640, 64
  %v1645 = vpop.permute.xlu0 %1644
  %1646 = vrot.lane.b32.xlu0 %v1641, 64
  %v1647 = vpop.permute.xlu0 %1646
  %v1650 = vmul.f32 %v1607, %v1645
  %v1651 = vmul.f32 %v1609, %v1647
  %v1654 = vrot.slane %v1650, 1
  %v1655 = vsel %vm325, %v1651, %v1654
  %1656 = vrot.lane.b32.xlu0 %v1655, 32
  %v1657 = vpop.permute.xlu0 %1656
  %v1658 = vsel %vm113, %v1657, 0
  %1660 = vmatprep.subr.mxu0 0.0
  %1661 = vmatpush1.msra.mxu0 0.0
  %1662 = vmatprep.subr.mxu0 0.0
  %1663 = vmatpush1.msra.mxu0 0.0
  %1664 = vmatprep.subr.mxu0 0.0
  %1665 = vmatpush1.msra.mxu0 0.0
  %1666 = vmatprep.subr.mxu0 0.0
  %1667 = vmatpush1.msra.mxu0 0.0
  %1668 = vmatprep.subr.mxu0 0.0
  %1669 = vmatpush1.msra.mxu0 0.0
  %1670 = vmatprep.subr.mxu0 0.0
  %1671 = vmatpush1.msra.mxu0 0.0
  %1672 = vmatprep.subr.mxu0 0.0
  %1673 = vmatpush1.msra.mxu0 0.0
  %1674 = vmatprep.subr.mxu0 0.0
  %1675 = vmatpush1.msra.mxu0 0.0
  %1676 = vmatprep.subr.mxu0 0.0
  %1677 = vmatpush1.msra.mxu0 0.0
  %1678 = vmatprep.subr.mxu0 0.0
  %1679 = vmatpush1.msra.mxu0 0.0
  %1680 = vmatprep.subr.mxu0 0.0
  %1681 = vmatpush1.msra.mxu0 0.0
  %1682 = vmatprep.subr.mxu0 0.0
  %1683 = vmatpush1.msra.mxu0 0.0
  %1684 = vmatprep.subr.mxu0 0.0
  %1685 = vmatpush1.msra.mxu0 %v72
  %1686 = vmatprep.subr.mxu0 0.0
  %1687 = vmatpush1.msra.mxu0 %v71
  %1688 = vmatprep.subr.mxu0 0.0
  %1689 = vmatpush1.msra.mxu0 %v70
  %1690 = vmatprep.subr.mxu0 0.0
  %1691 = vmatpush1.msra.mxu0 %v69
  %1692 = vmatprep.subr.mxu0 0.0
  %1693 = vmatpush2.msra.mxu0 0.0
  %1694 = vmatprep.subr.mxu0 0.0
  %1695 = vmatpush2.msra.mxu0 0.0
  %1696 = vmatprep.subr.mxu0 0.0
  %1697 = vmatpush2.msra.mxu0 0.0
  %1698 = vmatprep.subr.mxu0 0.0
  %1699 = vmatpush2.msra.mxu0 0.0
  %1700 = vmatprep.subr.mxu0 0.0
  %1701 = vmatpush2.msra.mxu0 0.0
  %1702 = vmatprep.subr.mxu0 0.0
  %1703 = vmatpush2.msra.mxu0 0.0
  %1704 = vmatprep.subr.mxu0 0.0
  %1705 = vmatpush2.msra.mxu0 0.0
  %1706 = vmatprep.subr.mxu0 0.0
  %1707 = vmatpush2.msra.mxu0 0.0
  %1708 = vmatprep.subr.mxu0 0.0
  %1709 = vmatpush2.msra.mxu0 0.0
  %1710 = vmatprep.subr.mxu0 0.0
  %1711 = vmatpush2.msra.mxu0 0.0
  %1712 = vmatprep.subr.mxu0 0.0
  %1713 = vmatpush2.msra.mxu0 0.0
  %1714 = vmatprep.subr.mxu0 0.0
  %1715 = vmatpush2.msra.mxu0 0.0
  %1716 = vmatprep.subr.mxu0 0.0
  %1717 = vmatpush2.msra.mxu0 0.0
  %1718 = vmatprep.subr.mxu0 0.0
  %1719 = vmatpush2.msra.mxu0 0.0
  %1720 = vmatprep.subr.mxu0 0.0
  %1721 = vmatpush2.msra.mxu0 0.0
  %1722 = vmatprep.subr.mxu0 0.0
  %1723 = vmatpush2.msra.mxu0 0.0
  %1724 = vmatprep.mubr.f32.mxu0 0.0
  %1725 = vmatmul.mubr.f32.gmra.mxu0 %v1658
  %v1726 = vpop.f32.mrf.mxu0
  %v1727 = vadd.f32 0.0, %v1726
  %v1728 = vpop.f32.mrf.mxu0
  %1729 = vdwg.mxu0
  %v1731 = vrot.slane %v1727, 6
  %v1732 = vrot.slane %v1727, 7
  %v1735 = vadd.f32 %v1382, %v1731
  %v1736 = vadd.f32 %v1387, %v1732
  %v1737 = vxor.u32 %v1735, 2147483648
  %v1738 = vxor.u32 %v1736, 2147483648
  %v1739 = vmul.f32 %v1737, 1.442695
  %v1740 = vpow.pop %v1739
  %v1741 = vmul.f32 %v1738, 1.442695
  %v1742 = vpow.pop %v1741
  %v1743 = vadd.f32 %v1740, 1.0
  %v1744 = vadd.f32 %v1742, 1.0
  %v1745 = vrcp.pop %v1743
  %v1746 = vmul.f32 1.0, %v1745
  %v1747 = vrcp.pop %v1744
  %v1748 = vmul.f32 1.0, %v1747
  %v1749 = vtanh.pop %v1735
  %v1750 = vtanh.pop %v1736
  %v1753 = vrot.slane %v1638, 7
  %v1754 = vrot.slane %v1639, 7
  %v1757 = vmul.f32 %v1746, %v1753
  %v1758 = vmul.f32 %v1748, %v1754
  %1761 = vrot.lane.b32.xlu0 %v1749, 64
  %v1762 = vpop.permute.xlu0 %1761
  %1763 = vrot.lane.b32.xlu0 %v1750, 64
  %v1764 = vpop.permute.xlu0 %1763
  %v1767 = vmul.f32 %v1746, %v1762
  %v1768 = vmul.f32 %v1748, %v1764
  %1771 = vrot.lane.b32.xlu0 %v1767, 32
  %v1772 = vpop.permute.xlu0 %1771
  %1773 = vrot.lane.b32.xlu0 %v1768, 32
  %v1774 = vpop.permute.xlu0 %1773
  %v1777 = vadd.f32 %v1757, %v1772
  %v1778 = vadd.f32 %v1758, %v1774
  %v1779 = vtanh.pop %v1777
  %v1780 = vtanh.pop %v1778
  %1783 = vrot.lane.b32.xlu0 %v1779, 64
  %v1784 = vpop.permute.xlu0 %1783
  %1785 = vrot.lane.b32.xlu0 %v1780, 64
  %v1786 = vpop.permute.xlu0 %1785
  %v1789 = vmul.f32 %v1746, %v1784
  %v1790 = vmul.f32 %v1748, %v1786
  %v1793 = vrot.slane %v1789, 2
  %v1794 = vrot.slane %v1790, 1
  %v1795 = vsel %vm325, %v1794, %v1793
  %1796 = vrot.lane.b32.xlu0 %v1795, 32
  %v1797 = vpop.permute.xlu0 %1796
  %v1798 = vsel %vm113, %v1797, 0
  %1800 = vmatprep.subr.mxu0 0.0
  %1801 = vmatpush1.msra.mxu0 0.0
  %1802 = vmatprep.subr.mxu0 0.0
  %1803 = vmatpush1.msra.mxu0 0.0
  %1804 = vmatprep.subr.mxu0 0.0
  %1805 = vmatpush1.msra.mxu0 0.0
  %1806 = vmatprep.subr.mxu0 0.0
  %1807 = vmatpush1.msra.mxu0 0.0
  %1808 = vmatprep.subr.mxu0 0.0
  %1809 = vmatpush1.msra.mxu0 0.0
  %1810 = vmatprep.subr.mxu0 0.0
  %1811 = vmatpush1.msra.mxu0 0.0
  %1812 = vmatprep.subr.mxu0 0.0
  %1813 = vmatpush1.msra.mxu0 0.0
  %1814 = vmatprep.subr.mxu0 0.0
  %1815 = vmatpush1.msra.mxu0 0.0
  %1816 = vmatprep.subr.mxu0 0.0
  %1817 = vmatpush1.msra.mxu0 0.0
  %1818 = vmatprep.subr.mxu0 0.0
  %1819 = vmatpush1.msra.mxu0 0.0
  %1820 = vmatprep.subr.mxu0 0.0
  %1821 = vmatpush1.msra.mxu0 0.0
  %1822 = vmatprep.subr.mxu0 0.0
  %1823 = vmatpush1.msra.mxu0 0.0
  %1824 = vmatprep.subr.mxu0 0.0
  %1825 = vmatpush1.msra.mxu0 %v72
  %1826 = vmatprep.subr.mxu0 0.0
  %1827 = vmatpush1.msra.mxu0 %v71
  %1828 = vmatprep.subr.mxu0 0.0
  %1829 = vmatpush1.msra.mxu0 %v70
  %1830 = vmatprep.subr.mxu0 0.0
  %1831 = vmatpush1.msra.mxu0 %v69
  %1832 = vmatprep.subr.mxu0 0.0
  %1833 = vmatpush2.msra.mxu0 0.0
  %1834 = vmatprep.subr.mxu0 0.0
  %1835 = vmatpush2.msra.mxu0 0.0
  %1836 = vmatprep.subr.mxu0 0.0
  %1837 = vmatpush2.msra.mxu0 0.0
  %1838 = vmatprep.subr.mxu0 0.0
  %1839 = vmatpush2.msra.mxu0 0.0
  %1840 = vmatprep.subr.mxu0 0.0
  %1841 = vmatpush2.msra.mxu0 0.0
  %1842 = vmatprep.subr.mxu0 0.0
  %1843 = vmatpush2.msra.mxu0 0.0
  %1844 = vmatprep.subr.mxu0 0.0
  %1845 = vmatpush2.msra.mxu0 0.0
  %1846 = vmatprep.subr.mxu0 0.0
  %1847 = vmatpush2.msra.mxu0 0.0
  %1848 = vmatprep.subr.mxu0 0.0
  %1849 = vmatpush2.msra.mxu0 0.0
  %1850 = vmatprep.subr.mxu0 0.0
  %1851 = vmatpush2.msra.mxu0 0.0
  %1852 = vmatprep.subr.mxu0 0.0
  %1853 = vmatpush2.msra.mxu0 0.0
  %1854 = vmatprep.subr.mxu0 0.0
  %1855 = vmatpush2.msra.mxu0 0.0
  %1856 = vmatprep.subr.mxu0 0.0
  %1857 = vmatpush2.msra.mxu0 0.0
  %1858 = vmatprep.subr.mxu0 0.0
  %1859 = vmatpush2.msra.mxu0 0.0
  %1860 = vmatprep.subr.mxu0 0.0
  %1861 = vmatpush2.msra.mxu0 0.0
  %1862 = vmatprep.subr.mxu0 0.0
  %1863 = vmatpush2.msra.mxu0 0.0
  %1864 = vmatprep.mubr.f32.mxu0 0.0
  %1865 = vmatmul.mubr.f32.gmra.mxu0 %v1798
  %v1866 = vpop.f32.mrf.mxu0
  %v1867 = vadd.f32 0.0, %v1866
  %v1868 = vpop.f32.mrf.mxu0
  %1869 = vdwg.mxu0
  %v1871 = vrot.slane %v1867, 5
  %v1872 = vrot.slane %v1867, 6
  %v1875 = vadd.f32 %v1382, %v1871
  %v1876 = vadd.f32 %v1387, %v1872
  %v1877 = vxor.u32 %v1875, 2147483648
  %v1878 = vxor.u32 %v1876, 2147483648
  %v1879 = vmul.f32 %v1877, 1.442695
  %v1880 = vpow.pop %v1879
  %v1881 = vmul.f32 %v1878, 1.442695
  %v1882 = vpow.pop %v1881
  %v1883 = vadd.f32 %v1880, 1.0
  %v1884 = vadd.f32 %v1882, 1.0
  %v1885 = vrcp.pop %v1883
  %v1886 = vmul.f32 1.0, %v1885
  %v1887 = vrcp.pop %v1884
  %v1888 = vmul.f32 1.0, %v1887
  %v1889 = vtanh.pop %v1875
  %v1890 = vtanh.pop %v1876
  %v1893 = vrot.slane %v1777, 7
  %v1894 = vrot.slane %v1778, 7
  %v1897 = vmul.f32 %v1886, %v1893
  %v1898 = vmul.f32 %v1888, %v1894
  %1901 = vrot.lane.b32.xlu0 %v1889, 64
  %v1902 = vpop.permute.xlu0 %1901
  %1903 = vrot.lane.b32.xlu0 %v1890, 64
  %v1904 = vpop.permute.xlu0 %1903
  %v1907 = vmul.f32 %v1886, %v1902
  %v1908 = vmul.f32 %v1888, %v1904
  %1911 = vrot.lane.b32.xlu0 %v1907, 32
  %v1912 = vpop.permute.xlu0 %1911
  %1913 = vrot.lane.b32.xlu0 %v1908, 32
  %v1914 = vpop.permute.xlu0 %1913
  %v1917 = vadd.f32 %v1897, %v1912
  %v1918 = vadd.f32 %v1898, %v1914
  %v1919 = vtanh.pop %v1917
  %v1920 = vtanh.pop %v1918
  %1923 = vrot.lane.b32.xlu0 %v1919, 64
  %v1924 = vpop.permute.xlu0 %1923
  %1925 = vrot.lane.b32.xlu0 %v1920, 64
  %v1926 = vpop.permute.xlu0 %1925
  %v1929 = vmul.f32 %v1886, %v1924
  %v1930 = vmul.f32 %v1888, %v1926
  %v1933 = vrot.slane %v1929, 3
  %v1934 = vrot.slane %v1930, 2
  %v1935 = vsel %vm325, %v1934, %v1933
  %1936 = vrot.lane.b32.xlu0 %v1935, 32
  %v1937 = vpop.permute.xlu0 %1936
  %v1938 = vsel %vm113, %v1937, 0
  %1940 = vmatprep.subr.mxu0 0.0
  %1941 = vmatpush1.msra.mxu0 0.0
  %1942 = vmatprep.subr.mxu0 0.0
  %1943 = vmatpush1.msra.mxu0 0.0
  %1944 = vmatprep.subr.mxu0 0.0
  %1945 = vmatpush1.msra.mxu0 0.0
  %1946 = vmatprep.subr.mxu0 0.0
  %1947 = vmatpush1.msra.mxu0 0.0
  %1948 = vmatprep.subr.mxu0 0.0
  %1949 = vmatpush1.msra.mxu0 0.0
  %1950 = vmatprep.subr.mxu0 0.0
  %1951 = vmatpush1.msra.mxu0 0.0
  %1952 = vmatprep.subr.mxu0 0.0
  %1953 = vmatpush1.msra.mxu0 0.0
  %1954 = vmatprep.subr.mxu0 0.0
  %1955 = vmatpush1.msra.mxu0 0.0
  %1956 = vmatprep.subr.mxu0 0.0
  %1957 = vmatpush1.msra.mxu0 0.0
  %1958 = vmatprep.subr.mxu0 0.0
  %1959 = vmatpush1.msra.mxu0 0.0
  %1960 = vmatprep.subr.mxu0 0.0
  %1961 = vmatpush1.msra.mxu0 0.0
  %1962 = vmatprep.subr.mxu0 0.0
  %1963 = vmatpush1.msra.mxu0 0.0
  %1964 = vmatprep.subr.mxu0 0.0
  %1965 = vmatpush1.msra.mxu0 %v72
  %1966 = vmatprep.subr.mxu0 0.0
  %1967 = vmatpush1.msra.mxu0 %v71
  %1968 = vmatprep.subr.mxu0 0.0
  %1969 = vmatpush1.msra.mxu0 %v70
  %1970 = vmatprep.subr.mxu0 0.0
  %1971 = vmatpush1.msra.mxu0 %v69
  %1972 = vmatprep.subr.mxu0 0.0
  %1973 = vmatpush2.msra.mxu0 0.0
  %1974 = vmatprep.subr.mxu0 0.0
  %1975 = vmatpush2.msra.mxu0 0.0
  %1976 = vmatprep.subr.mxu0 0.0
  %1977 = vmatpush2.msra.mxu0 0.0
  %1978 = vmatprep.subr.mxu0 0.0
  %1979 = vmatpush2.msra.mxu0 0.0
  %1980 = vmatprep.subr.mxu0 0.0
  %1981 = vmatpush2.msra.mxu0 0.0
  %1982 = vmatprep.subr.mxu0 0.0
  %1983 = vmatpush2.msra.mxu0 0.0
  %1984 = vmatprep.subr.mxu0 0.0
  %1985 = vmatpush2.msra.mxu0 0.0
  %1986 = vmatprep.subr.mxu0 0.0
  %1987 = vmatpush2.msra.mxu0 0.0
  %1988 = vmatprep.subr.mxu0 0.0
  %1989 = vmatpush2.msra.mxu0 0.0
  %1990 = vmatprep.subr.mxu0 0.0
  %1991 = vmatpush2.msra.mxu0 0.0
  %1992 = vmatprep.subr.mxu0 0.0
  %1993 = vmatpush2.msra.mxu0 0.0
  %1994 = vmatprep.subr.mxu0 0.0
  %1995 = vmatpush2.msra.mxu0 0.0
  %1996 = vmatprep.subr.mxu0 0.0
  %1997 = vmatpush2.msra.mxu0 0.0
  %1998 = vmatprep.subr.mxu0 0.0
  %1999 = vmatpush2.msra.mxu0 0.0
  %2000 = vmatprep.subr.mxu0 0.0
  %2001 = vmatpush2.msra.mxu0 0.0
  %2002 = vmatprep.subr.mxu0 0.0
  %2003 = vmatpush2.msra.mxu0 0.0
  %2004 = vmatprep.mubr.f32.mxu0 0.0
  %2005 = vmatmul.mubr.f32.gmra.mxu0 %v1938
  %v2006 = vpop.f32.mrf.mxu0
  %v2007 = vadd.f32 0.0, %v2006
  %v2008 = vpop.f32.mrf.mxu0
  %2009 = vdwg.mxu0
  %v2011 = vrot.slane %v2007, 4
  %v2012 = vrot.slane %v2007, 5
  %v2015 = vadd.f32 %v1382, %v2011
  %v2016 = vadd.f32 %v1387, %v2012
  %v2017 = vxor.u32 %v2015, 2147483648
  %v2018 = vxor.u32 %v2016, 2147483648
  %v2019 = vmul.f32 %v2017, 1.442695
  %v2020 = vpow.pop %v2019
  %v2021 = vmul.f32 %v2018, 1.442695
  %v2022 = vpow.pop %v2021
  %v2023 = vadd.f32 %v2020, 1.0
  %v2024 = vadd.f32 %v2022, 1.0
  %v2025 = vrcp.pop %v2023
  %v2026 = vmul.f32 1.0, %v2025
  %v2027 = vrcp.pop %v2024
  %v2028 = vmul.f32 1.0, %v2027
  %v2029 = vtanh.pop %v2015
  %v2030 = vtanh.pop %v2016
  %v2033 = vrot.slane %v1917, 7
  %v2034 = vrot.slane %v1918, 7
  %v2037 = vmul.f32 %v2026, %v2033
  %v2038 = vmul.f32 %v2028, %v2034
  %2041 = vrot.lane.b32.xlu0 %v2029, 64
  %v2042 = vpop.permute.xlu0 %2041
  %2043 = vrot.lane.b32.xlu0 %v2030, 64
  %v2044 = vpop.permute.xlu0 %2043
  %v2047 = vmul.f32 %v2026, %v2042
  %v2048 = vmul.f32 %v2028, %v2044
  %2051 = vrot.lane.b32.xlu0 %v2047, 32
  %v2052 = vpop.permute.xlu0 %2051
  %2053 = vrot.lane.b32.xlu0 %v2048, 32
  %v2054 = vpop.permute.xlu0 %2053
  %v2057 = vadd.f32 %v2037, %v2052
  %v2058 = vadd.f32 %v2038, %v2054
  %v2059 = vtanh.pop %v2057
  %v2060 = vtanh.pop %v2058
  %2063 = vrot.lane.b32.xlu0 %v2059, 64
  %v2064 = vpop.permute.xlu0 %2063
  %2065 = vrot.lane.b32.xlu0 %v2060, 64
  %v2066 = vpop.permute.xlu0 %2065
  %v2069 = vmul.f32 %v2026, %v2064
  %v2070 = vmul.f32 %v2028, %v2066
  %v2073 = vrot.slane %v2069, 4
  %v2074 = vrot.slane %v2070, 3
  %v2075 = vsel %vm325, %v2074, %v2073
  %2076 = vrot.lane.b32.xlu0 %v2075, 32
  %v2077 = vpop.permute.xlu0 %2076
  %v2078 = vsel %vm113, %v2077, 0
  %2080 = vmatprep.subr.mxu0 0.0
  %2081 = vmatpush1.msra.mxu0 0.0
  %2082 = vmatprep.subr.mxu0 0.0
  %2083 = vmatpush1.msra.mxu0 0.0
  %2084 = vmatprep.subr.mxu0 0.0
  %2085 = vmatpush1.msra.mxu0 0.0
  %2086 = vmatprep.subr.mxu0 0.0
  %2087 = vmatpush1.msra.mxu0 0.0
  %2088 = vmatprep.subr.mxu0 0.0
  %2089 = vmatpush1.msra.mxu0 0.0
  %2090 = vmatprep.subr.mxu0 0.0
  %2091 = vmatpush1.msra.mxu0 0.0
  %2092 = vmatprep.subr.mxu0 0.0
  %2093 = vmatpush1.msra.mxu0 0.0
  %2094 = vmatprep.subr.mxu0 0.0
  %2095 = vmatpush1.msra.mxu0 0.0
  %2096 = vmatprep.subr.mxu0 0.0
  %2097 = vmatpush1.msra.mxu0 0.0
  %2098 = vmatprep.subr.mxu0 0.0
  %2099 = vmatpush1.msra.mxu0 0.0
  %2100 = vmatprep.subr.mxu0 0.0
  %2101 = vmatpush1.msra.mxu0 0.0
  %2102 = vmatprep.subr.mxu0 0.0
  %2103 = vmatpush1.msra.mxu0 0.0
  %2104 = vmatprep.subr.mxu0 0.0
  %2105 = vmatpush1.msra.mxu0 %v72
  %2106 = vmatprep.subr.mxu0 0.0
  %2107 = vmatpush1.msra.mxu0 %v71
  %2108 = vmatprep.subr.mxu0 0.0
  %2109 = vmatpush1.msra.mxu0 %v70
  %2110 = vmatprep.subr.mxu0 0.0
  %2111 = vmatpush1.msra.mxu0 %v69
  %2112 = vmatprep.subr.mxu0 0.0
  %2113 = vmatpush2.msra.mxu0 0.0
  %2114 = vmatprep.subr.mxu0 0.0
  %2115 = vmatpush2.msra.mxu0 0.0
  %2116 = vmatprep.subr.mxu0 0.0
  %2117 = vmatpush2.msra.mxu0 0.0
  %2118 = vmatprep.subr.mxu0 0.0
  %2119 = vmatpush2.msra.mxu0 0.0
  %2120 = vmatprep.subr.mxu0 0.0
  %2121 = vmatpush2.msra.mxu0 0.0
  %2122 = vmatprep.subr.mxu0 0.0
  %2123 = vmatpush2.msra.mxu0 0.0
  %2124 = vmatprep.subr.mxu0 0.0
  %2125 = vmatpush2.msra.mxu0 0.0
  %2126 = vmatprep.subr.mxu0 0.0
  %2127 = vmatpush2.msra.mxu0 0.0
  %2128 = vmatprep.subr.mxu0 0.0
  %2129 = vmatpush2.msra.mxu0 0.0
  %2130 = vmatprep.subr.mxu0 0.0
  %2131 = vmatpush2.msra.mxu0 0.0
  %2132 = vmatprep.subr.mxu0 0.0
  %2133 = vmatpush2.msra.mxu0 0.0
  %2134 = vmatprep.subr.mxu0 0.0
  %2135 = vmatpush2.msra.mxu0 0.0
  %2136 = vmatprep.subr.mxu0 0.0
  %2137 = vmatpush2.msra.mxu0 0.0
  %2138 = vmatprep.subr.mxu0 0.0
  %2139 = vmatpush2.msra.mxu0 0.0
  %2140 = vmatprep.subr.mxu0 0.0
  %2141 = vmatpush2.msra.mxu0 0.0
  %2142 = vmatprep.subr.mxu0 0.0
  %2143 = vmatpush2.msra.mxu0 0.0
  %2144 = vmatprep.mubr.f32.mxu0 0.0
  %2145 = vmatmul.mubr.f32.gmra.mxu0 %v2078
  %v2146 = vpop.f32.mrf.mxu0
  %v2147 = vadd.f32 0.0, %v2146
  %v2148 = vpop.f32.mrf.mxu0
  %2149 = vdwg.mxu0
  %v2151 = vrot.slane %v2147, 3
  %v2152 = vrot.slane %v2147, 4
  %v2155 = vadd.f32 %v1382, %v2151
  %v2156 = vadd.f32 %v1387, %v2152
  %v2157 = vxor.u32 %v2155, 2147483648
  %v2158 = vxor.u32 %v2156, 2147483648
  %v2159 = vmul.f32 %v2157, 1.442695
  %v2160 = vpow.pop %v2159
  %v2161 = vmul.f32 %v2158, 1.442695
  %v2162 = vpow.pop %v2161
  %v2163 = vadd.f32 %v2160, 1.0
  %v2164 = vadd.f32 %v2162, 1.0
  %v2165 = vrcp.pop %v2163
  %v2166 = vmul.f32 1.0, %v2165
  %v2167 = vrcp.pop %v2164
  %v2168 = vmul.f32 1.0, %v2167
  %v2169 = vtanh.pop %v2155
  %v2170 = vtanh.pop %v2156
  %v2173 = vrot.slane %v2057, 7
  %v2174 = vrot.slane %v2058, 7
  %v2177 = vmul.f32 %v2166, %v2173
  %v2178 = vmul.f32 %v2168, %v2174
  %2181 = vrot.lane.b32.xlu0 %v2169, 64
  %v2182 = vpop.permute.xlu0 %2181
  %2183 = vrot.lane.b32.xlu0 %v2170, 64
  %v2184 = vpop.permute.xlu0 %2183
  %v2187 = vmul.f32 %v2166, %v2182
  %v2188 = vmul.f32 %v2168, %v2184
  %2191 = vrot.lane.b32.xlu0 %v2187, 32
  %v2192 = vpop.permute.xlu0 %2191
  %2193 = vrot.lane.b32.xlu0 %v2188, 32
  %v2194 = vpop.permute.xlu0 %2193
  %v2197 = vadd.f32 %v2177, %v2192
  %v2198 = vadd.f32 %v2178, %v2194
  %v2199 = vtanh.pop %v2197
  %v2200 = vtanh.pop %v2198
  %2203 = vrot.lane.b32.xlu0 %v2199, 64
  %v2204 = vpop.permute.xlu0 %2203
  %2205 = vrot.lane.b32.xlu0 %v2200, 64
  %v2206 = vpop.permute.xlu0 %2205
  %v2209 = vmul.f32 %v2166, %v2204
  %v2210 = vmul.f32 %v2168, %v2206
  %v2213 = vrot.slane %v2209, 5
  %v2214 = vrot.slane %v2210, 4
  %v2215 = vsel %vm325, %v2214, %v2213
  %2216 = vrot.lane.b32.xlu0 %v2215, 32
  %v2217 = vpop.permute.xlu0 %2216
  %v2218 = vsel %vm113, %v2217, 0
  %2220 = vmatprep.subr.mxu0 0.0
  %2221 = vmatpush1.msra.mxu0 0.0
  %2222 = vmatprep.subr.mxu0 0.0
  %2223 = vmatpush1.msra.mxu0 0.0
  %2224 = vmatprep.subr.mxu0 0.0
  %2225 = vmatpush1.msra.mxu0 0.0
  %2226 = vmatprep.subr.mxu0 0.0
  %2227 = vmatpush1.msra.mxu0 0.0
  %2228 = vmatprep.subr.mxu0 0.0
  %2229 = vmatpush1.msra.mxu0 0.0
  %2230 = vmatprep.subr.mxu0 0.0
  %2231 = vmatpush1.msra.mxu0 0.0
  %2232 = vmatprep.subr.mxu0 0.0
  %2233 = vmatpush1.msra.mxu0 0.0
  %2234 = vmatprep.subr.mxu0 0.0
  %2235 = vmatpush1.msra.mxu0 0.0
  %2236 = vmatprep.subr.mxu0 0.0
  %2237 = vmatpush1.msra.mxu0 0.0
  %2238 = vmatprep.subr.mxu0 0.0
  %2239 = vmatpush1.msra.mxu0 0.0
  %2240 = vmatprep.subr.mxu0 0.0
  %2241 = vmatpush1.msra.mxu0 0.0
  %2242 = vmatprep.subr.mxu0 0.0
  %2243 = vmatpush1.msra.mxu0 0.0
  %2244 = vmatprep.subr.mxu0 0.0
  %2245 = vmatpush1.msra.mxu0 %v72
  %2246 = vmatprep.subr.mxu0 0.0
  %2247 = vmatpush1.msra.mxu0 %v71
  %2248 = vmatprep.subr.mxu0 0.0
  %2249 = vmatpush1.msra.mxu0 %v70
  %2250 = vmatprep.subr.mxu0 0.0
  %2251 = vmatpush1.msra.mxu0 %v69
  %2252 = vmatprep.subr.mxu0 0.0
  %2253 = vmatpush2.msra.mxu0 0.0
  %2254 = vmatprep.subr.mxu0 0.0
  %2255 = vmatpush2.msra.mxu0 0.0
  %2256 = vmatprep.subr.mxu0 0.0
  %2257 = vmatpush2.msra.mxu0 0.0
  %2258 = vmatprep.subr.mxu0 0.0
  %2259 = vmatpush2.msra.mxu0 0.0
  %2260 = vmatprep.subr.mxu0 0.0
  %2261 = vmatpush2.msra.mxu0 0.0
  %2262 = vmatprep.subr.mxu0 0.0
  %2263 = vmatpush2.msra.mxu0 0.0
  %2264 = vmatprep.subr.mxu0 0.0
  %2265 = vmatpush2.msra.mxu0 0.0
  %2266 = vmatprep.subr.mxu0 0.0
  %2267 = vmatpush2.msra.mxu0 0.0
  %2268 = vmatprep.subr.mxu0 0.0
  %2269 = vmatpush2.msra.mxu0 0.0
  %2270 = vmatprep.subr.mxu0 0.0
  %2271 = vmatpush2.msra.mxu0 0.0
  %2272 = vmatprep.subr.mxu0 0.0
  %2273 = vmatpush2.msra.mxu0 0.0
  %2274 = vmatprep.subr.mxu0 0.0
  %2275 = vmatpush2.msra.mxu0 0.0
  %2276 = vmatprep.subr.mxu0 0.0
  %2277 = vmatpush2.msra.mxu0 0.0
  %2278 = vmatprep.subr.mxu0 0.0
  %2279 = vmatpush2.msra.mxu0 0.0
  %2280 = vmatprep.subr.mxu0 0.0
  %2281 = vmatpush2.msra.mxu0 0.0
  %2282 = vmatprep.subr.mxu0 0.0
  %2283 = vmatpush2.msra.mxu0 0.0
  %2284 = vmatprep.mubr.f32.mxu0 0.0
  %2285 = vmatmul.mubr.f32.gmra.mxu0 %v2218
  %v2286 = vpop.f32.mrf.mxu0
  %v2287 = vadd.f32 0.0, %v2286
  %v2288 = vpop.f32.mrf.mxu0
  %2289 = vdwg.mxu0
  %v2291 = vrot.slane %v2287, 2
  %v2292 = vrot.slane %v2287, 3
  %v2295 = vadd.f32 %v1382, %v2291
  %v2296 = vadd.f32 %v1387, %v2292
  %v2297 = vxor.u32 %v2295, 2147483648
  %v2298 = vxor.u32 %v2296, 2147483648
  %v2299 = vmul.f32 %v2297, 1.442695
  %v2300 = vpow.pop %v2299
  %v2301 = vmul.f32 %v2298, 1.442695
  %v2302 = vpow.pop %v2301
  %v2303 = vadd.f32 %v2300, 1.0
  %v2304 = vadd.f32 %v2302, 1.0
  %v2305 = vrcp.pop %v2303
  %v2306 = vmul.f32 1.0, %v2305
  %v2307 = vrcp.pop %v2304
  %v2308 = vmul.f32 1.0, %v2307
  %v2309 = vtanh.pop %v2295
  %v2310 = vtanh.pop %v2296
  %v2313 = vrot.slane %v2197, 7
  %v2314 = vrot.slane %v2198, 7
  %v2317 = vmul.f32 %v2306, %v2313
  %v2318 = vmul.f32 %v2308, %v2314
  %2321 = vrot.lane.b32.xlu0 %v2309, 64
  %v2322 = vpop.permute.xlu0 %2321
  %2323 = vrot.lane.b32.xlu0 %v2310, 64
  %v2324 = vpop.permute.xlu0 %2323
  %v2327 = vmul.f32 %v2306, %v2322
  %v2328 = vmul.f32 %v2308, %v2324
  %2331 = vrot.lane.b32.xlu0 %v2327, 32
  %v2332 = vpop.permute.xlu0 %2331
  %2333 = vrot.lane.b32.xlu0 %v2328, 32
  %v2334 = vpop.permute.xlu0 %2333
  %v2337 = vadd.f32 %v2317, %v2332
  %v2338 = vadd.f32 %v2318, %v2334
  %v2339 = vtanh.pop %v2337
  %v2340 = vtanh.pop %v2338
  %2343 = vrot.lane.b32.xlu0 %v2339, 64
  %v2344 = vpop.permute.xlu0 %2343
  %2345 = vrot.lane.b32.xlu0 %v2340, 64
  %v2346 = vpop.permute.xlu0 %2345
  %v2349 = vmul.f32 %v2306, %v2344
  %v2350 = vmul.f32 %v2308, %v2346
  %v2353 = vrot.slane %v2349, 6
  %v2354 = vrot.slane %v2350, 5
  %v2355 = vsel %vm325, %v2354, %v2353
  %2356 = vrot.lane.b32.xlu0 %v2355, 32
  %v2357 = vpop.permute.xlu0 %2356
  %v2358 = vsel %vm113, %v2357, 0
  %2360 = vmatprep.subr.mxu0 0.0
  %2361 = vmatpush1.msra.mxu0 0.0
  %2362 = vmatprep.subr.mxu0 0.0
  %2363 = vmatpush1.msra.mxu0 0.0
  %2364 = vmatprep.subr.mxu0 0.0
  %2365 = vmatpush1.msra.mxu0 0.0
  %2366 = vmatprep.subr.mxu0 0.0
  %2367 = vmatpush1.msra.mxu0 0.0
  %2368 = vmatprep.subr.mxu0 0.0
  %2369 = vmatpush1.msra.mxu0 0.0
  %2370 = vmatprep.subr.mxu0 0.0
  %2371 = vmatpush1.msra.mxu0 0.0
  %2372 = vmatprep.subr.mxu0 0.0
  %2373 = vmatpush1.msra.mxu0 0.0
  %2374 = vmatprep.subr.mxu0 0.0
  %2375 = vmatpush1.msra.mxu0 0.0
  %2376 = vmatprep.subr.mxu0 0.0
  %2377 = vmatpush1.msra.mxu0 0.0
  %2378 = vmatprep.subr.mxu0 0.0
  %2379 = vmatpush1.msra.mxu0 0.0
  %2380 = vmatprep.subr.mxu0 0.0
  %2381 = vmatpush1.msra.mxu0 0.0
  %2382 = vmatprep.subr.mxu0 0.0
  %2383 = vmatpush1.msra.mxu0 0.0
  %2384 = vmatprep.subr.mxu0 0.0
  %2385 = vmatpush1.msra.mxu0 %v72
  %2386 = vmatprep.subr.mxu0 0.0
  %2387 = vmatpush1.msra.mxu0 %v71
  %2388 = vmatprep.subr.mxu0 0.0
  %2389 = vmatpush1.msra.mxu0 %v70
  %2390 = vmatprep.subr.mxu0 0.0
  %2391 = vmatpush1.msra.mxu0 %v69
  %2392 = vmatprep.subr.mxu0 0.0
  %2393 = vmatpush2.msra.mxu0 0.0
  %2394 = vmatprep.subr.mxu0 0.0
  %2395 = vmatpush2.msra.mxu0 0.0
  %2396 = vmatprep.subr.mxu0 0.0
  %2397 = vmatpush2.msra.mxu0 0.0
  %2398 = vmatprep.subr.mxu0 0.0
  %2399 = vmatpush2.msra.mxu0 0.0
  %2400 = vmatprep.subr.mxu0 0.0
  %2401 = vmatpush2.msra.mxu0 0.0
  %2402 = vmatprep.subr.mxu0 0.0
  %2403 = vmatpush2.msra.mxu0 0.0
  %2404 = vmatprep.subr.mxu0 0.0
  %2405 = vmatpush2.msra.mxu0 0.0
  %2406 = vmatprep.subr.mxu0 0.0
  %2407 = vmatpush2.msra.mxu0 0.0
  %2408 = vmatprep.subr.mxu0 0.0
  %2409 = vmatpush2.msra.mxu0 0.0
  %2410 = vmatprep.subr.mxu0 0.0
  %2411 = vmatpush2.msra.mxu0 0.0
  %2412 = vmatprep.subr.mxu0 0.0
  %2413 = vmatpush2.msra.mxu0 0.0
  %2414 = vmatprep.subr.mxu0 0.0
  %2415 = vmatpush2.msra.mxu0 0.0
  %2416 = vmatprep.subr.mxu0 0.0
  %2417 = vmatpush2.msra.mxu0 0.0
  %2418 = vmatprep.subr.mxu0 0.0
  %2419 = vmatpush2.msra.mxu0 0.0
  %2420 = vmatprep.subr.mxu0 0.0
  %2421 = vmatpush2.msra.mxu0 0.0
  %2422 = vmatprep.subr.mxu0 0.0
  %2423 = vmatpush2.msra.mxu0 0.0
  %2424 = vmatprep.mubr.f32.mxu0 0.0
  %2425 = vmatmul.mubr.f32.gmra.mxu0 %v2358
  %v2426 = vpop.f32.mrf.mxu0
  %v2427 = vadd.f32 0.0, %v2426
  %v2428 = vpop.f32.mrf.mxu0
  %2429 = vdwg.mxu0
  %v2431 = vrot.slane %v2427, 1
  %v2432 = vrot.slane %v2427, 2
  %v2435 = vadd.f32 %v1382, %v2431
  %v2436 = vadd.f32 %v1387, %v2432
  %v2437 = vxor.u32 %v2435, 2147483648
  %v2438 = vxor.u32 %v2436, 2147483648
  %v2439 = vmul.f32 %v2437, 1.442695
  %v2440 = vpow.pop %v2439
  %v2441 = vmul.f32 %v2438, 1.442695
  %v2442 = vpow.pop %v2441
  %v2443 = vadd.f32 %v2440, 1.0
  %v2444 = vadd.f32 %v2442, 1.0
  %v2445 = vrcp.pop %v2443
  %v2446 = vmul.f32 1.0, %v2445
  %v2447 = vrcp.pop %v2444
  %v2448 = vmul.f32 1.0, %v2447
  %v2449 = vtanh.pop %v2435
  %v2450 = vtanh.pop %v2436
  %v2453 = vrot.slane %v2337, 7
  %v2454 = vrot.slane %v2338, 7
  %v2457 = vmul.f32 %v2446, %v2453
  %v2458 = vmul.f32 %v2448, %v2454
  %2461 = vrot.lane.b32.xlu0 %v2449, 64
  %v2462 = vpop.permute.xlu0 %2461
  %2463 = vrot.lane.b32.xlu0 %v2450, 64
  %v2464 = vpop.permute.xlu0 %2463
  %v2467 = vmul.f32 %v2446, %v2462
  %v2468 = vmul.f32 %v2448, %v2464
  %2471 = vrot.lane.b32.xlu0 %v2467, 32
  %v2472 = vpop.permute.xlu0 %2471
  %2473 = vrot.lane.b32.xlu0 %v2468, 32
  %v2474 = vpop.permute.xlu0 %2473
  %v2477 = vadd.f32 %v2457, %v2472
  %v2478 = vadd.f32 %v2458, %v2474
  %v2479 = vtanh.pop %v2477
  %v2480 = vtanh.pop %v2478
  %2483 = vrot.lane.b32.xlu0 %v2479, 64
  %v2484 = vpop.permute.xlu0 %2483
  %2485 = vrot.lane.b32.xlu0 %v2480, 64
  %v2486 = vpop.permute.xlu0 %2485
  %v2489 = vmul.f32 %v2446, %v2484
  %v2490 = vmul.f32 %v2448, %v2486
  %v2492 = vlaneseq
  %v2493 = vshrl.u32 %v2492, 7
  %v2494 = vsub.s32 0, %v2493
  %v2495 = vrot.slane %v80, %v2494
  %2497 = vmatprep.subr.mxu0 0.0
  %2498 = vmatpush1.msra.mxu0 0.0
  %2499 = vmatprep.subr.mxu0 0.0
  %2500 = vmatpush1.msra.mxu0 0.0
  %2501 = vmatprep.subr.mxu0 0.0
  %2502 = vmatpush1.msra.mxu0 0.0
  %2503 = vmatprep.subr.mxu0 0.0
  %2504 = vmatpush1.msra.mxu0 0.0
  %2505 = vmatprep.subr.mxu0 0.0
  %2506 = vmatpush1.msra.mxu0 0.0
  %2507 = vmatprep.subr.mxu0 0.0
  %2508 = vmatpush1.msra.mxu0 0.0
  %2509 = vmatprep.subr.mxu0 0.0
  %2510 = vmatpush1.msra.mxu0 0.0
  %2511 = vmatprep.subr.mxu0 0.0
  %2512 = vmatpush1.msra.mxu0 0.0
  %2513 = vmatprep.subr.mxu0 0.0
  %2514 = vmatpush1.msra.mxu0 0.0
  %2515 = vmatprep.subr.mxu0 0.0
  %2516 = vmatpush1.msra.mxu0 0.0
  %2517 = vmatprep.subr.mxu0 0.0
  %2518 = vmatpush1.msra.mxu0 0.0
  %2519 = vmatprep.subr.mxu0 0.0
  %2520 = vmatpush1.msra.mxu0 0.0
  %2521 = vmatprep.subr.mxu0 0.0
  %2522 = vmatpush1.msra.mxu0 0.0
  %2523 = vmatprep.subr.mxu0 0.0
  %2524 = vmatpush1.msra.mxu0 0.0
  %2525 = vmatprep.subr.mxu0 0.0
  %2526 = vmatpush1.msra.mxu0 %v75
  %2527 = vmatprep.subr.mxu0 0.0
  %2528 = vmatpush1.msra.mxu0 %v74
  %2529 = vmatprep.subr.mxu0 0.0
  %2530 = vmatpush2.msra.mxu0 0.0
  %2531 = vmatprep.subr.mxu0 0.0
  %2532 = vmatpush2.msra.mxu0 0.0
  %2533 = vmatprep.subr.mxu0 0.0
  %2534 = vmatpush2.msra.mxu0 0.0
  %2535 = vmatprep.subr.mxu0 0.0
  %2536 = vmatpush2.msra.mxu0 0.0
  %2537 = vmatprep.subr.mxu0 0.0
  %2538 = vmatpush2.msra.mxu0 0.0
  %2539 = vmatprep.subr.mxu0 0.0
  %2540 = vmatpush2.msra.mxu0 0.0
  %2541 = vmatprep.subr.mxu0 0.0
  %2542 = vmatpush2.msra.mxu0 0.0
  %2543 = vmatprep.subr.mxu0 0.0
  %2544 = vmatpush2.msra.mxu0 0.0
  %2545 = vmatprep.subr.mxu0 0.0
  %2546 = vmatpush2.msra.mxu0 0.0
  %2547 = vmatprep.subr.mxu0 0.0
  %2548 = vmatpush2.msra.mxu0 0.0
  %2549 = vmatprep.subr.mxu0 0.0
  %2550 = vmatpush2.msra.mxu0 0.0
  %2551 = vmatprep.subr.mxu0 0.0
  %2552 = vmatpush2.msra.mxu0 0.0
  %2553 = vmatprep.subr.mxu0 0.0
  %2554 = vmatpush2.msra.mxu0 0.0
  %2555 = vmatprep.subr.mxu0 0.0
  %2556 = vmatpush2.msra.mxu0 0.0
  %2557 = vmatprep.subr.mxu0 0.0
  %2558 = vmatpush2.msra.mxu0 0.0
  %2559 = vmatprep.subr.mxu0 0.0
  %2560 = vmatpush2.msra.mxu0 0.0
  %2561 = vmatprep.mubr.f32.mxu0 0.0
  %2562 = vmatmul.mubr.f32.gmra.mxu0 %v1310
  %v2563 = vpop.f32.mrf.mxu0
  %v2564 = vadd.f32 %v2495, %v2563
  %v2565 = vpop.f32.mrf.mxu0
  %2566 = vmatprep.mubr.f32.mxu0 0.0
  %2567 = vmatmul.mubr.f32.gmra.mxu0 %v1313
  %v2568 = vpop.f32.mrf.mxu0
  %v2569 = vadd.f32 %v2495, %v2568
  %v2570 = vpop.f32.mrf.mxu0
  %2571 = vdwg.mxu0
  %2572 = vmatprep.subr.mxu0 0.0
  %2573 = vmatpush1.msra.mxu0 0.0
  %2574 = vmatprep.subr.mxu0 0.0
  %2575 = vmatpush1.msra.mxu0 0.0
  %2576 = vmatprep.subr.mxu0 0.0
  %2577 = vmatpush1.msra.mxu0 0.0
  %2578 = vmatprep.subr.mxu0 0.0
  %2579 = vmatpush1.msra.mxu0 0.0
  %2580 = vmatprep.subr.mxu0 0.0
  %2581 = vmatpush1.msra.mxu0 0.0
  %2582 = vmatprep.subr.mxu0 0.0
  %2583 = vmatpush1.msra.mxu0 0.0
  %2584 = vmatprep.subr.mxu0 0.0
  %2585 = vmatpush1.msra.mxu0 0.0
  %2586 = vmatprep.subr.mxu0 0.0
  %2587 = vmatpush1.msra.mxu0 0.0
  %2588 = vmatprep.subr.mxu0 0.0
  %2589 = vmatpush1.msra.mxu0 0.0
  %2590 = vmatprep.subr.mxu0 0.0
  %2591 = vmatpush1.msra.mxu0 0.0
  %2592 = vmatprep.subr.mxu0 0.0
  %2593 = vmatpush1.msra.mxu0 0.0
  %2594 = vmatprep.subr.mxu0 0.0
  %2595 = vmatpush1.msra.mxu0 0.0
  %2596 = vmatprep.subr.mxu0 0.0
  %2597 = vmatpush1.msra.mxu0 %v79
  %2598 = vmatprep.subr.mxu0 0.0
  %2599 = vmatpush1.msra.mxu0 %v78
  %2600 = vmatprep.subr.mxu0 0.0
  %2601 = vmatpush1.msra.mxu0 %v77
  %2602 = vmatprep.subr.mxu0 0.0
  %2603 = vmatpush1.msra.mxu0 %v76
  %2604 = vmatprep.subr.mxu0 0.0
  %2605 = vmatpush2.msra.mxu0 0.0
  %2606 = vmatprep.subr.mxu0 0.0
  %2607 = vmatpush2.msra.mxu0 0.0
  %2608 = vmatprep.subr.mxu0 0.0
  %2609 = vmatpush2.msra.mxu0 0.0
  %2610 = vmatprep.subr.mxu0 0.0
  %2611 = vmatpush2.msra.mxu0 0.0
  %2612 = vmatprep.subr.mxu0 0.0
  %2613 = vmatpush2.msra.mxu0 0.0
  %2614 = vmatprep.subr.mxu0 0.0
  %2615 = vmatpush2.msra.mxu0 0.0
  %2616 = vmatprep.subr.mxu0 0.0
  %2617 = vmatpush2.msra.mxu0 0.0
  %2618 = vmatprep.subr.mxu0 0.0
  %2619 = vmatpush2.msra.mxu0 0.0
  %2620 = vmatprep.subr.mxu0 0.0
  %2621 = vmatpush2.msra.mxu0 0.0
  %2622 = vmatprep.subr.mxu0 0.0
  %2623 = vmatpush2.msra.mxu0 0.0
  %2624 = vmatprep.subr.mxu0 0.0
  %2625 = vmatpush2.msra.mxu0 0.0
  %2626 = vmatprep.subr.mxu0 0.0
  %2627 = vmatpush2.msra.mxu0 0.0
  %2628 = vmatprep.subr.mxu0 0.0
  %2629 = vmatpush2.msra.mxu0 0.0
  %2630 = vmatprep.subr.mxu0 0.0
  %2631 = vmatpush2.msra.mxu0 0.0
  %2632 = vmatprep.subr.mxu0 0.0
  %2633 = vmatpush2.msra.mxu0 0.0
  %2634 = vmatprep.subr.mxu0 0.0
  %2635 = vmatpush2.msra.mxu0 0.0
  %2636 = vmatprep.mubr.f32.mxu0 0.0
  %2637 = vmatmul.mubr.f32.gmra.mxu0 %v196
  %v2638 = vpop.f32.mrf.mxu0
  %v2639 = vadd.f32 0.0, %v2638
  %v2640 = vpop.f32.mrf.mxu0
  %2641 = vdwg.mxu0
  %v2643 = vrot.slane %v2639, 1
  %v2644 = vrot.slane %v2639, 2
  %v2647 = vadd.f32 %v2564, %v2643
  %v2648 = vadd.f32 %v2569, %v2644
  %v2649 = vxor.u32 %v2647, 2147483648
  %v2650 = vxor.u32 %v2648, 2147483648
  %v2651 = vmul.f32 %v2649, 1.442695
  %v2652 = vpow.pop %v2651
  %v2653 = vmul.f32 %v2650, 1.442695
  %v2654 = vpow.pop %v2653
  %v2655 = vadd.f32 %v2652, 1.0
  %v2656 = vadd.f32 %v2654, 1.0
  %v2657 = vrcp.pop %v2655
  %v2658 = vmul.f32 1.0, %v2657
  %v2659 = vrcp.pop %v2656
  %v2660 = vmul.f32 1.0, %v2659
  %v2661 = vtanh.pop %v2647
  %v2662 = vtanh.pop %v2648
  %v2663 = vmul.f32 %v2658, 0.0
  %v2664 = vmul.f32 %v2660, 0.0
  %2667 = vrot.lane.b32.xlu0 %v2661, 64
  %v2668 = vpop.permute.xlu0 %2667
  %2669 = vrot.lane.b32.xlu0 %v2662, 64
  %v2670 = vpop.permute.xlu0 %2669
  %v2673 = vmul.f32 %v2658, %v2668
  %v2674 = vmul.f32 %v2660, %v2670
  %2677 = vrot.lane.b32.xlu0 %v2673, 32
  %v2678 = vpop.permute.xlu0 %2677
  %2679 = vrot.lane.b32.xlu0 %v2674, 32
  %v2680 = vpop.permute.xlu0 %2679
  %v2683 = vadd.f32 %v2663, %v2678
  %v2684 = vadd.f32 %v2664, %v2680
  %v2685 = vtanh.pop %v2683
  %v2686 = vtanh.pop %v2684
  %2689 = vrot.lane.b32.xlu0 %v2685, 64
  %v2690 = vpop.permute.xlu0 %2689
  %2691 = vrot.lane.b32.xlu0 %v2686, 64
  %v2692 = vpop.permute.xlu0 %2691
  %v2695 = vmul.f32 %v2658, %v2690
  %v2696 = vmul.f32 %v2660, %v2692
  %v2699 = vrot.slane %v2490, 7
  %2700 = vrot.lane.b32.xlu0 %v2489, 32
  %v2701 = vpop.permute.xlu0 %2700
  %2702 = vrot.lane.b32.xlu0 %v2699, 32
  %v2703 = vpop.permute.xlu0 %2702
  %v2708 = vrot.slane %v2696, 7
  %2709 = vrot.lane.b32.xlu0 %v2695, 64
  %v2710 = vpop.permute.xlu0 %2709
  %2711 = vrot.lane.b32.xlu0 %v2708, 64
  %v2712 = vpop.permute.xlu0 %2711
  %v2715 = vsel %vm113, %v2701, %v2710
  %v2716 = vsel %vm113, %v2703, %v2712
  %v2719 = vrot.slane %v1299, 7
  %2720 = vrot.lane.b32.xlu0 %v1298, 32
  %v2721 = vpop.permute.xlu0 %2720
  %2722 = vrot.lane.b32.xlu0 %v2719, 32
  %v2723 = vpop.permute.xlu0 %2722
  %2728 = vrot.lane.b32.xlu0 %v2715, 32
  %v2729 = vpop.permute.xlu0 %2728
  %2730 = vrot.lane.b32.xlu0 %v2716, 32
  %v2731 = vpop.permute.xlu0 %2730
  %v2734 = vsel %vm113, %v2721, %v2729
  %v2735 = vsel %vm113, %v2723, %v2731
  %v2737 = vlaneseq
  %v2738 = vshrl.u32 %v2737, 7
  %v2739 = vsub.s32 0, %v2738
  %v2740 = vrot.slane %v93, %v2739
  %vm2744 = vcmask 1040384
  %v2745 = vrot.slane %v2734, 7
  %v2746 = vrot.slane %v2735, 7
  %v2747 = vsel %vm2744, %v2745, %v2746
  %vm2748 = vcmask 785408
  %v2749 = vsel %vm2748, %v2747, 0
  %2751 = vmatprep.subr.mxu0 0.0
  %2752 = vmatpush1.msra.mxu0 0.0
  %2753 = vmatprep.subr.mxu0 0.0
  %2754 = vmatpush1.msra.mxu0 0.0
  %2755 = vmatprep.subr.mxu0 0.0
  %2756 = vmatpush1.msra.mxu0 0.0
  %2757 = vmatprep.subr.mxu0 0.0
  %2758 = vmatpush1.msra.mxu0 0.0
  %2759 = vmatprep.subr.mxu0 0.0
  %2760 = vmatpush1.msra.mxu0 %v92
  %2761 = vmatprep.subr.mxu0 0.0
  %2762 = vmatpush1.msra.mxu0 %v91
  %2763 = vmatprep.subr.mxu0 0.0
  %2764 = vmatpush1.msra.mxu0 %v90
  %2765 = vmatprep.subr.mxu0 0.0
  %2766 = vmatpush1.msra.mxu0 %v89
  %2767 = vmatprep.subr.mxu0 0.0
  %2768 = vmatpush1.msra.mxu0 %v88
  %2769 = vmatprep.subr.mxu0 0.0
  %2770 = vmatpush1.msra.mxu0 %v87
  %2771 = vmatprep.subr.mxu0 0.0
  %2772 = vmatpush1.msra.mxu0 %v86
  %2773 = vmatprep.subr.mxu0 0.0
  %2774 = vmatpush1.msra.mxu0 %v85
  %2775 = vmatprep.subr.mxu0 0.0
  %2776 = vmatpush1.msra.mxu0 %v84
  %2777 = vmatprep.subr.mxu0 0.0
  %2778 = vmatpush1.msra.mxu0 %v83
  %2779 = vmatprep.subr.mxu0 0.0
  %2780 = vmatpush1.msra.mxu0 %v82
  %2781 = vmatprep.subr.mxu0 0.0
  %2782 = vmatpush1.msra.mxu0 %v81
  %2783 = vmatprep.subr.mxu0 0.0
  %2784 = vmatpush2.msra.mxu0 0.0
  %2785 = vmatprep.subr.mxu0 0.0
  %2786 = vmatpush2.msra.mxu0 0.0
  %2787 = vmatprep.subr.mxu0 0.0
  %2788 = vmatpush2.msra.mxu0 0.0
  %2789 = vmatprep.subr.mxu0 0.0
  %2790 = vmatpush2.msra.mxu0 0.0
  %2791 = vmatprep.subr.mxu0 0.0
  %2792 = vmatpush2.msra.mxu0 0.0
  %2793 = vmatprep.subr.mxu0 0.0
  %2794 = vmatpush2.msra.mxu0 0.0
  %2795 = vmatprep.subr.mxu0 0.0
  %2796 = vmatpush2.msra.mxu0 0.0
  %2797 = vmatprep.subr.mxu0 0.0
  %2798 = vmatpush2.msra.mxu0 0.0
  %2799 = vmatprep.subr.mxu0 0.0
  %2800 = vmatpush2.msra.mxu0 0.0
  %2801 = vmatprep.subr.mxu0 0.0
  %2802 = vmatpush2.msra.mxu0 0.0
  %2803 = vmatprep.subr.mxu0 0.0
  %2804 = vmatpush2.msra.mxu0 0.0
  %2805 = vmatprep.subr.mxu0 0.0
  %2806 = vmatpush2.msra.mxu0 0.0
  %2807 = vmatprep.subr.mxu0 0.0
  %2808 = vmatpush2.msra.mxu0 0.0
  %2809 = vmatprep.subr.mxu0 0.0
  %2810 = vmatpush2.msra.mxu0 0.0
  %2811 = vmatprep.subr.mxu0 0.0
  %2812 = vmatpush2.msra.mxu0 0.0
  %2813 = vmatprep.subr.mxu0 0.0
  %2814 = vmatpush2.msra.mxu0 0.0
  %2815 = vmatprep.mubr.f32.mxu0 0.0
  %2816 = vmatmul.mubr.f32.gmra.mxu0 %v2749
  %v2817 = vpop.f32.mrf.mxu0
  %v2818 = vadd.f32 %v2740, %v2817
  %v2819 = vpop.f32.mrf.mxu0
  %2820 = vdwg.mxu0
  %v2821 = vmax.f32 %v2818, 0.0
  %v2823 = vlaneseq
  %v2824 = vshrl.u32 %v2823, 7
  %v2825 = vsub.s32 0, %v2824
  %v2826 = vrot.slane %v102, %v2825
  %vm2828 = vcmask 523264
  %v2830 = vsel %vm2828, %v2821, 0
  %2832 = vmatprep.subr.mxu0 0.0
  %2833 = vmatpush1.msra.mxu0 0.0
  %2834 = vmatprep.subr.mxu0 0.0
  %2835 = vmatpush1.msra.mxu0 0.0
  %2836 = vmatprep.subr.mxu0 0.0
  %2837 = vmatpush1.msra.mxu0 0.0
  %2838 = vmatprep.subr.mxu0 0.0
  %2839 = vmatpush1.msra.mxu0 0.0
  %2840 = vmatprep.subr.mxu0 0.0
  %2841 = vmatpush1.msra.mxu0 0.0
  %2842 = vmatprep.subr.mxu0 0.0
  %2843 = vmatpush1.msra.mxu0 0.0
  %2844 = vmatprep.subr.mxu0 0.0
  %2845 = vmatpush1.msra.mxu0 0.0
  %2846 = vmatprep.subr.mxu0 0.0
  %2847 = vmatpush1.msra.mxu0 0.0
  %2848 = vmatprep.subr.mxu0 0.0
  %2849 = vmatpush1.msra.mxu0 %v101
  %2850 = vmatprep.subr.mxu0 0.0
  %2851 = vmatpush1.msra.mxu0 %v100
  %2852 = vmatprep.subr.mxu0 0.0
  %2853 = vmatpush1.msra.mxu0 %v99
  %2854 = vmatprep.subr.mxu0 0.0
  %2855 = vmatpush1.msra.mxu0 %v98
  %2856 = vmatprep.subr.mxu0 0.0
  %2857 = vmatpush1.msra.mxu0 %v97
  %2858 = vmatprep.subr.mxu0 0.0
  %2859 = vmatpush1.msra.mxu0 %v96
  %2860 = vmatprep.subr.mxu0 0.0
  %2861 = vmatpush1.msra.mxu0 %v95
  %2862 = vmatprep.subr.mxu0 0.0
  %2863 = vmatpush1.msra.mxu0 %v94
  %2864 = vmatprep.subr.mxu0 0.0
  %2865 = vmatpush2.msra.mxu0 0.0
  %2866 = vmatprep.subr.mxu0 0.0
  %2867 = vmatpush2.msra.mxu0 0.0
  %2868 = vmatprep.subr.mxu0 0.0
  %2869 = vmatpush2.msra.mxu0 0.0
  %2870 = vmatprep.subr.mxu0 0.0
  %2871 = vmatpush2.msra.mxu0 0.0
  %2872 = vmatprep.subr.mxu0 0.0
  %2873 = vmatpush2.msra.mxu0 0.0
  %2874 = vmatprep.subr.mxu0 0.0
  %2875 = vmatpush2.msra.mxu0 0.0
  %2876 = vmatprep.subr.mxu0 0.0
  %2877 = vmatpush2.msra.mxu0 0.0
  %2878 = vmatprep.subr.mxu0 0.0
  %2879 = vmatpush2.msra.mxu0 0.0
  %2880 = vmatprep.subr.mxu0 0.0
  %2881 = vmatpush2.msra.mxu0 0.0
  %2882 = vmatprep.subr.mxu0 0.0
  %2883 = vmatpush2.msra.mxu0 0.0
  %2884 = vmatprep.subr.mxu0 0.0
  %2885 = vmatpush2.msra.mxu0 0.0
  %2886 = vmatprep.subr.mxu0 0.0
  %2887 = vmatpush2.msra.mxu0 0.0
  %2888 = vmatprep.subr.mxu0 0.0
  %2889 = vmatpush2.msra.mxu0 0.0
  %2890 = vmatprep.subr.mxu0 0.0
  %2891 = vmatpush2.msra.mxu0 0.0
  %2892 = vmatprep.subr.mxu0 0.0
  %2893 = vmatpush2.msra.mxu0 0.0
  %2894 = vmatprep.subr.mxu0 0.0
  %2895 = vmatpush2.msra.mxu0 0.0
  %2896 = vmatprep.mubr.f32.mxu0 0.0
  %2897 = vmatmul.mubr.f32.gmra.mxu0 %v2830
  %v2898 = vpop.f32.mrf.mxu0
  %v2899 = vadd.f32 %v2826, %v2898
  %v2900 = vpop.f32.mrf.mxu0
  %2901 = vdwg.mxu0
  %v2902 = vmax.f32 %v2899, 0.0
  %v2904 = vlaneseq
  %v2905 = vshrl.u32 %v2904, 7
  %v2906 = vsub.s32 0, %v2905
  %v2907 = vrot.slane %v103, %v2906
  %v2909 = vmul.f32 %v2902, %v2907
  %vm2910 = vcmask 254976
  %v2911 = vsel %vm2910, %v2909, 0.0
  %2912 = vadd.xlane.f32.xlu0 %v2911
  %v2913 = vpop.xlane.xlu0 %2912
  %v2915 = vlaneseq
  %v2916 = vshrl.u32 %v2915, 7
  %v2917 = vsub.s32 0, %v2916
  %v2918 = vrot.slane %v104, %v2917
  %v2920 = vadd.f32 %v2913, %v2918
  %v2921 = vxor.u32 %v2920, 2147483648
  %v2922 = vmul.f32 %v2921, 1.442695
  %v2923 = vpow.pop %v2922
  %v2924 = vadd.f32 %v2923, 1.0
  %v2925 = vrcp.pop %v2924
  %v2926 = vmul.f32 1.0, %v2925
  %vm2927 = vcmask 1024
  %2928 = vst.msk [vmem:[%s17] sm:$0x3] %vm2927, %v2926
  // Predicated region
  $region70: #{tpu_custom_call.1} parent=0 // pred_check
    _
  $region71: #{tpu_custom_call.1} parent=0 // pred_check_branch
    %2930 = sbr.rel (0) target = $region73
  $region72: #{tpu_custom_call.1} parent=0 // pred_region
    _
  $region73: #{tpu_custom_call.1} parent=0 // pred_fallthru
    _
  // Predicated region
  $region74: #{tpu_custom_call.1} parent=0 // pred_check
    _
  $region75: #{tpu_custom_call.1} parent=0 // pred_check_branch
    %2932 = sbr.rel (0) target = $region77
  $region76: #{tpu_custom_call.1} parent=0 // pred_region
    _
  $region77: #{tpu_custom_call.1} parent=0 // pred_fallthru
    _

</llo_original>
